<compile_context>
chip_gen: v6e
topology: v6e:2x2x1
jax: 0.10.0
libtpu: 0.0.40
codegen_flags: <defaults>
</compile_context>

<pallas_src>
import jax
import jax.numpy as jnp
from jax.experimental import pallas as pl
from jax.experimental.pallas import tpu as pltpu

BN_EPS = 1e-5
HIDDEN = 512  # fixed by the module definition


def _round_up(n, m):
    return (n + m - 1) // m * m


def _make_kernel(B, DHW, T, C_pad, H_blk, n_t, resident):
    """Builds the two-pass kernel closure for static shapes."""
    inv_rows = 1.0 / float(B * DHW)   # true BN3d element count (padded lanes add 0)
    inv_dhw = 1.0 / float(DHW)
    inv_b = 1.0 / float(B)

    def kernel(x_ref,        # (1, C_pad, T)    bf16  input tile (native layout)
               wa_ref,       # (H_blk, C_pad)   bf16  area weight block (resident)
               ga_ref,       # (H_blk, 1)       f32   BatchNorm3d gamma block
               ba_ref,       # (H_blk, 1)       f32   BatchNorm3d beta block
               wg_ref,       # (H_blk, C_pad)   bf16  global weight block (resident)
               gg_ref,       # (H_blk, 1)       f32   BatchNorm1d gamma block
               bg_ref,       # (H_blk, 1)       f32   BatchNorm1d beta block
               area_ref,     # (1, H_blk, T)    bf16  area output tile
               glob_ref,     # (H_blk, B)       f32   global output (transposed)
               sum_ref,      # (H_blk, 1) f32 scratch: sum of ReLU(W^T x)
               sumsq_ref,    # (H_blk, 1) f32 scratch: sum of squares
               xsum_ref,     # (C_pad, B) f32 scratch: per-batch channel sums of x
               scale_ref,    # (H_blk, 1) f32 scratch: folded BN scale
               shift_ref,    # (H_blk, 1) f32 scratch: folded BN shift
               *act_scratch):  # [(B*n_t, H_blk, T) bf16] resident activations
        p = pl.program_id(1)
        b = pl.program_id(2)
        t = pl.program_id(3)
        first_bt = jnp.logical_and(b == 0, t == 0)

        # ---- phase 0, first step of this hidden block: zero the accumulators ---
        @pl.when(jnp.logical_and(p == 0, first_bt))
        def _init():
            sum_ref[...] = jnp.zeros_like(sum_ref)
            sumsq_ref[...] = jnp.zeros_like(sumsq_ref)
            xsum_ref[...] = jnp.zeros_like(xsum_ref)

        # ---- phase 0: matmul + ReLU per tile, accumulate BN stats --------------
        @pl.when(p == 0)
        def _stats():
            xt = x_ref[0]                                      # (C_pad, T) bf16
            a = jnp.maximum(
                jnp.dot(wa_ref[...], xt,
                        preferred_element_type=jnp.float32), 0.0)   # (H_blk, T)
            sum_ref[...] += jnp.sum(a, axis=1, keepdims=True)
            sumsq_ref[...] += jnp.sum(a * a, axis=1, keepdims=True)
            # Per-batch channel sums of x for the global path, done on the MXU:
            # x_tile (C_pad, T) @ onehot(T, B) accumulates into column `b` only
            # (bf16 one-hot products are exact, accumulation is f32).
            sel = (jax.lax.broadcasted_iota(jnp.int32, (T, B), 1) == b
                   ).astype(jnp.bfloat16)
            xsum_ref[...] += jnp.dot(xt, sel,
                                     preferred_element_type=jnp.float32)
            if resident:
                act_scratch[0][b * n_t + t] = a.astype(act_scratch[0].dtype)

        # ---- phase 1, first step: finalize BN stats + tiny global path ---------
        @pl.when(jnp.logical_and(p == 1, first_bt))
        def _finalize():
            mean = sum_ref[...] * inv_rows
            var = jnp.maximum(sumsq_ref[...] * inv_rows - mean * mean, 0.0)
            s = ga_ref[...] * jax.lax.rsqrt(var + BN_EPS)
            scale_ref[...] = s
            shift_ref[...] = ba_ref[...] - mean * s

            # Global path in the transposed (channels, batch) orientation:
            # spatial mean -> Linear -> ReLU -> BatchNorm1d over the batch.
            gin = (xsum_ref[...] * inv_dhw).astype(jnp.bfloat16)    # (C_pad, B)
            g = jnp.maximum(
                jnp.dot(wg_ref[...], gin,
                        preferred_element_type=jnp.float32), 0.0)   # (H_blk, B)
            gm = jnp.sum(g, axis=1, keepdims=True) * inv_b
            gd = g - gm
            gv = jnp.maximum(jnp.sum(gd * gd, axis=1, keepdims=True) * inv_b, 0.0)
            gs = gg_ref[...] * jax.lax.rsqrt(gv + BN_EPS)
            glob_ref[...] = g * gs + (bg_ref[...] - gm * gs)

        # ---- phase 1: apply folded BN, write each lane-dense tile once ----------
        @pl.when(p == 1)
        def _normalize():
            if resident:
                a = act_scratch[0][b * n_t + t].astype(jnp.float32)
            else:
                a = jnp.maximum(
                    jnp.dot(wa_ref[...], x_ref[0],
                            preferred_element_type=jnp.float32), 0.0)
            area_ref[0] = (a * scale_ref[...] + shift_ref[...]
                           ).astype(area_ref.dtype)

    return kernel


def attention_encoder_forward(inputs, params, *, tile_cols=512, hidden_splits=2,
                              resident_act_limit_bytes=20 << 20,
                              vmem_limit_bytes=None):
    """inputs: (B, C, D, H, W) float32 (PyTorch NCDHW convention).

    Returns (original_features, global_features, area_features) matching the
    PyTorch module: shapes (B,C,D,H,W) f32, (B,512) f32, (B,512,D*H*W) bf16.
    """
    B, C, D, H, W = inputs.shape
    DHW = D * H * W

    assert HIDDEN % hidden_splits == 0
    H_blk = HIDDEN // hidden_splits
    assert H_blk % 8 == 0

    # Tiling: lane-dense spatial tiles (multiple of 128); contraction dim C
    # padded to a multiple of 128 (zero rows/cols contribute nothing).
    T = min(_round_up(DHW, 128), _round_up(max(tile_cols, 128), 128))
    DHW_pad = _round_up(DHW, T)
    n_t = DHW_pad // T
    C_pad = _round_up(C, 128)

    # Activation-resident fast path (per hidden block, bf16).  Threshold default
    # is conservative for v7x's 64 MiB VMEM; raise it on v5e/v6e if desired.
    act_bytes = B * n_t * H_blk * T * 2
    resident = act_bytes <= resident_act_limit_bytes

    # Wrapper glue: free reshape to (B, C, DHW), pad + cast to bf16 (one pass),
    # transpose the tiny weights to (HIDDEN, C_pad) so the kernel computes
    # W^T @ x with channels on sublanes and spatial on lanes.
    x = inputs.reshape(B, C, DHW)
    x = jnp.pad(x, ((0, 0), (0, C_pad - C), (0, DHW_pad - DHW))).astype(jnp.bfloat16)
    wa_t = jnp.pad(params["w_area"], ((0, C_pad - C), (0, 0))).T.astype(jnp.bfloat16)
    wg_t = jnp.pad(params["w_glob"], ((0, C_pad - C), (0, 0))).T.astype(jnp.bfloat16)
    ga = jnp.asarray(params["gamma_area"], jnp.float32).reshape(HIDDEN, 1)
    ba = jnp.asarray(params["beta_area"], jnp.float32).reshape(HIDDEN, 1)
    gg = jnp.asarray(params["gamma_glob"], jnp.float32).reshape(HIDDEN, 1)
    bg = jnp.asarray(params["beta_glob"], jnp.float32).reshape(HIDDEN, 1)

    kernel = _make_kernel(B, DHW, T, C_pad, H_blk, n_t, resident)
    grid = (hidden_splits, 2, B, n_t)   # (hidden block, phase, batch, dhw tile)

    if resident:
        # Park the x window at block (0,0,0) during phase 1 (no second x read).
        x_index = lambda h, p, b, t: (b * (1 - p), 0, t * (1 - p))
    else:
        x_index = lambda h, p, b, t: (b, 0, t)

    in_specs = [
        pl.BlockSpec((1, C_pad, T), x_index),                       # x
        pl.BlockSpec((H_blk, C_pad), lambda h, p, b, t: (h, 0)),    # w_area^T
        pl.BlockSpec((H_blk, 1), lambda h, p, b, t: (h, 0)),        # gamma3d
        pl.BlockSpec((H_blk, 1), lambda h, p, b, t: (h, 0)),        # beta3d
        pl.BlockSpec((H_blk, C_pad), lambda h, p, b, t: (h, 0)),    # w_glob^T
        pl.BlockSpec((H_blk, 1), lambda h, p, b, t: (h, 0)),        # gamma1d
        pl.BlockSpec((H_blk, 1), lambda h, p, b, t: (h, 0)),        # beta1d
    ]
    out_specs = (
        # Parked during phase 0 at (0, h, 0) == the first block written by
        # phase 1 of this hidden block, so no spurious writeback can clobber
        # already-written data; phase 1 visits every output block exactly once.
        pl.BlockSpec((1, H_blk, T), lambda h, p, b, t: (b * p, h, t * p)),
        pl.BlockSpec((H_blk, B), lambda h, p, b, t: (h, 0)),
    )
    scratch = [
        pltpu.VMEM((H_blk, 1), jnp.float32),    # sum of ReLU(W^T x)
        pltpu.VMEM((H_blk, 1), jnp.float32),    # sum of squares
        pltpu.VMEM((C_pad, B), jnp.float32),    # per-batch channel sums of x
        pltpu.VMEM((H_blk, 1), jnp.float32),    # folded BN scale
        pltpu.VMEM((H_blk, 1), jnp.float32),    # folded BN shift
    ]
    if resident:
        scratch.append(pltpu.VMEM((B * n_t, H_blk, T), jnp.bfloat16))

    if vmem_limit_bytes is None:
        est = (2 * (C_pad * T * 2)                     # x block (double-buffered)
               + 2 * 2 * (H_blk * C_pad * 2)           # resident weight blocks
               + 2 * (H_blk * T * 2)                   # area out block
               + 2 * (H_blk * 128 * 4)                 # glob out block (lane pad)
               + (C_pad * 128 + 5 * H_blk * 128) * 4   # small scratch (lane pad)
               + (act_bytes if resident else 0))
        # Kept <= 48 MiB so the same default is safe on v7x's 64 MiB VMEM.
        vmem_limit_bytes = int(max(32 << 20, min(48 << 20, (est * 5) // 4 + (4 << 20))))

    passes = 1 if resident else 2
    x_bytes = B * C_pad * DHW_pad * 2
    cost = pl.CostEstimate(
        flops=int(passes * 2 * B * DHW_pad * C_pad * HIDDEN
                  + hidden_splits * 2 * B * DHW_pad * C_pad * B
                  + hidden_splits * 2 * C_pad * H_blk * B),
        transcendentals=2 * HIDDEN,
        bytes_accessed=int((hidden_splits if resident else 2 * hidden_splits) * x_bytes
                           + B * HIDDEN * DHW_pad * 2
                           + 2 * HIDDEN * C_pad * 2 + HIDDEN * B * 4),
    )

    area_pad, glob_t = pl.pallas_call(
        kernel,
        out_shape=(
            jax.ShapeDtypeStruct((B, HIDDEN, DHW_pad), jnp.bfloat16),  # area (bf16)
            jax.ShapeDtypeStruct((HIDDEN, B), jnp.float32),            # global^T
        ),
        grid_spec=pltpu.PrefetchScalarGridSpec(
            num_scalar_prefetch=0,
            grid=grid,
            in_specs=in_specs,
            out_specs=out_specs,
            scratch_shapes=scratch,
        ),
        compiler_params=pltpu.CompilerParams(
            # Hidden-block axis is truly parallel (per-channel BN stats), so
            # v7x's two TensorCores each take one block; the reduction axes
            # (phase, batch, spatial tile) stay "arbitrary".
            dimension_semantics=("parallel", "arbitrary", "arbitrary", "arbitrary"),
            vmem_limit_bytes=int(vmem_limit_bytes),
        ),
        cost_estimate=cost,
    )(x, wa_t, ga, ba, wg_t, gg, bg)

    area = area_pad if DHW_pad == DHW else area_pad[:, :, :DHW]
    glob = glob_t.T                      # (B, 512), tiny
    original_features = inputs           # .clone() is a no-op under JAX value semantics
    return original_features, glob, area


def init_params(key, visual_channels):
    """Parameter init mirroring the module's shapes.

    PyTorch BN defaults are gamma=1 / beta=0; small random perturbations are
    used here so the folded-affine path is actually exercised by the test.
    """
    k1, k2, k3, k4, k5, k6 = jax.random.split(key, 6)
    bound = 1.0 / (visual_channels ** 0.5)  # PyTorch Linear default init bound
    w_area = jax.random.uniform(k1, (visual_channels, HIDDEN),
                                jnp.float32, -bound, bound)
    w_glob = jax.random.uniform(k2, (visual_channels, HIDDEN),
                                jnp.float32, -bound, bound)
    return {
        "w_area": w_area,
        "gamma_area": 1.0 + 0.1 * jax.random.normal(k3, (1, HIDDEN), jnp.float32),
        "beta_area": 0.1 * jax.random.normal(k4, (1, HIDDEN), jnp.float32),
        "w_glob": w_glob,
        "gamma_glob": 1.0 + 0.1 * jax.random.normal(k5, (1, HIDDEN), jnp.float32),
        "beta_glob": 0.1 * jax.random.normal(k6, (1, HIDDEN), jnp.float32),
    }


def _reference_forward(inputs, params):
    """Pure-JAX reference with the same bf16-in / f32-accumulate numerics."""
    B, C, D, H, W = inputs.shape
    DHW = D * H * W
    xb = jnp.transpose(inputs, (0, 2, 3, 4, 1)).reshape(B, DHW, C).astype(jnp.bfloat16)
    wa = params["w_area"].astype(jnp.bfloat16)
    wg = params["w_glob"].astype(jnp.bfloat16)

    a = jnp.dot(xb.reshape(B * DHW, C), wa, preferred_element_type=jnp.float32)
    a = jnp.maximum(a, 0.0)
    mean = jnp.mean(a, axis=0, keepdims=True)
    var = jnp.mean((a - mean) ** 2, axis=0, keepdims=True)
    a = (a - mean) * jax.lax.rsqrt(var + BN_EPS) * params["gamma_area"] \
        + params["beta_area"]
    area = jnp.transpose(a.reshape(B, DHW, HIDDEN), (0, 2, 1))

    gi = (jnp.sum(xb.astype(jnp.float32), axis=1) * (1.0 / DHW)).astype(jnp.bfloat16)
    g = jnp.dot(gi, wg, preferred_element_type=jnp.float32)
    g = jnp.maximum(g, 0.0)
    gm = jnp.mean(g, axis=0, keepdims=True)
    gv = jnp.mean((g - gm) ** 2, axis=0, keepdims=True)
    glob = (g - gm) * jax.lax.rsqrt(gv + BN_EPS) * params["gamma_glob"] \
        + params["beta_glob"]
    return glob, area


if __name__ == "__main__":
    key = jax.random.PRNGKey(0)
    kx1, kp1, kx2, kp2 = jax.random.split(key, 4)

    fwd = jax.jit(attention_encoder_forward,
                  static_argnames=("tile_cols", "hidden_splits",
                                   "resident_act_limit_bytes", "vmem_limit_bytes"))
    tol = dict(atol=3e-2, rtol=3e-2)

    # Case 1: module-style shape (B, C, 4, 4, 4); C=192 exercises channel padding.
    B, C, D, H, W = 2, 192, 4, 4, 4
    x = jax.random.normal(kx1, (B, C, D, H, W), jnp.float32)
    params = init_params(kp1, C)

    orig, glob, area = fwd(x, params)                       # resident, 2-way hidden split
    jax.block_until_ready((orig, glob, area))
    _, glob_s, area_s = fwd(x, params, hidden_splits=1,
                            resident_act_limit_bytes=0)     # streaming recompute path
    jax.block_until_ready((glob_s, area_s))

    glob_ref, area_ref = _reference_forward(x, params)

    assert orig.shape == (B, C, D, H, W)
    assert glob.shape == (B, HIDDEN)
    assert area.shape == (B, HIDDEN, D * H * W)

    assert bool(jnp.allclose(area.astype(jnp.float32), area_ref, **tol)), \
        "area_features mismatch (resident path)"
    assert bool(jnp.allclose(glob, glob_ref, **tol)), \
        "global_features mismatch (resident path)"
    assert bool(jnp.allclose(area_s.astype(jnp.float32), area_ref, **tol)), \
        "area_features mismatch (streaming path)"
    assert bool(jnp.allclose(glob_s, glob_ref, **tol)), \
        "global_features mismatch (streaming path)"

    # Case 2: larger spatial extent -> multiple DHW tiles (n_t > 1) in both paths.
    B2, C2, D2, H2, W2 = 2, 96, 4, 8, 8        # DHW = 256
    x2 = jax.random.normal(kx2, (B2, C2, D2, H2, W2), jnp.float32)
    params2 = init_params(kp2, C2)
    _, g2a, a2a = fwd(x2, params2, tile_cols=128)                         # resident
    _, g2b, a2b = fwd(x2, params2, tile_cols=128, hidden_splits=1,
                      resident_act_limit_bytes=0)                         # streaming
    jax.block_until_ready((g2a, a2a, g2b, a2b))
    g2_ref, a2_ref = _reference_forward(x2, params2)

    assert a2a.shape == (B2, HIDDEN, D2 * H2 * W2)
    assert bool(jnp.allclose(a2a.astype(jnp.float32), a2_ref, **tol)), \
        "multi-tile area mismatch (resident path)"
    assert bool(jnp.allclose(g2a, g2_ref, **tol)), \
        "multi-tile global mismatch (resident path)"
    assert bool(jnp.allclose(a2b.astype(jnp.float32), a2_ref, **tol)), \
        "multi-tile area mismatch (streaming path)"
    assert bool(jnp.allclose(g2b, g2_ref, **tol)), \
        "multi-tile global mismatch (streaming path)"

    print("KERNEL_OK")
</pallas_src>

<mosaic_0001>
module attributes {stable_mosaic.version = 11 : i64} {
  func.func @kernel(%arg0: i32, %arg1: i32, %arg2: i32, %arg3: i32, %arg4: memref<1x256x128xbf16, #tpu.memory_space<vmem>>, %arg5: memref<256x256xbf16, #tpu.memory_space<vmem>>, %arg6: memref<256x1xf32, #tpu.memory_space<vmem>>, %arg7: memref<256x1xf32, #tpu.memory_space<vmem>>, %arg8: memref<256x256xbf16, #tpu.memory_space<vmem>>, %arg9: memref<256x1xf32, #tpu.memory_space<vmem>>, %arg10: memref<256x1xf32, #tpu.memory_space<vmem>>, %arg11: memref<1x256x128xbf16, #tpu.memory_space<vmem>>, %arg12: memref<256x2xf32, #tpu.memory_space<vmem>>, %arg13: memref<256x1xf32, #tpu.memory_space<vmem>>, %arg14: memref<256x1xf32, #tpu.memory_space<vmem>>, %arg15: memref<256x2xf32, #tpu.memory_space<vmem>>, %arg16: memref<256x1xf32, #tpu.memory_space<vmem>>, %arg17: memref<256x1xf32, #tpu.memory_space<vmem>>, %arg18: memref<2x256x128xbf16, #tpu.memory_space<vmem>>) attributes {dimension_semantics = [#tpu.dimension_semantics<parallel>, #tpu.dimension_semantics<arbitrary>, #tpu.dimension_semantics<arbitrary>, #tpu.dimension_semantics<arbitrary>], iteration_bounds = array<i64: 2, 2, 2, 1>, scalar_prefetch = 0 : i64, scratch_operands = 6 : i64, tpu.core_type = #tpu.core_type<tc>, window_params = [{transform_indices = @transform_0, window_bounds = array<i64: 1, 256, 128>}, {transform_indices = @transform_1, window_bounds = array<i64: 256, 256>}, {transform_indices = @transform_2, window_bounds = array<i64: 256, 1>}, {transform_indices = @transform_3, window_bounds = array<i64: 256, 1>}, {transform_indices = @transform_4, window_bounds = array<i64: 256, 256>}, {transform_indices = @transform_5, window_bounds = array<i64: 256, 1>}, {transform_indices = @transform_6, window_bounds = array<i64: 256, 1>}, {transform_indices = @transform_7, window_bounds = array<i64: 1, 256, 128>}, {transform_indices = @transform_8, window_bounds = array<i64: 256, 2>}]} {
    %c0_i32 = arith.constant 0 : i32
    %0 = arith.cmpi eq, %arg2, %c0_i32 : i32
    %c0_i32_0 = arith.constant 0 : i32
    %1 = arith.cmpi eq, %arg3, %c0_i32_0 : i32
    %2 = arith.andi %0, %1 : i1
    %c0_i32_1 = arith.constant 0 : i32
    %3 = arith.cmpi eq, %arg1, %c0_i32_1 : i32
    %4 = arith.andi %3, %2 : i1
    %5 = arith.extui %4 : i1 to i32
    %c0_i32_2 = arith.constant 0 : i32
    %6 = arith.cmpi ne, %5, %c0_i32_2 : i32
    scf.if %6 {
      %cst = arith.constant 0.000000e+00 : f32
      %17 = vector.broadcast %cst : f32 to vector<256x1xf32>
      %c0 = arith.constant 0 : index
      %c0_8 = arith.constant 0 : index
      %18 = vector.load %arg13[%c0, %c0_8] : memref<256x1xf32, #tpu.memory_space<vmem>>, vector<256x1xf32>
      tpu.vector_store %arg13[%c0, %c0_8], %17 {strides = array<i32>} : memref<256x1xf32, #tpu.memory_space<vmem>>, vector<256x1xf32>,
      %cst_9 = arith.constant 0.000000e+00 : f32
      %19 = vector.broadcast %cst_9 : f32 to vector<256x1xf32>
      %c0_10 = arith.constant 0 : index
      %c0_11 = arith.constant 0 : index
      %20 = vector.load %arg14[%c0_10, %c0_11] : memref<256x1xf32, #tpu.memory_space<vmem>>, vector<256x1xf32>
      tpu.vector_store %arg14[%c0_10, %c0_11], %19 {strides = array<i32>} : memref<256x1xf32, #tpu.memory_space<vmem>>, vector<256x1xf32>,
      %cst_12 = arith.constant 0.000000e+00 : f32
      %21 = vector.broadcast %cst_12 : f32 to vector<256x2xf32>
      %c0_13 = arith.constant 0 : index
      %c0_14 = arith.constant 0 : index
      %22 = vector.load %arg15[%c0_13, %c0_14] : memref<256x2xf32, #tpu.memory_space<vmem>>, vector<256x2xf32>
      tpu.vector_store %arg15[%c0_13, %c0_14], %21 {strides = array<i32>} : memref<256x2xf32, #tpu.memory_space<vmem>>, vector<256x2xf32>,
    } else {
    }
    %c0_i32_3 = arith.constant 0 : i32
    %7 = arith.cmpi eq, %arg1, %c0_i32_3 : i32
    %8 = arith.extui %7 : i1 to i32
    %c0_i32_4 = arith.constant 0 : i32
    %9 = arith.cmpi ne, %8, %c0_i32_4 : i32
    scf.if %9 {
      %c0 = arith.constant 0 : index
      %c0_8 = arith.constant 0 : index
      %c0_9 = arith.constant 0 : index
      %17 = vector.load %arg4[%c0, %c0_8, %c0_9] : memref<1x256x128xbf16, #tpu.memory_space<vmem>>, vector<1x256x128xbf16>
      %18 = vector.shape_cast %17 : vector<1x256x128xbf16> to vector<256x128xbf16>
      %c0_10 = arith.constant 0 : index
      %c0_11 = arith.constant 0 : index
      %19 = vector.load %arg5[%c0_10, %c0_11] : memref<256x256xbf16, #tpu.memory_space<vmem>>, vector<256x256xbf16>
      %cst = arith.constant dense<0.000000e+00> : vector<256x128xf32>
      %20 = tpu.matmul %19, %18, %cst {dimension_numbers = #tpu.dot_dimension_numbers<[1], [0], [0], [1], [0, 0, 1, 1], [], []>} : vector<256x256xbf16>, vector<256x128xbf16>, vector<256x128xf32> -> vector<256x128xf32>
      %cst_12 = arith.constant 0.000000e+00 : f32
      %21 = vector.broadcast %cst_12 : f32 to vector<256x128xf32>
      %22 = arith.maximumf %20, %21 : vector<256x128xf32>
      %c0_13 = arith.constant 0 : index
      %c0_14 = arith.constant 0 : index
      %23 = vector.load %arg13[%c0_13, %c0_14] : memref<256x1xf32, #tpu.memory_space<vmem>>, vector<256x1xf32>
      %cst_15 = arith.constant dense<0.000000e+00> : vector<256xf32>
      %24 = vector.multi_reduction <add>, %22, %cst_15 [1] : vector<256x128xf32> to vector<256xf32>
      %25 = vector.shape_cast %24 : vector<256xf32> to vector<256x1xf32>
      %26 = arith.addf %23, %25 : vector<256x1xf32>
      %c0_16 = arith.constant 0 : index
      %c0_17 = arith.constant 0 : index
      %27 = vector.load %arg13[%c0_16, %c0_17] : memref<256x1xf32, #tpu.memory_space<vmem>>, vector<256x1xf32>
      tpu.vector_store %arg13[%c0_16, %c0_17], %26 {strides = array<i32>} : memref<256x1xf32, #tpu.memory_space<vmem>>, vector<256x1xf32>,
      %c0_18 = arith.constant 0 : index
      %c0_19 = arith.constant 0 : index
      %28 = vector.load %arg14[%c0_18, %c0_19] : memref<256x1xf32, #tpu.memory_space<vmem>>, vector<256x1xf32>
      %29 = arith.mulf %22, %22 : vector<256x128xf32>
      %cst_20 = arith.constant dense<0.000000e+00> : vector<256xf32>
      %30 = vector.multi_reduction <add>, %29, %cst_20 [1] : vector<256x128xf32> to vector<256xf32>
      %31 = vector.shape_cast %30 : vector<256xf32> to vector<256x1xf32>
      %32 = arith.addf %28, %31 : vector<256x1xf32>
      %c0_21 = arith.constant 0 : index
      %c0_22 = arith.constant 0 : index
      %33 = vector.load %arg14[%c0_21, %c0_22] : memref<256x1xf32, #tpu.memory_space<vmem>>, vector<256x1xf32>
      tpu.vector_store %arg14[%c0_21, %c0_22], %32 {strides = array<i32>} : memref<256x1xf32, #tpu.memory_space<vmem>>, vector<256x1xf32>,
      %34 = tpu.iota {dimensions = array<i32: 1>} : vector<128x2xi32>
      %35 = vector.broadcast %arg2 : i32 to vector<128x2xi32>
      %36 = arith.cmpi eq, %34, %35 : vector<128x2xi32>
      %37 = arith.extui %36 : vector<128x2xi1> to vector<128x2xi32>
      %38 = arith.sitofp %37 : vector<128x2xi32> to vector<128x2xf32>
      %39 = arith.truncf %38 : vector<128x2xf32> to vector<128x2xbf16>
      %c0_23 = arith.constant 0 : index
      %c0_24 = arith.constant 0 : index
      %40 = vector.load %arg15[%c0_23, %c0_24] : memref<256x2xf32, #tpu.memory_space<vmem>>, vector<256x2xf32>
      %cst_25 = arith.constant dense<0.000000e+00> : vector<256x2xf32>
      %41 = tpu.matmul %18, %39, %cst_25 {dimension_numbers = #tpu.dot_dimension_numbers<[1], [0], [0], [1], [0, 0, 1, 1], [], []>} : vector<256x128xbf16>, vector<128x2xbf16>, vector<256x2xf32> -> vector<256x2xf32>
      %42 = arith.addf %40, %41 : vector<256x2xf32>
      %c0_26 = arith.constant 0 : index
      %c0_27 = arith.constant 0 : index
      %43 = vector.load %arg15[%c0_26, %c0_27] : memref<256x2xf32, #tpu.memory_space<vmem>>, vector<256x2xf32>
      tpu.vector_store %arg15[%c0_26, %c0_27], %42 {strides = array<i32>} : memref<256x2xf32, #tpu.memory_space<vmem>>, vector<256x2xf32>,
      %44 = arith.truncf %22 : vector<256x128xf32> to vector<256x128xbf16>
      %c1_i32_28 = arith.constant 1 : i32
      %45 = arith.muli %arg2, %c1_i32_28 : i32
      %46 = arith.addi %45, %arg3 : i32
      %47 = arith.index_cast %46 : i32 to index
      %c0_29 = arith.constant 0 : index
      %c0_30 = arith.constant 0 : index
      %48 = vector.load %arg18[%47, %c0_29, %c0_30] : memref<2x256x128xbf16, #tpu.memory_space<vmem>>, vector<1x256x128xbf16>
      %49 = vector.shape_cast %48 : vector<1x256x128xbf16> to vector<256x128xbf16>
      %50 = vector.shape_cast %44 : vector<256x128xbf16> to vector<1x256x128xbf16>
      tpu.vector_store %arg18[%47, %c0_29, %c0_30], %50 {strides = array<i32>} : memref<2x256x128xbf16, #tpu.memory_space<vmem>>, vector<1x256x128xbf16>,
    } else {
    }
    %c1_i32 = arith.constant 1 : i32
    %10 = arith.cmpi eq, %arg1, %c1_i32 : i32
    %11 = arith.andi %10, %2 : i1
    %12 = arith.extui %11 : i1 to i32
    %c0_i32_5 = arith.constant 0 : i32
    %13 = arith.cmpi ne, %12, %c0_i32_5 : i32
    scf.if %13 {
      %c0 = arith.constant 0 : index
      %c0_8 = arith.constant 0 : index
      %17 = vector.load %arg13[%c0, %c0_8] : memref<256x1xf32, #tpu.memory_space<vmem>>, vector<256x1xf32>
      %cst = arith.constant 7.812500e-03 : f32
      %18 = vector.broadcast %cst : f32 to vector<256x1xf32>
      %19 = arith.mulf %17, %18 : vector<256x1xf32>
      %c0_9 = arith.constant 0 : index
      %c0_10 = arith.constant 0 : index
      %20 = vector.load %arg14[%c0_9, %c0_10] : memref<256x1xf32, #tpu.memory_space<vmem>>, vector<256x1xf32>
      %cst_11 = arith.constant 7.812500e-03 : f32
      %21 = vector.broadcast %cst_11 : f32 to vector<256x1xf32>
      %22 = arith.mulf %20, %21 : vector<256x1xf32>
      %23 = arith.mulf %19, %19 : vector<256x1xf32>
      %24 = arith.subf %22, %23 : vector<256x1xf32>
      %cst_12 = arith.constant 0.000000e+00 : f32
      %25 = vector.broadcast %cst_12 : f32 to vector<256x1xf32>
      %26 = arith.maximumf %24, %25 : vector<256x1xf32>
      %c0_13 = arith.constant 0 : index
      %c0_14 = arith.constant 0 : index
      %27 = vector.load %arg6[%c0_13, %c0_14] : memref<256x1xf32, #tpu.memory_space<vmem>>, vector<256x1xf32>
      %cst_15 = arith.constant 9.99999974E-6 : f32
      %28 = vector.broadcast %cst_15 : f32 to vector<256x1xf32>
      %29 = arith.addf %26, %28 : vector<256x1xf32>
      %30 = math.rsqrt %29 : vector<256x1xf32>
      %31 = arith.mulf %27, %30 : vector<256x1xf32>
      %c0_16 = arith.constant 0 : index
      %c0_17 = arith.constant 0 : index
      %32 = vector.load %arg16[%c0_16, %c0_17] : memref<256x1xf32, #tpu.memory_space<vmem>>, vector<256x1xf32>
      tpu.vector_store %arg16[%c0_16, %c0_17], %31 {strides = array<i32>} : memref<256x1xf32, #tpu.memory_space<vmem>>, vector<256x1xf32>,
      %c0_18 = arith.constant 0 : index
      %c0_19 = arith.constant 0 : index
      %33 = vector.load %arg7[%c0_18, %c0_19] : memref<256x1xf32, #tpu.memory_space<vmem>>, vector<256x1xf32>
      %34 = arith.mulf %19, %31 : vector<256x1xf32>
      %35 = arith.subf %33, %34 : vector<256x1xf32>
      %c0_20 = arith.constant 0 : index
      %c0_21 = arith.constant 0 : index
      %36 = vector.load %arg17[%c0_20, %c0_21] : memref<256x1xf32, #tpu.memory_space<vmem>>, vector<256x1xf32>
      tpu.vector_store %arg17[%c0_20, %c0_21], %35 {strides = array<i32>} : memref<256x1xf32, #tpu.memory_space<vmem>>, vector<256x1xf32>,
      %c0_22 = arith.constant 0 : index
      %c0_23 = arith.constant 0 : index
      %37 = vector.load %arg15[%c0_22, %c0_23] : memref<256x2xf32, #tpu.memory_space<vmem>>, vector<256x2xf32>
      %cst_24 = arith.constant 1.562500e-02 : f32
      %38 = vector.broadcast %cst_24 : f32 to vector<256x2xf32>
      %39 = arith.mulf %37, %38 : vector<256x2xf32>
      %40 = arith.truncf %39 : vector<256x2xf32> to vector<256x2xbf16>
      %c0_25 = arith.constant 0 : index
      %c0_26 = arith.constant 0 : index
      %41 = vector.load %arg8[%c0_25, %c0_26] : memref<256x256xbf16, #tpu.memory_space<vmem>>, vector<256x256xbf16>
      %cst_27 = arith.constant dense<0.000000e+00> : vector<256x2xf32>
      %42 = tpu.matmul %41, %40, %cst_27 {dimension_numbers = #tpu.dot_dimension_numbers<[1], [0], [0], [1], [0, 0, 1, 1], [], []>} : vector<256x256xbf16>, vector<256x2xbf16>, vector<256x2xf32> -> vector<256x2xf32>
      %cst_28 = arith.constant 0.000000e+00 : f32
      %43 = vector.broadcast %cst_28 : f32 to vector<256x2xf32>
      %44 = arith.maximumf %42, %43 : vector<256x2xf32>
      %cst_29 = arith.constant dense<0.000000e+00> : vector<256xf32>
      %45 = vector.multi_reduction <add>, %44, %cst_29 [1] : vector<256x2xf32> to vector<256xf32>
      %46 = vector.shape_cast %45 : vector<256xf32> to vector<256x1xf32>
      %cst_30 = arith.constant 5.000000e-01 : f32
      %47 = vector.broadcast %cst_30 : f32 to vector<256x1xf32>
      %48 = arith.mulf %46, %47 : vector<256x1xf32>
      %49 = vector.broadcast %48 : vector<256x1xf32> to vector<256x2xf32>
      %50 = arith.subf %44, %49 : vector<256x2xf32>
      %51 = arith.mulf %50, %50 : vector<256x2xf32>
      %cst_31 = arith.constant dense<0.000000e+00> : vector<256xf32>
      %52 = vector.multi_reduction <add>, %51, %cst_31 [1] : vector<256x2xf32> to vector<256xf32>
      %53 = vector.shape_cast %52 : vector<256xf32> to vector<256x1xf32>
      %cst_32 = arith.constant 5.000000e-01 : f32
      %54 = vector.broadcast %cst_32 : f32 to vector<256x1xf32>
      %55 = arith.mulf %53, %54 : vector<256x1xf32>
      %cst_33 = arith.constant 0.000000e+00 : f32
      %56 = vector.broadcast %cst_33 : f32 to vector<256x1xf32>
      %57 = arith.maximumf %55, %56 : vector<256x1xf32>
      %c0_34 = arith.constant 0 : index
      %c0_35 = arith.constant 0 : index
      %58 = vector.load %arg9[%c0_34, %c0_35] : memref<256x1xf32, #tpu.memory_space<vmem>>, vector<256x1xf32>
      %cst_36 = arith.constant 9.99999974E-6 : f32
      %59 = vector.broadcast %cst_36 : f32 to vector<256x1xf32>
      %60 = arith.addf %57, %59 : vector<256x1xf32>
      %61 = math.rsqrt %60 : vector<256x1xf32>
      %62 = arith.mulf %58, %61 : vector<256x1xf32>
      %63 = vector.broadcast %62 : vector<256x1xf32> to vector<256x2xf32>
      %64 = arith.mulf %44, %63 : vector<256x2xf32>
      %c0_37 = arith.constant 0 : index
      %c0_38 = arith.constant 0 : index
      %65 = vector.load %arg10[%c0_37, %c0_38] : memref<256x1xf32, #tpu.memory_space<vmem>>, vector<256x1xf32>
      %66 = arith.mulf %48, %62 : vector<256x1xf32>
      %67 = arith.subf %65, %66 : vector<256x1xf32>
      %68 = vector.broadcast %67 : vector<256x1xf32> to vector<256x2xf32>
      %69 = arith.addf %64, %68 : vector<256x2xf32>
      %c0_39 = arith.constant 0 : index
      %c0_40 = arith.constant 0 : index
      %70 = vector.load %arg12[%c0_39, %c0_40] : memref<256x2xf32, #tpu.memory_space<vmem>>, vector<256x2xf32>
      tpu.vector_store %arg12[%c0_39, %c0_40], %69 {strides = array<i32>} : memref<256x2xf32, #tpu.memory_space<vmem>>, vector<256x2xf32>,
    } else {
    }
    %c1_i32_6 = arith.constant 1 : i32
    %14 = arith.cmpi eq, %arg1, %c1_i32_6 : i32
    %15 = arith.extui %14 : i1 to i32
    %c0_i32_7 = arith.constant 0 : i32
    %16 = arith.cmpi ne, %15, %c0_i32_7 : i32
    scf.if %16 {
      %c1_i32_8 = arith.constant 1 : i32
      %17 = arith.muli %arg2, %c1_i32_8 : i32
      %18 = arith.addi %17, %arg3 : i32
      %19 = arith.index_cast %18 : i32 to index
      %c0 = arith.constant 0 : index
      %c0_9 = arith.constant 0 : index
      %20 = vector.load %arg18[%19, %c0, %c0_9] : memref<2x256x128xbf16, #tpu.memory_space<vmem>>, vector<1x256x128xbf16>
      %21 = vector.shape_cast %20 : vector<1x256x128xbf16> to vector<256x128xbf16>
      %22 = arith.extf %21 : vector<256x128xbf16> to vector<256x128xf32>
      %c0_10 = arith.constant 0 : index
      %c0_11 = arith.constant 0 : index
      %23 = vector.load %arg16[%c0_10, %c0_11] : memref<256x1xf32, #tpu.memory_space<vmem>>, vector<256x1xf32>
      %24 = vector.broadcast %23 : vector<256x1xf32> to vector<256x128xf32>
      %25 = arith.mulf %22, %24 : vector<256x128xf32>
      %c0_12 = arith.constant 0 : index
      %c0_13 = arith.constant 0 : index
      %26 = vector.load %arg17[%c0_12, %c0_13] : memref<256x1xf32, #tpu.memory_space<vmem>>, vector<256x1xf32>
      %27 = vector.broadcast %26 : vector<256x1xf32> to vector<256x128xf32>
      %28 = arith.addf %25, %27 : vector<256x128xf32>
      %29 = arith.truncf %28 : vector<256x128xf32> to vector<256x128xbf16>
      %c0_14 = arith.constant 0 : index
      %c0_15 = arith.constant 0 : index
      %c0_16 = arith.constant 0 : index
      %30 = vector.load %arg11[%c0_14, %c0_15, %c0_16] : memref<1x256x128xbf16, #tpu.memory_space<vmem>>, vector<1x256x128xbf16>
      %31 = vector.shape_cast %30 : vector<1x256x128xbf16> to vector<256x128xbf16>
      %32 = vector.shape_cast %29 : vector<256x128xbf16> to vector<1x256x128xbf16>
      tpu.vector_store %arg11[%c0_14, %c0_15, %c0_16], %32 {strides = array<i32>} : memref<1x256x128xbf16, #tpu.memory_space<vmem>>, vector<1x256x128xbf16>,
    } else {
    }
    return
  }
  func.func @transform_0(%arg0: i32, %arg1: i32, %arg2: i32, %arg3: i32) -> (i32, i32, i32) {
    %c1_i32 = arith.constant 1 : i32
    %0 = arith.subi %c1_i32, %arg1 : i32
    %1 = arith.muli %arg2, %0 : i32
    %c1_i32_0 = arith.constant 1 : i32
    %2 = arith.subi %c1_i32_0, %arg1 : i32
    %3 = arith.muli %arg3, %2 : i32
    %c0_i32 = arith.constant 0 : i32
    %c0_i32_1 = arith.constant 0 : i32
    return %1, %c0_i32, %3 : i32, i32, i32
  }
  func.func @transform_1(%arg0: i32, %arg1: i32, %arg2: i32, %arg3: i32) -> (i32, i32) {
    %c0_i32 = arith.constant 0 : i32
    %c0_i32_0 = arith.constant 0 : i32
    return %arg0, %c0_i32 : i32, i32
  }
  func.func @transform_2(%arg0: i32, %arg1: i32, %arg2: i32, %arg3: i32) -> (i32, i32) {
    %c0_i32 = arith.constant 0 : i32
    %c0_i32_0 = arith.constant 0 : i32
    return %arg0, %c0_i32 : i32, i32
  }
  func.func @transform_3(%arg0: i32, %arg1: i32, %arg2: i32, %arg3: i32) -> (i32, i32) {
    %c0_i32 = arith.constant 0 : i32
    %c0_i32_0 = arith.constant 0 : i32
    return %arg0, %c0_i32 : i32, i32
  }
  func.func @transform_4(%arg0: i32, %arg1: i32, %arg2: i32, %arg3: i32) -> (i32, i32) {
    %c0_i32 = arith.constant 0 : i32
    %c0_i32_0 = arith.constant 0 : i32
    return %arg0, %c0_i32 : i32, i32
  }
  func.func @transform_5(%arg0: i32, %arg1: i32, %arg2: i32, %arg3: i32) -> (i32, i32) {
    %c0_i32 = arith.constant 0 : i32
    %c0_i32_0 = arith.constant 0 : i32
    return %arg0, %c0_i32 : i32, i32
  }
  func.func @transform_6(%arg0: i32, %arg1: i32, %arg2: i32, %arg3: i32) -> (i32, i32) {
    %c0_i32 = arith.constant 0 : i32
    %c0_i32_0 = arith.constant 0 : i32
    return %arg0, %c0_i32 : i32, i32
  }
  func.func @transform_7(%arg0: i32, %arg1: i32, %arg2: i32, %arg3: i32) -> (i32, i32, i32) {
    %0 = arith.muli %arg2, %arg1 : i32
    %1 = arith.muli %arg3, %arg1 : i32
    %c0_i32 = arith.constant 0 : i32
    return %0, %arg0, %1 : i32, i32, i32
  }
  func.func @transform_8(%arg0: i32, %arg1: i32, %arg2: i32, %arg3: i32) -> (i32, i32) {
    %c0_i32 = arith.constant 0 : i32
    %c0_i32_0 = arith.constant 0 : i32
    return %arg0, %c0_i32 : i32, i32
  }
}

</mosaic_0001>

<llo_original>
// kernel: attention_encoder_forward.1
$region0: #{attention_encoder_forward.1}
  #allocation0 [shape = 'u32[]', space=smem, size = 0x4, offset = 0x4, fixed_abs, tag = 'smem constant byte address 0x4 - core index']
  #allocation1 [shape = 'u32[144,128]{1,0:T(1,128)}', space=vmem, size = 0x12000, scoped, tag = 'internal scratch']
  #allocation2 [shape = 'f32[256,1]{1,0:T(8,128)}', space=vmem, size = 0x20000, scoped, tag = 'scratch operand']
  #allocation3 [shape = 'f32[256,1]{1,0:T(8,128)}', space=vmem, size = 0x20000, scoped, tag = 'scratch operand']
  #allocation4 [shape = 'f32[256,2]{1,0:T(8,128)}', space=vmem, size = 0x20000, scoped, tag = 'scratch operand']
  #allocation5 [shape = 'f32[256,1]{1,0:T(8,128)}', space=vmem, size = 0x20000, scoped, tag = 'scratch operand']
  #allocation6 [shape = 'f32[256,1]{1,0:T(8,128)}', space=vmem, size = 0x20000, scoped, tag = 'scratch operand']
  #allocation7 [shape = 'bf16[2,256,128]{2,1,0:T(8,128)(2,1)}', space=vmem, size = 0x20000, scoped, tag = 'scratch operand']
  %s0 = inlined_call_operand.vmem [shape: bf16[2,256,128], index: 0, kind: input, shape index: {}]
  %s1 = inlined_call_operand.vmem [shape: bf16[512,256], index: 1, kind: input, shape index: {}]
  %s2 = inlined_call_operand.vmem [shape: f32[512,1], index: 2, kind: input, shape index: {}]
  %s3 = inlined_call_operand.vmem [shape: f32[512,1], index: 3, kind: input, shape index: {}]
  %s4 = inlined_call_operand.vmem [shape: bf16[512,256], index: 4, kind: input, shape index: {}]
  %s5 = inlined_call_operand.vmem [shape: f32[512,1], index: 5, kind: input, shape index: {}]
  %s6 = inlined_call_operand.vmem [shape: f32[512,1], index: 6, kind: input, shape index: {}]
  %s7 = inlined_call_operand.vmem [shape: bf16[2,512,128], index: 7, kind: output, shape index: {0}]
  %s8 = inlined_call_operand.vmem [shape: f32[512,2], index: 8, kind: output, shape index: {1}]
  %9 = xla_tuple %s7, %s8
  %s10 = sld [smem:[#allocation0]]
  $region85: #{attention_encoder_forward.1} parent=0
    _
  %s12 = ssub.s32 1, %s10
  %s13 = scalar_select 0, %s12, %s10
  loop: start=0, step=1, limit=10
  $region2: #{attention_encoder_forward.1} parent=0 // loop_pre_header
    _
  $region3: #{attention_encoder_forward.1} parent=0 // loop_header
    %s15 = sphi 0, %s19
    %p16 = scmp.ge.s32.totalorder %s15, 10
    %s22 = sphi 0, %s48
    %s23 = sphi 0, %s44
    %s24 = sphi 0, %s40
    %s25 = sphi 0, %s36
    %s26 = sphi 0, %s22
    %s27 = sphi 0, %s23
    %s28 = sphi 0, %s24
    %s29 = sphi 0, %s25
    %s30 = sphi 0, %s26
    %s31 = sphi 0, %s27
    %s32 = sphi 0, %s28
    %s33 = sphi 0, %s29
    %s59 = sphi 0, %s61
    %s62 = sphi 0, %s59
    %s63 = sphi 0, %s62
    %s79 = sphi 0, %s63
    %s85 = sphi 0, %s87
    %s88 = sphi 0, %s85
    %s89 = sphi 0, %s88
    %s105 = sphi 0, %s89
    %s111 = sphi 0, %s113
    %s114 = sphi 0, %s111
    %s115 = sphi 0, %s114
    %s131 = sphi 0, %s115
    %s137 = sphi 0, %s139
    %s140 = sphi 0, %s137
    %s141 = sphi 0, %s140
    %s157 = sphi 0, %s141
    %s163 = sphi 0, %s165
    %s166 = sphi 0, %s163
    %s167 = sphi 0, %s166
    %s183 = sphi 0, %s167
    %s189 = sphi 0, %s191
    %s192 = sphi 0, %s189
    %s193 = sphi 0, %s192
    %s209 = sphi 0, %s193
    %s215 = sphi 0, %s217
    %s218 = sphi 0, %s215
    %s219 = sphi 0, %s218
    %s235 = sphi 0, %s219
    %s249 = sphi 0, %s251
    %s252 = sphi 0, %s249
    %s253 = sphi 0, %s252
    %s269 = sphi 0, %s253
    %s275 = sphi 0, %s277
    %s278 = sphi 0, %s275
    %s279 = sphi 0, %s278
    %s295 = sphi 0, %s279
  $region4: #{attention_encoder_forward.1} parent=0 // loop_header_branch
    %18 = sbr.rel (%p16) target = $region8
  $region5: #{attention_encoder_forward.1} parent=0 // loop_body
    %s20 = ssub.s32 %s15, 1
    %s21 = ssub.s32 %s15, 2
    %s34 = sadd.s32 1, %s25
    %p35 = scmp.ge.s32.totalorder %s34, 1
    %s36 = scalar_select %p35, 0, %s34
    %s37 = sadd.s32 1, %s24
    %s38 = scalar_select %p35, %s37, %s24
    %p39 = scmp.ge.s32.totalorder %s38, 2
    %s40 = scalar_select %p39, 0, %s38
    %s41 = sadd.s32 1, %s23
    %s42 = scalar_select %p39, %s41, %s23
    %p43 = scmp.ge.s32.totalorder %s42, 2
    %s44 = scalar_select %p43, 0, %s42
    %s45 = sadd.s32 1, %s22
    %s46 = scalar_select %p43, %s45, %s22
    %p47 = scmp.ge.s32.totalorder %s46, 2
    %s48 = scalar_select %p47, 0, %s46
    %s49 = ssub.s32 1, %s23
    %s50 = smul.u32 %s24, %s49
    %s51 = smul.u32 %s25, %s49
    %s52 = ssub.s32 1, %s44
    %s53 = smul.u32 %s40, %s52
    %s54 = smul.u32 %s36, %s52
    %s55 = ssub.s32 %s50, %s53
    %s56 = ssub.s32 %s51, %s54
    %s57 = sor.u32 %s55, %s56
    %p58 = scmp.eq.s32.totalorder %s57, 0
    %s60 = sadd.s32 %s59, 1
    %s61 = scalar_select %p58, %s59, %s60
    %p64 = pneg %p58
    %p65 = scmp.eq.s32.totalorder %s15, 7
    %p66 = por %p64, %p65
    %p67 = scmp.ne.s32.totalorder %s59, %s62
    %p68 = scmp.eq.s32.totalorder %s15, 0
    %p69 = por %p67, %p68
    %p70 = scmp.ne.s32.totalorder %s59, %s62
    %p71 = scmp.eq.s32.totalorder %s20, 7
    %p72 = por %p70, %p71
    %p73 = scmp.ne.s32.totalorder %s62, %s63
    %p74 = scmp.eq.s32.totalorder %s20, 0
    %p75 = por %p73, %p74
    %p76 = scmp.ne.s32.totalorder %s62, %s63
    %p77 = scmp.eq.s32.totalorder %s21, 7
    %p78 = por %p76, %p77
    %p80 = scmp.ne.s32.totalorder %s63, %s79
    %p81 = scmp.eq.s32.totalorder %s21, 0
    %p82 = por %p80, %p81
    %s83 = ssub.s32 %s22, %s48
    %p84 = scmp.eq.s32.totalorder %s83, 0
    %s86 = sadd.s32 %s85, 1
    %s87 = scalar_select %p84, %s85, %s86
    %p90 = pneg %p84
    %p91 = scmp.eq.s32.totalorder %s15, 7
    %p92 = por %p90, %p91
    %p93 = scmp.ne.s32.totalorder %s85, %s88
    %p94 = scmp.eq.s32.totalorder %s15, 0
    %p95 = por %p93, %p94
    %p96 = scmp.ne.s32.totalorder %s85, %s88
    %p97 = scmp.eq.s32.totalorder %s20, 7
    %p98 = por %p96, %p97
    %p99 = scmp.ne.s32.totalorder %s88, %s89
    %p100 = scmp.eq.s32.totalorder %s20, 0
    %p101 = por %p99, %p100
    %p102 = scmp.ne.s32.totalorder %s88, %s89
    %p103 = scmp.eq.s32.totalorder %s21, 7
    %p104 = por %p102, %p103
    %p106 = scmp.ne.s32.totalorder %s89, %s105
    %p107 = scmp.eq.s32.totalorder %s21, 0
    %p108 = por %p106, %p107
    %s109 = ssub.s32 %s22, %s48
    %p110 = scmp.eq.s32.totalorder %s109, 0
    %s112 = sadd.s32 %s111, 1
    %s113 = scalar_select %p110, %s111, %s112
    %p116 = pneg %p110
    %p117 = scmp.eq.s32.totalorder %s15, 7
    %p118 = por %p116, %p117
    %p119 = scmp.ne.s32.totalorder %s111, %s114
    %p120 = scmp.eq.s32.totalorder %s15, 0
    %p121 = por %p119, %p120
    %p122 = scmp.ne.s32.totalorder %s111, %s114
    %p123 = scmp.eq.s32.totalorder %s20, 7
    %p124 = por %p122, %p123
    %p125 = scmp.ne.s32.totalorder %s114, %s115
    %p126 = scmp.eq.s32.totalorder %s20, 0
    %p127 = por %p125, %p126
    %p128 = scmp.ne.s32.totalorder %s114, %s115
    %p129 = scmp.eq.s32.totalorder %s21, 7
    %p130 = por %p128, %p129
    %p132 = scmp.ne.s32.totalorder %s115, %s131
    %p133 = scmp.eq.s32.totalorder %s21, 0
    %p134 = por %p132, %p133
    %s135 = ssub.s32 %s22, %s48
    %p136 = scmp.eq.s32.totalorder %s135, 0
    %s138 = sadd.s32 %s137, 1
    %s139 = scalar_select %p136, %s137, %s138
    %p142 = pneg %p136
    %p143 = scmp.eq.s32.totalorder %s15, 7
    %p144 = por %p142, %p143
    %p145 = scmp.ne.s32.totalorder %s137, %s140
    %p146 = scmp.eq.s32.totalorder %s15, 0
    %p147 = por %p145, %p146
    %p148 = scmp.ne.s32.totalorder %s137, %s140
    %p149 = scmp.eq.s32.totalorder %s20, 7
    %p150 = por %p148, %p149
    %p151 = scmp.ne.s32.totalorder %s140, %s141
    %p152 = scmp.eq.s32.totalorder %s20, 0
    %p153 = por %p151, %p152
    %p154 = scmp.ne.s32.totalorder %s140, %s141
    %p155 = scmp.eq.s32.totalorder %s21, 7
    %p156 = por %p154, %p155
    %p158 = scmp.ne.s32.totalorder %s141, %s157
    %p159 = scmp.eq.s32.totalorder %s21, 0
    %p160 = por %p158, %p159
    %s161 = ssub.s32 %s22, %s48
    %p162 = scmp.eq.s32.totalorder %s161, 0
    %s164 = sadd.s32 %s163, 1
    %s165 = scalar_select %p162, %s163, %s164
    %p168 = pneg %p162
    %p169 = scmp.eq.s32.totalorder %s15, 7
    %p170 = por %p168, %p169
    %p171 = scmp.ne.s32.totalorder %s163, %s166
    %p172 = scmp.eq.s32.totalorder %s15, 0
    %p173 = por %p171, %p172
    %p174 = scmp.ne.s32.totalorder %s163, %s166
    %p175 = scmp.eq.s32.totalorder %s20, 7
    %p176 = por %p174, %p175
    %p177 = scmp.ne.s32.totalorder %s166, %s167
    %p178 = scmp.eq.s32.totalorder %s20, 0
    %p179 = por %p177, %p178
    %p180 = scmp.ne.s32.totalorder %s166, %s167
    %p181 = scmp.eq.s32.totalorder %s21, 7
    %p182 = por %p180, %p181
    %p184 = scmp.ne.s32.totalorder %s167, %s183
    %p185 = scmp.eq.s32.totalorder %s21, 0
    %p186 = por %p184, %p185
    %s187 = ssub.s32 %s22, %s48
    %p188 = scmp.eq.s32.totalorder %s187, 0
    %s190 = sadd.s32 %s189, 1
    %s191 = scalar_select %p188, %s189, %s190
    %p194 = pneg %p188
    %p195 = scmp.eq.s32.totalorder %s15, 7
    %p196 = por %p194, %p195
    %p197 = scmp.ne.s32.totalorder %s189, %s192
    %p198 = scmp.eq.s32.totalorder %s15, 0
    %p199 = por %p197, %p198
    %p200 = scmp.ne.s32.totalorder %s189, %s192
    %p201 = scmp.eq.s32.totalorder %s20, 7
    %p202 = por %p200, %p201
    %p203 = scmp.ne.s32.totalorder %s192, %s193
    %p204 = scmp.eq.s32.totalorder %s20, 0
    %p205 = por %p203, %p204
    %p206 = scmp.ne.s32.totalorder %s192, %s193
    %p207 = scmp.eq.s32.totalorder %s21, 7
    %p208 = por %p206, %p207
    %p210 = scmp.ne.s32.totalorder %s193, %s209
    %p211 = scmp.eq.s32.totalorder %s21, 0
    %p212 = por %p210, %p211
    %s213 = ssub.s32 %s22, %s48
    %p214 = scmp.eq.s32.totalorder %s213, 0
    %s216 = sadd.s32 %s215, 1
    %s217 = scalar_select %p214, %s215, %s216
    %p220 = pneg %p214
    %p221 = scmp.eq.s32.totalorder %s15, 7
    %p222 = por %p220, %p221
    %p223 = scmp.ne.s32.totalorder %s215, %s218
    %p224 = scmp.eq.s32.totalorder %s15, 0
    %p225 = por %p223, %p224
    %p226 = scmp.ne.s32.totalorder %s215, %s218
    %p227 = scmp.eq.s32.totalorder %s20, 7
    %p228 = por %p226, %p227
    %p229 = scmp.ne.s32.totalorder %s218, %s219
    %p230 = scmp.eq.s32.totalorder %s20, 0
    %p231 = por %p229, %p230
    %p232 = scmp.ne.s32.totalorder %s218, %s219
    %p233 = scmp.eq.s32.totalorder %s21, 7
    %p234 = por %p232, %p233
    %p236 = scmp.ne.s32.totalorder %s219, %s235
    %p237 = scmp.eq.s32.totalorder %s21, 0
    %p238 = por %p236, %p237
    %s239 = smul.u32 %s24, %s23
    %s240 = smul.u32 %s25, %s23
    %s241 = smul.u32 %s40, %s44
    %s242 = smul.u32 %s36, %s44
    %s243 = ssub.s32 %s239, %s241
    %s244 = ssub.s32 %s22, %s48
    %s245 = sor.u32 %s243, %s244
    %s246 = ssub.s32 %s240, %s242
    %s247 = sor.u32 %s245, %s246
    %p248 = scmp.eq.s32.totalorder %s247, 0
    %s250 = sadd.s32 %s249, 1
    %s251 = scalar_select %p248, %s249, %s250
    %p254 = pneg %p248
    %p255 = scmp.eq.s32.totalorder %s15, 7
    %p256 = por %p254, %p255
    %p257 = scmp.ne.s32.totalorder %s249, %s252
    %p258 = scmp.eq.s32.totalorder %s15, 0
    %p259 = por %p257, %p258
    %p260 = scmp.ne.s32.totalorder %s249, %s252
    %p261 = scmp.eq.s32.totalorder %s20, 7
    %p262 = por %p260, %p261
    %p263 = scmp.ne.s32.totalorder %s252, %s253
    %p264 = scmp.eq.s32.totalorder %s20, 0
    %p265 = por %p263, %p264
    %p266 = scmp.ne.s32.totalorder %s252, %s253
    %p267 = scmp.eq.s32.totalorder %s21, 7
    %p268 = por %p266, %p267
    %p270 = scmp.ne.s32.totalorder %s253, %s269
    %p271 = scmp.eq.s32.totalorder %s21, 0
    %p272 = por %p270, %p271
    %s273 = ssub.s32 %s22, %s48
    %p274 = scmp.eq.s32.totalorder %s273, 0
    %s276 = sadd.s32 %s275, 1
    %s277 = scalar_select %p274, %s275, %s276
    %p280 = pneg %p274
    %p281 = scmp.eq.s32.totalorder %s15, 7
    %p282 = por %p280, %p281
    %p283 = scmp.ne.s32.totalorder %s275, %s278
    %p284 = scmp.eq.s32.totalorder %s15, 0
    %p285 = por %p283, %p284
    %p286 = scmp.ne.s32.totalorder %s275, %s278
    %p287 = scmp.eq.s32.totalorder %s20, 7
    %p288 = por %p286, %p287
    %p289 = scmp.ne.s32.totalorder %s278, %s279
    %p290 = scmp.eq.s32.totalorder %s20, 0
    %p291 = por %p289, %p290
    %p292 = scmp.ne.s32.totalorder %s278, %s279
    %p293 = scmp.eq.s32.totalorder %s21, 7
    %p294 = por %p292, %p293
    %p296 = scmp.ne.s32.totalorder %s279, %s295
    %p297 = scmp.eq.s32.totalorder %s21, 0
    %p298 = por %p296, %p297
    %p299 = scmp.le.s32.totalorder 1, %s15
    %p300 = scmp.lt.s32.totalorder %s15, 9
    %p301 = pnand %p299, %p300
    %p302 = pneg %p301
    // Predicated region
    $region9: #{attention_encoder_forward.1} parent=5 // pred_check
      _
    $region10: #{attention_encoder_forward.1} parent=5 // pred_check_branch
      %304 = sbr.rel (%p301) target = $region12
    $region11: #{attention_encoder_forward.1} parent=5 // pred_region
      %s305 = ssub.s32 %s15, 1
    $region12: #{attention_encoder_forward.1} parent=5 // pred_fallthru
      _
    %p306 = scmp.lt.s32.totalorder %s15, 8
    // Predicated region
    $region13: #{attention_encoder_forward.1} parent=5 // pred_check
      %p307 = pneg %p306
    $region14: #{attention_encoder_forward.1} parent=5 // pred_check_branch
      %309 = sbr.rel (%p307) target = $region16
    $region15: #{attention_encoder_forward.1} parent=5 // pred_region
      // Predicated region
      $region17: #{attention_encoder_forward.1} parent=15 // pred_check
        %p310 = pneg %p69
      $region18: #{attention_encoder_forward.1} parent=15 // pred_check_branch
        %312 = sbr.rel (%p310) target = $region20
      $region19: #{attention_encoder_forward.1} parent=15 // pred_region
        %s313 = ssub.s32 1, %s23
        %s314 = smul.u32 %s24, %s313
        %s315 = smul.u32 %s25, %s313
        %p316 = scmp.lt.s32.totalorder %s314, 1
        %s317 = scalar_select %p316, %s314, 1
        %p318 = scmp.lt.s32.totalorder %s315, 0
        %s319 = scalar_select %p318, %s315, 0
        %s320 = smul.addr %s317, 32
        %s321 = sadd.s32 %s319, %s320
        %s322 = smul.addr %s321, 4
        %s323 = scalar_lea.vmem %s0, %s322
        %s324 = ssub.s32 1, %s23
        %s325 = smul.u32 %s24, %s324
        %s326 = smul.u32 %s25, %s324
      $region20: #{attention_encoder_forward.1} parent=15 // pred_fallthru
        _
      // Predicated region
      $region21: #{attention_encoder_forward.1} parent=15 // pred_check
        %p327 = pneg %p95
      $region22: #{attention_encoder_forward.1} parent=15 // pred_check_branch
        %329 = sbr.rel (%p327) target = $region24
      $region23: #{attention_encoder_forward.1} parent=15 // pred_region
        %s330 = smul.u32 32, %s22
        %p331 = scmp.lt.s32.totalorder %s330, 63
        %s332 = scalar_select %p331, %s330, 63
        %s333 = smul.addr %s332, 2
        %s334 = smul.addr %s333, 4
        %s335 = scalar_lea.vmem %s1, %s334
        %s336 = smul.u32 32, %s22
      $region24: #{attention_encoder_forward.1} parent=15 // pred_fallthru
        _
      // Predicated region
      $region25: #{attention_encoder_forward.1} parent=15 // pred_check
        %p337 = pneg %p121
      $region26: #{attention_encoder_forward.1} parent=15 // pred_check_branch
        %339 = sbr.rel (%p337) target = $region28
      $region27: #{attention_encoder_forward.1} parent=15 // pred_region
        %s340 = smul.u32 32, %s22
        %p341 = scmp.lt.s32.totalorder %s340, 63
        %s342 = scalar_select %p341, %s340, 63
        %s343 = smul.addr %s342, 8
        %s344 = scalar_lea.vmem %s2, %s343
        %s345 = smul.u32 32, %s22
      $region28: #{attention_encoder_forward.1} parent=15 // pred_fallthru
        _
      // Predicated region
      $region29: #{attention_encoder_forward.1} parent=15 // pred_check
        %p346 = pneg %p147
      $region30: #{attention_encoder_forward.1} parent=15 // pred_check_branch
        %348 = sbr.rel (%p346) target = $region32
      $region31: #{attention_encoder_forward.1} parent=15 // pred_region
        %s349 = smul.u32 32, %s22
        %p350 = scmp.lt.s32.totalorder %s349, 63
        %s351 = scalar_select %p350, %s349, 63
        %s352 = smul.addr %s351, 8
        %s353 = scalar_lea.vmem %s3, %s352
        %s354 = smul.u32 32, %s22
      $region32: #{attention_encoder_forward.1} parent=15 // pred_fallthru
        _
      // Predicated region
      $region33: #{attention_encoder_forward.1} parent=15 // pred_check
        %p355 = pneg %p173
      $region34: #{attention_encoder_forward.1} parent=15 // pred_check_branch
        %357 = sbr.rel (%p355) target = $region36
      $region35: #{attention_encoder_forward.1} parent=15 // pred_region
        %s358 = smul.u32 32, %s22
        %p359 = scmp.lt.s32.totalorder %s358, 63
        %s360 = scalar_select %p359, %s358, 63
        %s361 = smul.addr %s360, 2
        %s362 = smul.addr %s361, 4
        %s363 = scalar_lea.vmem %s4, %s362
        %s364 = smul.u32 32, %s22
      $region36: #{attention_encoder_forward.1} parent=15 // pred_fallthru
        _
      // Predicated region
      $region37: #{attention_encoder_forward.1} parent=15 // pred_check
        %p365 = pneg %p199
      $region38: #{attention_encoder_forward.1} parent=15 // pred_check_branch
        %367 = sbr.rel (%p365) target = $region40
      $region39: #{attention_encoder_forward.1} parent=15 // pred_region
        %s368 = smul.u32 32, %s22
        %p369 = scmp.lt.s32.totalorder %s368, 63
        %s370 = scalar_select %p369, %s368, 63
        %s371 = smul.addr %s370, 8
        %s372 = scalar_lea.vmem %s5, %s371
        %s373 = smul.u32 32, %s22
      $region40: #{attention_encoder_forward.1} parent=15 // pred_fallthru
        _
      // Predicated region
      $region41: #{attention_encoder_forward.1} parent=15 // pred_check
        %p374 = pneg %p225
      $region42: #{attention_encoder_forward.1} parent=15 // pred_check_branch
        %376 = sbr.rel (%p374) target = $region44
      $region43: #{attention_encoder_forward.1} parent=15 // pred_region
        %s377 = smul.u32 32, %s22
        %p378 = scmp.lt.s32.totalorder %s377, 63
        %s379 = scalar_select %p378, %s377, 63
        %s380 = smul.addr %s379, 8
        %s381 = scalar_lea.vmem %s6, %s380
        %s382 = smul.u32 32, %s22
      $region44: #{attention_encoder_forward.1} parent=15 // pred_fallthru
        _
    $region16: #{attention_encoder_forward.1} parent=5 // pred_fallthru
      _
    %p383 = scmp.le.s32.totalorder 1, %s15
    %p384 = scmp.lt.s32.totalorder %s15, 9
    %p385 = pnand %p383, %p384
    %p386 = pneg %p385
    // Predicated region
    $region45: #{attention_encoder_forward.1} parent=5 // pred_check
      _
    $region46: #{attention_encoder_forward.1} parent=5 // pred_check_branch
      %388 = sbr.rel (%p385) target = $region48
    $region47: #{attention_encoder_forward.1} parent=5 // pred_region
      %s389 = ssub.s32 %s15, 1
      %s390 = ssub.s32 1, %s27
      %s391 = smul.u32 %s28, %s390
      %s392 = smul.u32 %s29, %s390
      %p393 = scmp.lt.s32.totalorder %s391, 1
      %s394 = scalar_select %p393, %s391, 1
      %p395 = scmp.lt.s32.totalorder %s392, 0
      %s396 = scalar_select %p395, %s392, 0
      %s397 = smul.addr %s394, 32
      %s398 = sadd.s32 %s396, %s397
      %s399 = smul.addr %s398, 4
      %s400 = scalar_lea.vmem %s0, %s399
      %p401 = pneg %p75
      %p402 = pneg %p72
      %s403 = smul.u32 32, %s26
      %p404 = scmp.lt.s32.totalorder %s403, 63
      %s405 = scalar_select %p404, %s403, 63
      %s406 = smul.addr %s405, 2
      %s407 = smul.addr %s406, 4
      %s408 = scalar_lea.vmem %s1, %s407
      %p409 = pneg %p101
      %p410 = pneg %p98
      %s411 = smul.u32 32, %s26
      %p412 = scmp.lt.s32.totalorder %s411, 63
      %s413 = scalar_select %p412, %s411, 63
      %s414 = smul.addr %s413, 8
      %s415 = scalar_lea.vmem %s2, %s414
      %p416 = pneg %p127
      %p417 = pneg %p124
      %s418 = smul.u32 32, %s26
      %p419 = scmp.lt.s32.totalorder %s418, 63
      %s420 = scalar_select %p419, %s418, 63
      %s421 = smul.addr %s420, 8
      %s422 = scalar_lea.vmem %s3, %s421
      %p423 = pneg %p153
      %p424 = pneg %p150
      %s425 = smul.u32 32, %s26
      %p426 = scmp.lt.s32.totalorder %s425, 63
      %s427 = scalar_select %p426, %s425, 63
      %s428 = smul.addr %s427, 2
      %s429 = smul.addr %s428, 4
      %s430 = scalar_lea.vmem %s4, %s429
      %p431 = pneg %p179
      %p432 = pneg %p176
      %s433 = smul.u32 32, %s26
      %p434 = scmp.lt.s32.totalorder %s433, 63
      %s435 = scalar_select %p434, %s433, 63
      %s436 = smul.addr %s435, 8
      %s437 = scalar_lea.vmem %s5, %s436
      %p438 = pneg %p205
      %p439 = pneg %p202
      %s440 = smul.u32 32, %s26
      %p441 = scmp.lt.s32.totalorder %s440, 63
      %s442 = scalar_select %p441, %s440, 63
      %s443 = smul.addr %s442, 8
      %s444 = scalar_lea.vmem %s6, %s443
      %p445 = pneg %p231
      %p446 = pneg %p228
      %p447 = pneg %p265
      %p448 = pneg %p262
      %s449 = smul.u32 %s28, %s27
      %s450 = smul.u32 %s29, %s27
      %s451 = smul.u32 32, %s26
      %p452 = scmp.lt.s32.totalorder %s449, 1
      %s453 = scalar_select %p452, %s449, 1
      %p454 = scmp.lt.s32.totalorder %s451, 63
      %s455 = scalar_select %p454, %s451, 63
      %p456 = scmp.lt.s32.totalorder %s450, 0
      %s457 = scalar_select %p456, %s450, 0
      %s458 = sadd.s32 %s457, %s455
      %s459 = smul.addr %s453, 64
      %s460 = sadd.s32 %s458, %s459
      %s461 = smul.addr %s460, 4
      %s462 = scalar_lea.vmem %s7, %s461
      %p463 = pneg %p291
      %p464 = pneg %p288
      %s465 = smul.u32 32, %s26
      %p466 = scmp.lt.s32.totalorder %s465, 63
      %s467 = scalar_select %p466, %s465, 63
      %s468 = smul.addr %s467, 8
      %s469 = scalar_lea.vmem %s8, %s468
      %s470 = ssub.s32 1, %s27
      %s471 = smul.u32 %s28, %s470
      %s472 = smul.u32 %s29, %s470
      %p473 = scmp.lt.s32.totalorder %s471, 1
      %s474 = scalar_select %p473, %s471, 1
      %p475 = scmp.lt.s32.totalorder %s472, 0
      %s476 = scalar_select %p475, %s472, 0
      %s477 = smul.addr %s474, 32
      %s478 = sadd.s32 %s476, %s477
      %s479 = smul.addr %s478, 4
      %s480 = scalar_lea.vmem %s0, %s479
      %s481 = ssub.s32 1, %s27
      %s482 = smul.u32 %s28, %s481
      %s483 = smul.u32 %s29, %s481
      %s484 = smul.u32 32, %s26
      %p485 = scmp.lt.s32.totalorder %s484, 63
      %s486 = scalar_select %p485, %s484, 63
      %s487 = smul.addr %s486, 2
      %s488 = smul.addr %s487, 4
      %s489 = scalar_lea.vmem %s1, %s488
      %s490 = smul.u32 32, %s26
      %s491 = smul.u32 32, %s26
      %p492 = scmp.lt.s32.totalorder %s491, 63
      %s493 = scalar_select %p492, %s491, 63
      %s494 = smul.addr %s493, 8
      %s495 = scalar_lea.vmem %s2, %s494
      %s496 = smul.u32 32, %s26
      %s497 = smul.u32 32, %s26
      %p498 = scmp.lt.s32.totalorder %s497, 63
      %s499 = scalar_select %p498, %s497, 63
      %s500 = smul.addr %s499, 8
      %s501 = scalar_lea.vmem %s3, %s500
      %s502 = smul.u32 32, %s26
      %s503 = smul.u32 32, %s26
      %p504 = scmp.lt.s32.totalorder %s503, 63
      %s505 = scalar_select %p504, %s503, 63
      %s506 = smul.addr %s505, 2
      %s507 = smul.addr %s506, 4
      %s508 = scalar_lea.vmem %s4, %s507
      %s509 = smul.u32 32, %s26
      %s510 = smul.u32 32, %s26
      %p511 = scmp.lt.s32.totalorder %s510, 63
      %s512 = scalar_select %p511, %s510, 63
      %s513 = smul.addr %s512, 8
      %s514 = scalar_lea.vmem %s5, %s513
      %s515 = smul.u32 32, %s26
      %s516 = smul.u32 32, %s26
      %p517 = scmp.lt.s32.totalorder %s516, 63
      %s518 = scalar_select %p517, %s516, 63
      %s519 = smul.addr %s518, 8
      %s520 = scalar_lea.vmem %s6, %s519
      %s521 = smul.u32 32, %s26
      %s522 = smul.u32 %s28, %s27
      %s523 = smul.u32 %s29, %s27
      %s524 = smul.u32 32, %s26
      %p525 = scmp.lt.s32.totalorder %s522, 1
      %s526 = scalar_select %p525, %s522, 1
      %p527 = scmp.lt.s32.totalorder %s524, 63
      %s528 = scalar_select %p527, %s524, 63
      %p529 = scmp.lt.s32.totalorder %s523, 0
      %s530 = scalar_select %p529, %s523, 0
      %s531 = sadd.s32 %s530, %s528
      %s532 = smul.addr %s526, 64
      %s533 = sadd.s32 %s531, %s532
      %s534 = smul.addr %s533, 4
      %s535 = scalar_lea.vmem %s7, %s534
      %s536 = smul.u32 %s28, %s27
      %s537 = smul.u32 %s29, %s27
      %s538 = smul.u32 32, %s26
      %s539 = smul.u32 32, %s26
      %p540 = scmp.lt.s32.totalorder %s539, 63
      %s541 = scalar_select %p540, %s539, 63
      %s542 = smul.addr %s541, 8
      %s543 = scalar_lea.vmem %s8, %s542
      %s544 = smul.u32 32, %s26
      %p546 = scmp.eq.s32.totalorder %s28, 0
      %p547 = scmp.eq.s32.totalorder %s29, 0
      %p548 = pnand %p546, %p547
      %p549 = pneg %p548
      %p550 = scmp.eq.s32.totalorder %s27, 0
      %p551 = pnand %p550, %p549
      %p552 = pneg %p551
      // Predicated region
      $region49: #{attention_encoder_forward.1} parent=47 // pred_check
        _
      $region50: #{attention_encoder_forward.1} parent=47 // pred_check_branch
        %554 = sbr.rel (%p551) target = $region52
      $region51: #{attention_encoder_forward.1} parent=47 // pred_region
        %vm555 = vcmask 7168
        %556 = vst.msk [vmem:[#allocation2] sm:$0xff] %vm555, 0.0
        %557 = vst.msk [vmem:[#allocation2 + $0x8] sm:$0xff] %vm555, 0.0
        %558 = vst.msk [vmem:[#allocation2 + $0x10] sm:$0xff] %vm555, 0.0
        %559 = vst.msk [vmem:[#allocation2 + $0x18] sm:$0xff] %vm555, 0.0
        %560 = vst.msk [vmem:[#allocation2 + $0x20] sm:$0xff] %vm555, 0.0
        %561 = vst.msk [vmem:[#allocation2 + $0x28] sm:$0xff] %vm555, 0.0
        %562 = vst.msk [vmem:[#allocation2 + $0x30] sm:$0xff] %vm555, 0.0
        %563 = vst.msk [vmem:[#allocation2 + $0x38] sm:$0xff] %vm555, 0.0
        %564 = vst.msk [vmem:[#allocation2 + $0x40] sm:$0xff] %vm555, 0.0
        %565 = vst.msk [vmem:[#allocation2 + $0x48] sm:$0xff] %vm555, 0.0
        %566 = vst.msk [vmem:[#allocation2 + $0x50] sm:$0xff] %vm555, 0.0
        %567 = vst.msk [vmem:[#allocation2 + $0x58] sm:$0xff] %vm555, 0.0
        %568 = vst.msk [vmem:[#allocation2 + $0x60] sm:$0xff] %vm555, 0.0
        %569 = vst.msk [vmem:[#allocation2 + $0x68] sm:$0xff] %vm555, 0.0
        %570 = vst.msk [vmem:[#allocation2 + $0x70] sm:$0xff] %vm555, 0.0
        %571 = vst.msk [vmem:[#allocation2 + $0x78] sm:$0xff] %vm555, 0.0
        %572 = vst.msk [vmem:[#allocation2 + $0x80] sm:$0xff] %vm555, 0.0
        %573 = vst.msk [vmem:[#allocation2 + $0x88] sm:$0xff] %vm555, 0.0
        %574 = vst.msk [vmem:[#allocation2 + $0x90] sm:$0xff] %vm555, 0.0
        %575 = vst.msk [vmem:[#allocation2 + $0x98] sm:$0xff] %vm555, 0.0
        %576 = vst.msk [vmem:[#allocation2 + $0xa0] sm:$0xff] %vm555, 0.0
        %577 = vst.msk [vmem:[#allocation2 + $0xa8] sm:$0xff] %vm555, 0.0
        %578 = vst.msk [vmem:[#allocation2 + $0xb0] sm:$0xff] %vm555, 0.0
        %579 = vst.msk [vmem:[#allocation2 + $0xb8] sm:$0xff] %vm555, 0.0
        %580 = vst.msk [vmem:[#allocation2 + $0xc0] sm:$0xff] %vm555, 0.0
        %581 = vst.msk [vmem:[#allocation2 + $0xc8] sm:$0xff] %vm555, 0.0
        %582 = vst.msk [vmem:[#allocation2 + $0xd0] sm:$0xff] %vm555, 0.0
        %583 = vst.msk [vmem:[#allocation2 + $0xd8] sm:$0xff] %vm555, 0.0
        %584 = vst.msk [vmem:[#allocation2 + $0xe0] sm:$0xff] %vm555, 0.0
        %585 = vst.msk [vmem:[#allocation2 + $0xe8] sm:$0xff] %vm555, 0.0
        %586 = vst.msk [vmem:[#allocation2 + $0xf0] sm:$0xff] %vm555, 0.0
        %587 = vst.msk [vmem:[#allocation2 + $0xf8] sm:$0xff] %vm555, 0.0
        %588 = vst.msk [vmem:[#allocation3] sm:$0xff] %vm555, 0.0
        %589 = vst.msk [vmem:[#allocation3 + $0x8] sm:$0xff] %vm555, 0.0
        %590 = vst.msk [vmem:[#allocation3 + $0x10] sm:$0xff] %vm555, 0.0
        %591 = vst.msk [vmem:[#allocation3 + $0x18] sm:$0xff] %vm555, 0.0
        %592 = vst.msk [vmem:[#allocation3 + $0x20] sm:$0xff] %vm555, 0.0
        %593 = vst.msk [vmem:[#allocation3 + $0x28] sm:$0xff] %vm555, 0.0
        %594 = vst.msk [vmem:[#allocation3 + $0x30] sm:$0xff] %vm555, 0.0
        %595 = vst.msk [vmem:[#allocation3 + $0x38] sm:$0xff] %vm555, 0.0
        %596 = vst.msk [vmem:[#allocation3 + $0x40] sm:$0xff] %vm555, 0.0
        %597 = vst.msk [vmem:[#allocation3 + $0x48] sm:$0xff] %vm555, 0.0
        %598 = vst.msk [vmem:[#allocation3 + $0x50] sm:$0xff] %vm555, 0.0
        %599 = vst.msk [vmem:[#allocation3 + $0x58] sm:$0xff] %vm555, 0.0
        %600 = vst.msk [vmem:[#allocation3 + $0x60] sm:$0xff] %vm555, 0.0
        %601 = vst.msk [vmem:[#allocation3 + $0x68] sm:$0xff] %vm555, 0.0
        %602 = vst.msk [vmem:[#allocation3 + $0x70] sm:$0xff] %vm555, 0.0
        %603 = vst.msk [vmem:[#allocation3 + $0x78] sm:$0xff] %vm555, 0.0
        %604 = vst.msk [vmem:[#allocation3 + $0x80] sm:$0xff] %vm555, 0.0
        %605 = vst.msk [vmem:[#allocation3 + $0x88] sm:$0xff] %vm555, 0.0
        %606 = vst.msk [vmem:[#allocation3 + $0x90] sm:$0xff] %vm555, 0.0
        %607 = vst.msk [vmem:[#allocation3 + $0x98] sm:$0xff] %vm555, 0.0
        %608 = vst.msk [vmem:[#allocation3 + $0xa0] sm:$0xff] %vm555, 0.0
        %609 = vst.msk [vmem:[#allocation3 + $0xa8] sm:$0xff] %vm555, 0.0
        %610 = vst.msk [vmem:[#allocation3 + $0xb0] sm:$0xff] %vm555, 0.0
        %611 = vst.msk [vmem:[#allocation3 + $0xb8] sm:$0xff] %vm555, 0.0
        %612 = vst.msk [vmem:[#allocation3 + $0xc0] sm:$0xff] %vm555, 0.0
        %613 = vst.msk [vmem:[#allocation3 + $0xc8] sm:$0xff] %vm555, 0.0
        %614 = vst.msk [vmem:[#allocation3 + $0xd0] sm:$0xff] %vm555, 0.0
        %615 = vst.msk [vmem:[#allocation3 + $0xd8] sm:$0xff] %vm555, 0.0
        %616 = vst.msk [vmem:[#allocation3 + $0xe0] sm:$0xff] %vm555, 0.0
        %617 = vst.msk [vmem:[#allocation3 + $0xe8] sm:$0xff] %vm555, 0.0
        %618 = vst.msk [vmem:[#allocation3 + $0xf0] sm:$0xff] %vm555, 0.0
        %619 = vst.msk [vmem:[#allocation3 + $0xf8] sm:$0xff] %vm555, 0.0
        %vm620 = vcmask 15360
        %621 = vst.msk [vmem:[#allocation4] sm:$0xff] %vm620, 0.0
        %622 = vst.msk [vmem:[#allocation4 + $0x8] sm:$0xff] %vm620, 0.0
        %623 = vst.msk [vmem:[#allocation4 + $0x10] sm:$0xff] %vm620, 0.0
        %624 = vst.msk [vmem:[#allocation4 + $0x18] sm:$0xff] %vm620, 0.0
        %625 = vst.msk [vmem:[#allocation4 + $0x20] sm:$0xff] %vm620, 0.0
        %626 = vst.msk [vmem:[#allocation4 + $0x28] sm:$0xff] %vm620, 0.0
        %627 = vst.msk [vmem:[#allocation4 + $0x30] sm:$0xff] %vm620, 0.0
        %628 = vst.msk [vmem:[#allocation4 + $0x38] sm:$0xff] %vm620, 0.0
        %629 = vst.msk [vmem:[#allocation4 + $0x40] sm:$0xff] %vm620, 0.0
        %630 = vst.msk [vmem:[#allocation4 + $0x48] sm:$0xff] %vm620, 0.0
        %631 = vst.msk [vmem:[#allocation4 + $0x50] sm:$0xff] %vm620, 0.0
        %632 = vst.msk [vmem:[#allocation4 + $0x58] sm:$0xff] %vm620, 0.0
        %633 = vst.msk [vmem:[#allocation4 + $0x60] sm:$0xff] %vm620, 0.0
        %634 = vst.msk [vmem:[#allocation4 + $0x68] sm:$0xff] %vm620, 0.0
        %635 = vst.msk [vmem:[#allocation4 + $0x70] sm:$0xff] %vm620, 0.0
        %636 = vst.msk [vmem:[#allocation4 + $0x78] sm:$0xff] %vm620, 0.0
        %637 = vst.msk [vmem:[#allocation4 + $0x80] sm:$0xff] %vm620, 0.0
        %638 = vst.msk [vmem:[#allocation4 + $0x88] sm:$0xff] %vm620, 0.0
        %639 = vst.msk [vmem:[#allocation4 + $0x90] sm:$0xff] %vm620, 0.0
        %640 = vst.msk [vmem:[#allocation4 + $0x98] sm:$0xff] %vm620, 0.0
        %641 = vst.msk [vmem:[#allocation4 + $0xa0] sm:$0xff] %vm620, 0.0
        %642 = vst.msk [vmem:[#allocation4 + $0xa8] sm:$0xff] %vm620, 0.0
        %643 = vst.msk [vmem:[#allocation4 + $0xb0] sm:$0xff] %vm620, 0.0
        %644 = vst.msk [vmem:[#allocation4 + $0xb8] sm:$0xff] %vm620, 0.0
        %645 = vst.msk [vmem:[#allocation4 + $0xc0] sm:$0xff] %vm620, 0.0
        %646 = vst.msk [vmem:[#allocation4 + $0xc8] sm:$0xff] %vm620, 0.0
        %647 = vst.msk [vmem:[#allocation4 + $0xd0] sm:$0xff] %vm620, 0.0
        %648 = vst.msk [vmem:[#allocation4 + $0xd8] sm:$0xff] %vm620, 0.0
        %649 = vst.msk [vmem:[#allocation4 + $0xe0] sm:$0xff] %vm620, 0.0
        %650 = vst.msk [vmem:[#allocation4 + $0xe8] sm:$0xff] %vm620, 0.0
        %651 = vst.msk [vmem:[#allocation4 + $0xf0] sm:$0xff] %vm620, 0.0
        %652 = vst.msk [vmem:[#allocation4 + $0xf8] sm:$0xff] %vm620, 0.0
      $region52: #{attention_encoder_forward.1} parent=47 // pred_fallthru
        _
      // Predicated region
      $region53: #{attention_encoder_forward.1} parent=47 // pred_check
        %p653 = pneg %p550
      $region54: #{attention_encoder_forward.1} parent=47 // pred_check_branch
        %655 = sbr.rel (%p653) target = $region56
      $region55: #{attention_encoder_forward.1} parent=47 // pred_region
        %v656 = vld [vmem:[%s480] sm:$0xf]
        %v657 = vld [vmem:[%s480 + $0x4] sm:$0xf]
        %v658 = vld [vmem:[%s480 + $0x8] sm:$0xf]
        %v659 = vld [vmem:[%s480 + $0xc] sm:$0xf]
        %v660 = vld [vmem:[%s480 + $0x10] sm:$0xf]
        %v661 = vld [vmem:[%s480 + $0x14] sm:$0xf]
        %v662 = vld [vmem:[%s480 + $0x18] sm:$0xf]
        %v663 = vld [vmem:[%s480 + $0x1c] sm:$0xf]
        %v664 = vld [vmem:[%s480 + $0x20] sm:$0xf]
        %v665 = vld [vmem:[%s480 + $0x24] sm:$0xf]
        %v666 = vld [vmem:[%s480 + $0x28] sm:$0xf]
        %v667 = vld [vmem:[%s480 + $0x2c] sm:$0xf]
        %v668 = vld [vmem:[%s480 + $0x30] sm:$0xf]
        %v669 = vld [vmem:[%s480 + $0x34] sm:$0xf]
        %v670 = vld [vmem:[%s480 + $0x38] sm:$0xf]
        %v671 = vld [vmem:[%s480 + $0x3c] sm:$0xf]
        %v672 = vld [vmem:[%s480 + $0x40] sm:$0xf]
        %v673 = vld [vmem:[%s480 + $0x44] sm:$0xf]
        %v674 = vld [vmem:[%s480 + $0x48] sm:$0xf]
        %v675 = vld [vmem:[%s480 + $0x4c] sm:$0xf]
        %v676 = vld [vmem:[%s480 + $0x50] sm:$0xf]
        %v677 = vld [vmem:[%s480 + $0x54] sm:$0xf]
        %v678 = vld [vmem:[%s480 + $0x58] sm:$0xf]
        %v679 = vld [vmem:[%s480 + $0x5c] sm:$0xf]
        %v680 = vld [vmem:[%s480 + $0x60] sm:$0xf]
        %v681 = vld [vmem:[%s480 + $0x64] sm:$0xf]
        %v682 = vld [vmem:[%s480 + $0x68] sm:$0xf]
        %v683 = vld [vmem:[%s480 + $0x6c] sm:$0xf]
        %v684 = vld [vmem:[%s480 + $0x70] sm:$0xf]
        %v685 = vld [vmem:[%s480 + $0x74] sm:$0xf]
        %v686 = vld [vmem:[%s480 + $0x78] sm:$0xf]
        %v687 = vld [vmem:[%s480 + $0x7c] sm:$0xf]
        %v688 = vld [vmem:[%s489] sm:$0xff]
        %v689 = vld [vmem:[%s489 + $0x8] sm:$0xff]
        %v690 = vld [vmem:[%s489 + $0x10] sm:$0xff]
        %v691 = vld [vmem:[%s489 + $0x18] sm:$0xff]
        %v692 = vld [vmem:[%s489 + $0x20] sm:$0xff]
        %v693 = vld [vmem:[%s489 + $0x28] sm:$0xff]
        %v694 = vld [vmem:[%s489 + $0x30] sm:$0xff]
        %v695 = vld [vmem:[%s489 + $0x38] sm:$0xff]
        %v696 = vld [vmem:[%s489 + $0x40] sm:$0xff]
        %v697 = vld [vmem:[%s489 + $0x48] sm:$0xff]
        %v698 = vld [vmem:[%s489 + $0x50] sm:$0xff]
        %v699 = vld [vmem:[%s489 + $0x58] sm:$0xff]
        %v700 = vld [vmem:[%s489 + $0x60] sm:$0xff]
        %v701 = vld [vmem:[%s489 + $0x68] sm:$0xff]
        %v702 = vld [vmem:[%s489 + $0x70] sm:$0xff]
        %v703 = vld [vmem:[%s489 + $0x78] sm:$0xff]
        %v704 = vld [vmem:[%s489 + $0x80] sm:$0xff]
        %v705 = vld [vmem:[%s489 + $0x88] sm:$0xff]
        %v706 = vld [vmem:[%s489 + $0x90] sm:$0xff]
        %v707 = vld [vmem:[%s489 + $0x98] sm:$0xff]
        %v708 = vld [vmem:[%s489 + $0xa0] sm:$0xff]
        %v709 = vld [vmem:[%s489 + $0xa8] sm:$0xff]
        %v710 = vld [vmem:[%s489 + $0xb0] sm:$0xff]
        %v711 = vld [vmem:[%s489 + $0xb8] sm:$0xff]
        %v712 = vld [vmem:[%s489 + $0xc0] sm:$0xff]
        %v713 = vld [vmem:[%s489 + $0xc8] sm:$0xff]
        %v714 = vld [vmem:[%s489 + $0xd0] sm:$0xff]
        %v715 = vld [vmem:[%s489 + $0xd8] sm:$0xff]
        %v716 = vld [vmem:[%s489 + $0xe0] sm:$0xff]
        %v717 = vld [vmem:[%s489 + $0xe8] sm:$0xff]
        %v718 = vld [vmem:[%s489 + $0xf0] sm:$0xff]
        %v719 = vld [vmem:[%s489 + $0xf8] sm:$0xff]
        %v752 = vunpack.c.l.b16 %v688
        %v753 = vunpack.c.h.b16 %v688
        %v754 = vunpack.c.l.b16 %v689
        %v755 = vunpack.c.h.b16 %v689
        %v756 = vunpack.c.l.b16 %v690
        %v757 = vunpack.c.h.b16 %v690
        %v758 = vunpack.c.l.b16 %v691
        %v759 = vunpack.c.h.b16 %v691
        %v760 = vunpack.c.l.b16 %v692
        %v761 = vunpack.c.h.b16 %v692
        %v762 = vunpack.c.l.b16 %v693
        %v763 = vunpack.c.h.b16 %v693
        %v764 = vunpack.c.l.b16 %v694
        %v765 = vunpack.c.h.b16 %v694
        %v766 = vunpack.c.l.b16 %v695
        %v767 = vunpack.c.h.b16 %v695
        %v768 = vunpack.c.l.b16 %v696
        %v769 = vunpack.c.h.b16 %v696
        %v770 = vunpack.c.l.b16 %v697
        %v771 = vunpack.c.h.b16 %v697
        %v772 = vunpack.c.l.b16 %v698
        %v773 = vunpack.c.h.b16 %v698
        %v774 = vunpack.c.l.b16 %v699
        %v775 = vunpack.c.h.b16 %v699
        %v776 = vunpack.c.l.b16 %v700
        %v777 = vunpack.c.h.b16 %v700
        %v778 = vunpack.c.l.b16 %v701
        %v779 = vunpack.c.h.b16 %v701
        %v780 = vunpack.c.l.b16 %v702
        %v781 = vunpack.c.h.b16 %v702
        %v782 = vunpack.c.l.b16 %v703
        %v783 = vunpack.c.h.b16 %v703
        %v784 = vunpack.c.l.b16 %v704
        %v785 = vunpack.c.h.b16 %v704
        %v786 = vunpack.c.l.b16 %v705
        %v787 = vunpack.c.h.b16 %v705
        %v788 = vunpack.c.l.b16 %v706
        %v789 = vunpack.c.h.b16 %v706
        %v790 = vunpack.c.l.b16 %v707
        %v791 = vunpack.c.h.b16 %v707
        %v792 = vunpack.c.l.b16 %v708
        %v793 = vunpack.c.h.b16 %v708
        %v794 = vunpack.c.l.b16 %v709
        %v795 = vunpack.c.h.b16 %v709
        %v796 = vunpack.c.l.b16 %v710
        %v797 = vunpack.c.h.b16 %v710
        %v798 = vunpack.c.l.b16 %v711
        %v799 = vunpack.c.h.b16 %v711
        %v800 = vunpack.c.l.b16 %v712
        %v801 = vunpack.c.h.b16 %v712
        %v802 = vunpack.c.l.b16 %v713
        %v803 = vunpack.c.h.b16 %v713
        %v804 = vunpack.c.l.b16 %v714
        %v805 = vunpack.c.h.b16 %v714
        %v806 = vunpack.c.l.b16 %v715
        %v807 = vunpack.c.h.b16 %v715
        %v808 = vunpack.c.l.b16 %v716
        %v809 = vunpack.c.h.b16 %v716
        %v810 = vunpack.c.l.b16 %v717
        %v811 = vunpack.c.h.b16 %v717
        %v812 = vunpack.c.l.b16 %v718
        %v813 = vunpack.c.h.b16 %v718
        %v814 = vunpack.c.l.b16 %v719
        %v815 = vunpack.c.h.b16 %v719
        %v816 = vpack.c.b16 %v754, %v752
        %v817 = vpack.c.b16 %v755, %v753
        %v818 = vpack.c.b16 %v758, %v756
        %v819 = vpack.c.b16 %v759, %v757
        %v820 = vpack.c.b16 %v762, %v760
        %v821 = vpack.c.b16 %v763, %v761
        %v822 = vpack.c.b16 %v766, %v764
        %v823 = vpack.c.b16 %v767, %v765
        %v824 = vpack.c.b16 %v770, %v768
        %v825 = vpack.c.b16 %v771, %v769
        %v826 = vpack.c.b16 %v774, %v772
        %v827 = vpack.c.b16 %v775, %v773
        %v828 = vpack.c.b16 %v778, %v776
        %v829 = vpack.c.b16 %v779, %v777
        %v830 = vpack.c.b16 %v782, %v780
        %v831 = vpack.c.b16 %v783, %v781
        %v832 = vpack.c.b16 %v786, %v784
        %v833 = vpack.c.b16 %v787, %v785
        %v834 = vpack.c.b16 %v790, %v788
        %v835 = vpack.c.b16 %v791, %v789
        %v836 = vpack.c.b16 %v794, %v792
        %v837 = vpack.c.b16 %v795, %v793
        %v838 = vpack.c.b16 %v798, %v796
        %v839 = vpack.c.b16 %v799, %v797
        %v840 = vpack.c.b16 %v802, %v800
        %v841 = vpack.c.b16 %v803, %v801
        %v842 = vpack.c.b16 %v806, %v804
        %v843 = vpack.c.b16 %v807, %v805
        %v844 = vpack.c.b16 %v810, %v808
        %v845 = vpack.c.b16 %v811, %v809
        %v846 = vpack.c.b16 %v814, %v812
        %v847 = vpack.c.b16 %v815, %v813
        %v912 = vunpack.c.l.b16 %v656
        %v913 = vunpack.c.l.b16 %v657
        %v914 = vunpack.c.l.b16 %v658
        %v915 = vunpack.c.l.b16 %v659
        %v916 = vunpack.c.l.b16 %v660
        %v917 = vunpack.c.l.b16 %v661
        %v918 = vunpack.c.l.b16 %v662
        %v919 = vunpack.c.l.b16 %v663
        %v920 = vunpack.c.l.b16 %v664
        %v921 = vunpack.c.l.b16 %v665
        %v922 = vunpack.c.l.b16 %v666
        %v923 = vunpack.c.l.b16 %v667
        %v924 = vunpack.c.l.b16 %v668
        %v925 = vunpack.c.l.b16 %v669
        %v926 = vunpack.c.l.b16 %v670
        %v927 = vunpack.c.l.b16 %v671
        %v928 = vunpack.c.l.b16 %v672
        %v929 = vunpack.c.l.b16 %v673
        %v930 = vunpack.c.l.b16 %v674
        %v931 = vunpack.c.l.b16 %v675
        %v932 = vunpack.c.l.b16 %v676
        %v933 = vunpack.c.l.b16 %v677
        %v934 = vunpack.c.l.b16 %v678
        %v935 = vunpack.c.l.b16 %v679
        %v936 = vunpack.c.l.b16 %v680
        %v937 = vunpack.c.l.b16 %v681
        %v938 = vunpack.c.l.b16 %v682
        %v939 = vunpack.c.l.b16 %v683
        %v940 = vunpack.c.l.b16 %v684
        %v941 = vunpack.c.l.b16 %v685
        %v942 = vunpack.c.l.b16 %v686
        %v943 = vunpack.c.l.b16 %v687
        %v944 = vpack.c.b16 %v913, %v912
        %v945 = vpack.c.b16 %v915, %v914
        %v946 = vpack.c.b16 %v917, %v916
        %v947 = vpack.c.b16 %v919, %v918
        %v948 = vpack.c.b16 %v921, %v920
        %v949 = vpack.c.b16 %v923, %v922
        %v950 = vpack.c.b16 %v925, %v924
        %v951 = vpack.c.b16 %v927, %v926
        %v952 = vpack.c.b16 %v929, %v928
        %v953 = vpack.c.b16 %v931, %v930
        %v954 = vpack.c.b16 %v933, %v932
        %v955 = vpack.c.b16 %v935, %v934
        %v956 = vpack.c.b16 %v937, %v936
        %v957 = vpack.c.b16 %v939, %v938
        %v958 = vpack.c.b16 %v941, %v940
        %v959 = vpack.c.b16 %v943, %v942
        %976 = vmatprep.subr.bf16.mxu0 0
        %977 = vmatpush1.bf16.msra.mxu0 %v951
        %978 = vmatprep.subr.bf16.mxu0 0
        %979 = vmatpush1.bf16.msra.mxu0 %v950
        %980 = vmatprep.subr.bf16.mxu0 0
        %981 = vmatpush1.bf16.msra.mxu0 %v949
        %982 = vmatprep.subr.bf16.mxu0 0
        %983 = vmatpush1.bf16.msra.mxu0 %v948
        %984 = vmatprep.subr.bf16.mxu0 0
        %985 = vmatpush1.bf16.msra.mxu0 %v947
        %986 = vmatprep.subr.bf16.mxu0 0
        %987 = vmatpush1.bf16.msra.mxu0 %v946
        %988 = vmatprep.subr.bf16.mxu0 0
        %989 = vmatpush1.bf16.msra.mxu0 %v945
        %990 = vmatprep.subr.bf16.mxu0 0
        %991 = vmatpush1.bf16.msra.mxu0 %v944
        %992 = vmatprep.subr.bf16.mxu0 0
        %993 = vmatpush2.bf16.msra.mxu0 %v959
        %994 = vmatprep.subr.bf16.mxu0 0
        %995 = vmatpush2.bf16.msra.mxu0 %v958
        %996 = vmatprep.subr.bf16.mxu0 0
        %997 = vmatpush2.bf16.msra.mxu0 %v957
        %998 = vmatprep.subr.bf16.mxu0 0
        %999 = vmatpush2.bf16.msra.mxu0 %v956
        %1000 = vmatprep.subr.bf16.mxu0 0
        %1001 = vmatpush2.bf16.msra.mxu0 %v955
        %1002 = vmatprep.subr.bf16.mxu0 0
        %1003 = vmatpush2.bf16.msra.mxu0 %v954
        %1004 = vmatprep.subr.bf16.mxu0 0
        %1005 = vmatpush2.bf16.msra.mxu0 %v953
        %1006 = vmatprep.subr.bf16.mxu0 0
        %1007 = vmatpush2.bf16.msra.mxu0 %v952
        %1008 = vmatprep.mubr.bf16.mxu0 %v817
        %1009 = vmatmul.mubr.bf16.gmra.mxu0 %v816
        %v1010 = vpop.f32.mrf.mxu0
        %v1011 = vadd.f32 0.0, %v1010
        %v1012 = vpop.f32.mrf.mxu0
        %v1013 = vpop.f32.mrf.mxu0
        %v1014 = vadd.f32 0.0, %v1013
        %v1015 = vpop.f32.mrf.mxu0
        %1016 = vmatprep.mubr.bf16.mxu0 %v819
        %1017 = vmatmul.mubr.bf16.gmra.mxu0 %v818
        %v1018 = vpop.f32.mrf.mxu0
        %v1019 = vadd.f32 0.0, %v1018
        %v1020 = vpop.f32.mrf.mxu0
        %v1021 = vpop.f32.mrf.mxu0
        %v1022 = vadd.f32 0.0, %v1021
        %v1023 = vpop.f32.mrf.mxu0
        %1024 = vmatprep.mubr.bf16.mxu0 %v821
        %1025 = vmatmul.mubr.bf16.gmra.mxu0 %v820
        %v1026 = vpop.f32.mrf.mxu0
        %v1027 = vadd.f32 0.0, %v1026
        %v1028 = vpop.f32.mrf.mxu0
        %v1029 = vpop.f32.mrf.mxu0
        %v1030 = vadd.f32 0.0, %v1029
        %v1031 = vpop.f32.mrf.mxu0
        %1032 = vmatprep.mubr.bf16.mxu0 %v823
        %1033 = vmatmul.mubr.bf16.gmra.mxu0 %v822
        %v1034 = vpop.f32.mrf.mxu0
        %v1035 = vadd.f32 0.0, %v1034
        %v1036 = vpop.f32.mrf.mxu0
        %v1037 = vpop.f32.mrf.mxu0
        %v1038 = vadd.f32 0.0, %v1037
        %v1039 = vpop.f32.mrf.mxu0
        %1040 = vmatprep.mubr.bf16.mxu0 %v825
        %1041 = vmatmul.mubr.bf16.gmra.mxu0 %v824
        %v1042 = vpop.f32.mrf.mxu0
        %v1043 = vadd.f32 0.0, %v1042
        %v1044 = vpop.f32.mrf.mxu0
        %v1045 = vpop.f32.mrf.mxu0
        %v1046 = vadd.f32 0.0, %v1045
        %v1047 = vpop.f32.mrf.mxu0
        %1048 = vmatprep.mubr.bf16.mxu0 %v827
        %1049 = vmatmul.mubr.bf16.gmra.mxu0 %v826
        %v1050 = vpop.f32.mrf.mxu0
        %v1051 = vadd.f32 0.0, %v1050
        %v1052 = vpop.f32.mrf.mxu0
        %v1053 = vpop.f32.mrf.mxu0
        %v1054 = vadd.f32 0.0, %v1053
        %v1055 = vpop.f32.mrf.mxu0
        %1056 = vmatprep.mubr.bf16.mxu0 %v829
        %1057 = vmatmul.mubr.bf16.gmra.mxu0 %v828
        %v1058 = vpop.f32.mrf.mxu0
        %v1059 = vadd.f32 0.0, %v1058
        %v1060 = vpop.f32.mrf.mxu0
        %v1061 = vpop.f32.mrf.mxu0
        %v1062 = vadd.f32 0.0, %v1061
        %v1063 = vpop.f32.mrf.mxu0
        %1064 = vmatprep.mubr.bf16.mxu0 %v831
        %1065 = vmatmul.mubr.bf16.gmra.mxu0 %v830
        %v1066 = vpop.f32.mrf.mxu0
        %v1067 = vadd.f32 0.0, %v1066
        %v1068 = vpop.f32.mrf.mxu0
        %v1069 = vpop.f32.mrf.mxu0
        %v1070 = vadd.f32 0.0, %v1069
        %v1071 = vpop.f32.mrf.mxu0
        %1072 = vmatprep.mubr.bf16.mxu0 %v833
        %1073 = vmatmul.mubr.bf16.gmra.mxu0 %v832
        %v1074 = vpop.f32.mrf.mxu0
        %v1075 = vadd.f32 0.0, %v1074
        %v1076 = vpop.f32.mrf.mxu0
        %v1077 = vpop.f32.mrf.mxu0
        %v1078 = vadd.f32 0.0, %v1077
        %v1079 = vpop.f32.mrf.mxu0
        %1080 = vmatprep.mubr.bf16.mxu0 %v835
        %1081 = vmatmul.mubr.bf16.gmra.mxu0 %v834
        %v1082 = vpop.f32.mrf.mxu0
        %v1083 = vadd.f32 0.0, %v1082
        %v1084 = vpop.f32.mrf.mxu0
        %v1085 = vpop.f32.mrf.mxu0
        %v1086 = vadd.f32 0.0, %v1085
        %v1087 = vpop.f32.mrf.mxu0
        %1088 = vmatprep.mubr.bf16.mxu0 %v837
        %1089 = vmatmul.mubr.bf16.gmra.mxu0 %v836
        %v1090 = vpop.f32.mrf.mxu0
        %v1091 = vadd.f32 0.0, %v1090
        %v1092 = vpop.f32.mrf.mxu0
        %v1093 = vpop.f32.mrf.mxu0
        %v1094 = vadd.f32 0.0, %v1093
        %v1095 = vpop.f32.mrf.mxu0
        %1096 = vmatprep.mubr.bf16.mxu0 %v839
        %1097 = vmatmul.mubr.bf16.gmra.mxu0 %v838
        %v1098 = vpop.f32.mrf.mxu0
        %v1099 = vadd.f32 0.0, %v1098
        %v1100 = vpop.f32.mrf.mxu0
        %v1101 = vpop.f32.mrf.mxu0
        %v1102 = vadd.f32 0.0, %v1101
        %v1103 = vpop.f32.mrf.mxu0
        %1104 = vmatprep.mubr.bf16.mxu0 %v841
        %1105 = vmatmul.mubr.bf16.gmra.mxu0 %v840
        %v1106 = vpop.f32.mrf.mxu0
        %v1107 = vadd.f32 0.0, %v1106
        %v1108 = vpop.f32.mrf.mxu0
        %v1109 = vpop.f32.mrf.mxu0
        %v1110 = vadd.f32 0.0, %v1109
        %v1111 = vpop.f32.mrf.mxu0
        %1112 = vmatprep.mubr.bf16.mxu0 %v843
        %1113 = vmatmul.mubr.bf16.gmra.mxu0 %v842
        %v1114 = vpop.f32.mrf.mxu0
        %v1115 = vadd.f32 0.0, %v1114
        %v1116 = vpop.f32.mrf.mxu0
        %v1117 = vpop.f32.mrf.mxu0
        %v1118 = vadd.f32 0.0, %v1117
        %v1119 = vpop.f32.mrf.mxu0
        %1120 = vmatprep.mubr.bf16.mxu0 %v845
        %1121 = vmatmul.mubr.bf16.gmra.mxu0 %v844
        %v1122 = vpop.f32.mrf.mxu0
        %v1123 = vadd.f32 0.0, %v1122
        %v1124 = vpop.f32.mrf.mxu0
        %v1125 = vpop.f32.mrf.mxu0
        %v1126 = vadd.f32 0.0, %v1125
        %v1127 = vpop.f32.mrf.mxu0
        %1128 = vmatprep.mubr.bf16.mxu0 %v847
        %1129 = vmatmul.mubr.bf16.gmra.mxu0 %v846
        %v1130 = vpop.f32.mrf.mxu0
        %v1131 = vadd.f32 0.0, %v1130
        %v1132 = vpop.f32.mrf.mxu0
        %v1133 = vpop.f32.mrf.mxu0
        %v1134 = vadd.f32 0.0, %v1133
        %v1135 = vpop.f32.mrf.mxu0
        %1136 = vdwg.mxu0
        %v1137 = vmax.f32 %v1011, 0.0
        %v1138 = vmax.f32 %v1014, 0.0
        %v1139 = vmax.f32 %v1019, 0.0
        %v1140 = vmax.f32 %v1022, 0.0
        %v1141 = vmax.f32 %v1027, 0.0
        %v1142 = vmax.f32 %v1030, 0.0
        %v1143 = vmax.f32 %v1035, 0.0
        %v1144 = vmax.f32 %v1038, 0.0
        %v1145 = vmax.f32 %v1043, 0.0
        %v1146 = vmax.f32 %v1046, 0.0
        %v1147 = vmax.f32 %v1051, 0.0
        %v1148 = vmax.f32 %v1054, 0.0
        %v1149 = vmax.f32 %v1059, 0.0
        %v1150 = vmax.f32 %v1062, 0.0
        %v1151 = vmax.f32 %v1067, 0.0
        %v1152 = vmax.f32 %v1070, 0.0
        %v1153 = vmax.f32 %v1075, 0.0
        %v1154 = vmax.f32 %v1078, 0.0
        %v1155 = vmax.f32 %v1083, 0.0
        %v1156 = vmax.f32 %v1086, 0.0
        %v1157 = vmax.f32 %v1091, 0.0
        %v1158 = vmax.f32 %v1094, 0.0
        %v1159 = vmax.f32 %v1099, 0.0
        %v1160 = vmax.f32 %v1102, 0.0
        %v1161 = vmax.f32 %v1107, 0.0
        %v1162 = vmax.f32 %v1110, 0.0
        %v1163 = vmax.f32 %v1115, 0.0
        %v1164 = vmax.f32 %v1118, 0.0
        %v1165 = vmax.f32 %v1123, 0.0
        %v1166 = vmax.f32 %v1126, 0.0
        %v1167 = vmax.f32 %v1131, 0.0
        %v1168 = vmax.f32 %v1134, 0.0
        %v1169 = vld [vmem:[#allocation2] sm:$0xff]
        %v1170 = vld [vmem:[#allocation2 + $0x8] sm:$0xff]
        %v1171 = vld [vmem:[#allocation2 + $0x10] sm:$0xff]
        %v1172 = vld [vmem:[#allocation2 + $0x18] sm:$0xff]
        %v1173 = vld [vmem:[#allocation2 + $0x20] sm:$0xff]
        %v1174 = vld [vmem:[#allocation2 + $0x28] sm:$0xff]
        %v1175 = vld [vmem:[#allocation2 + $0x30] sm:$0xff]
        %v1176 = vld [vmem:[#allocation2 + $0x38] sm:$0xff]
        %v1177 = vld [vmem:[#allocation2 + $0x40] sm:$0xff]
        %v1178 = vld [vmem:[#allocation2 + $0x48] sm:$0xff]
        %v1179 = vld [vmem:[#allocation2 + $0x50] sm:$0xff]
        %v1180 = vld [vmem:[#allocation2 + $0x58] sm:$0xff]
        %v1181 = vld [vmem:[#allocation2 + $0x60] sm:$0xff]
        %v1182 = vld [vmem:[#allocation2 + $0x68] sm:$0xff]
        %v1183 = vld [vmem:[#allocation2 + $0x70] sm:$0xff]
        %v1184 = vld [vmem:[#allocation2 + $0x78] sm:$0xff]
        %v1185 = vld [vmem:[#allocation2 + $0x80] sm:$0xff]
        %v1186 = vld [vmem:[#allocation2 + $0x88] sm:$0xff]
        %v1187 = vld [vmem:[#allocation2 + $0x90] sm:$0xff]
        %v1188 = vld [vmem:[#allocation2 + $0x98] sm:$0xff]
        %v1189 = vld [vmem:[#allocation2 + $0xa0] sm:$0xff]
        %v1190 = vld [vmem:[#allocation2 + $0xa8] sm:$0xff]
        %v1191 = vld [vmem:[#allocation2 + $0xb0] sm:$0xff]
        %v1192 = vld [vmem:[#allocation2 + $0xb8] sm:$0xff]
        %v1193 = vld [vmem:[#allocation2 + $0xc0] sm:$0xff]
        %v1194 = vld [vmem:[#allocation2 + $0xc8] sm:$0xff]
        %v1195 = vld [vmem:[#allocation2 + $0xd0] sm:$0xff]
        %v1196 = vld [vmem:[#allocation2 + $0xd8] sm:$0xff]
        %v1197 = vld [vmem:[#allocation2 + $0xe0] sm:$0xff]
        %v1198 = vld [vmem:[#allocation2 + $0xe8] sm:$0xff]
        %v1199 = vld [vmem:[#allocation2 + $0xf0] sm:$0xff]
        %v1200 = vld [vmem:[#allocation2 + $0xf8] sm:$0xff]
        %1201 = vadd.xlane.f32.xlu0 %v1137
        %v1202 = vpop.xlane.xlu0 %1201
        %1203 = vadd.xlane.f32.xlu0 %v1138
        %v1204 = vpop.xlane.xlu0 %1203
        %1205 = vadd.xlane.f32.xlu0 %v1139
        %v1206 = vpop.xlane.xlu0 %1205
        %1207 = vadd.xlane.f32.xlu0 %v1140
        %v1208 = vpop.xlane.xlu0 %1207
        %1209 = vadd.xlane.f32.xlu0 %v1141
        %v1210 = vpop.xlane.xlu0 %1209
        %1211 = vadd.xlane.f32.xlu0 %v1142
        %v1212 = vpop.xlane.xlu0 %1211
        %1213 = vadd.xlane.f32.xlu0 %v1143
        %v1214 = vpop.xlane.xlu0 %1213
        %1215 = vadd.xlane.f32.xlu0 %v1144
        %v1216 = vpop.xlane.xlu0 %1215
        %1217 = vadd.xlane.f32.xlu0 %v1145
        %v1218 = vpop.xlane.xlu0 %1217
        %1219 = vadd.xlane.f32.xlu0 %v1146
        %v1220 = vpop.xlane.xlu0 %1219
        %1221 = vadd.xlane.f32.xlu0 %v1147
        %v1222 = vpop.xlane.xlu0 %1221
        %1223 = vadd.xlane.f32.xlu0 %v1148
        %v1224 = vpop.xlane.xlu0 %1223
        %1225 = vadd.xlane.f32.xlu0 %v1149
        %v1226 = vpop.xlane.xlu0 %1225
        %1227 = vadd.xlane.f32.xlu0 %v1150
        %v1228 = vpop.xlane.xlu0 %1227
        %1229 = vadd.xlane.f32.xlu0 %v1151
        %v1230 = vpop.xlane.xlu0 %1229
        %1231 = vadd.xlane.f32.xlu0 %v1152
        %v1232 = vpop.xlane.xlu0 %1231
        %1233 = vadd.xlane.f32.xlu0 %v1153
        %v1234 = vpop.xlane.xlu0 %1233
        %1235 = vadd.xlane.f32.xlu0 %v1154
        %v1236 = vpop.xlane.xlu0 %1235
        %1237 = vadd.xlane.f32.xlu0 %v1155
        %v1238 = vpop.xlane.xlu0 %1237
        %1239 = vadd.xlane.f32.xlu0 %v1156
        %v1240 = vpop.xlane.xlu0 %1239
        %1241 = vadd.xlane.f32.xlu0 %v1157
        %v1242 = vpop.xlane.xlu0 %1241
        %1243 = vadd.xlane.f32.xlu0 %v1158
        %v1244 = vpop.xlane.xlu0 %1243
        %1245 = vadd.xlane.f32.xlu0 %v1159
        %v1246 = vpop.xlane.xlu0 %1245
        %1247 = vadd.xlane.f32.xlu0 %v1160
        %v1248 = vpop.xlane.xlu0 %1247
        %1249 = vadd.xlane.f32.xlu0 %v1161
        %v1250 = vpop.xlane.xlu0 %1249
        %1251 = vadd.xlane.f32.xlu0 %v1162
        %v1252 = vpop.xlane.xlu0 %1251
        %1253 = vadd.xlane.f32.xlu0 %v1163
        %v1254 = vpop.xlane.xlu0 %1253
        %1255 = vadd.xlane.f32.xlu0 %v1164
        %v1256 = vpop.xlane.xlu0 %1255
        %1257 = vadd.xlane.f32.xlu0 %v1165
        %v1258 = vpop.xlane.xlu0 %1257
        %1259 = vadd.xlane.f32.xlu0 %v1166
        %v1260 = vpop.xlane.xlu0 %1259
        %1261 = vadd.xlane.f32.xlu0 %v1167
        %v1262 = vpop.xlane.xlu0 %1261
        %1263 = vadd.xlane.f32.xlu0 %v1168
        %v1264 = vpop.xlane.xlu0 %1263
        %v1265 = vadd.f32 %v1169, %v1202
        %v1266 = vadd.f32 %v1170, %v1204
        %v1267 = vadd.f32 %v1171, %v1206
        %v1268 = vadd.f32 %v1172, %v1208
        %v1269 = vadd.f32 %v1173, %v1210
        %v1270 = vadd.f32 %v1174, %v1212
        %v1271 = vadd.f32 %v1175, %v1214
        %v1272 = vadd.f32 %v1176, %v1216
        %v1273 = vadd.f32 %v1177, %v1218
        %v1274 = vadd.f32 %v1178, %v1220
        %v1275 = vadd.f32 %v1179, %v1222
        %v1276 = vadd.f32 %v1180, %v1224
        %v1277 = vadd.f32 %v1181, %v1226
        %v1278 = vadd.f32 %v1182, %v1228
        %v1279 = vadd.f32 %v1183, %v1230
        %v1280 = vadd.f32 %v1184, %v1232
        %v1281 = vadd.f32 %v1185, %v1234
        %v1282 = vadd.f32 %v1186, %v1236
        %v1283 = vadd.f32 %v1187, %v1238
        %v1284 = vadd.f32 %v1188, %v1240
        %v1285 = vadd.f32 %v1189, %v1242
        %v1286 = vadd.f32 %v1190, %v1244
        %v1287 = vadd.f32 %v1191, %v1246
        %v1288 = vadd.f32 %v1192, %v1248
        %v1289 = vadd.f32 %v1193, %v1250
        %v1290 = vadd.f32 %v1194, %v1252
        %v1291 = vadd.f32 %v1195, %v1254
        %v1292 = vadd.f32 %v1196, %v1256
        %v1293 = vadd.f32 %v1197, %v1258
        %v1294 = vadd.f32 %v1198, %v1260
        %v1295 = vadd.f32 %v1199, %v1262
        %v1296 = vadd.f32 %v1200, %v1264
        %vm1297 = vcmask 7168
        %1298 = vst.msk [vmem:[#allocation2] sm:$0xff] %vm1297, %v1265
        %1299 = vst.msk [vmem:[#allocation2 + $0x8] sm:$0xff] %vm1297, %v1266
        %1300 = vst.msk [vmem:[#allocation2 + $0x10] sm:$0xff] %vm1297, %v1267
        %1301 = vst.msk [vmem:[#allocation2 + $0x18] sm:$0xff] %vm1297, %v1268
        %1302 = vst.msk [vmem:[#allocation2 + $0x20] sm:$0xff] %vm1297, %v1269
        %1303 = vst.msk [vmem:[#allocation2 + $0x28] sm:$0xff] %vm1297, %v1270
        %1304 = vst.msk [vmem:[#allocation2 + $0x30] sm:$0xff] %vm1297, %v1271
        %1305 = vst.msk [vmem:[#allocation2 + $0x38] sm:$0xff] %vm1297, %v1272
        %1306 = vst.msk [vmem:[#allocation2 + $0x40] sm:$0xff] %vm1297, %v1273
        %1307 = vst.msk [vmem:[#allocation2 + $0x48] sm:$0xff] %vm1297, %v1274
        %1308 = vst.msk [vmem:[#allocation2 + $0x50] sm:$0xff] %vm1297, %v1275
        %1309 = vst.msk [vmem:[#allocation2 + $0x58] sm:$0xff] %vm1297, %v1276
        %1310 = vst.msk [vmem:[#allocation2 + $0x60] sm:$0xff] %vm1297, %v1277
        %1311 = vst.msk [vmem:[#allocation2 + $0x68] sm:$0xff] %vm1297, %v1278
        %1312 = vst.msk [vmem:[#allocation2 + $0x70] sm:$0xff] %vm1297, %v1279
        %1313 = vst.msk [vmem:[#allocation2 + $0x78] sm:$0xff] %vm1297, %v1280
        %1314 = vst.msk [vmem:[#allocation2 + $0x80] sm:$0xff] %vm1297, %v1281
        %1315 = vst.msk [vmem:[#allocation2 + $0x88] sm:$0xff] %vm1297, %v1282
        %1316 = vst.msk [vmem:[#allocation2 + $0x90] sm:$0xff] %vm1297, %v1283
        %1317 = vst.msk [vmem:[#allocation2 + $0x98] sm:$0xff] %vm1297, %v1284
        %1318 = vst.msk [vmem:[#allocation2 + $0xa0] sm:$0xff] %vm1297, %v1285
        %1319 = vst.msk [vmem:[#allocation2 + $0xa8] sm:$0xff] %vm1297, %v1286
        %1320 = vst.msk [vmem:[#allocation2 + $0xb0] sm:$0xff] %vm1297, %v1287
        %1321 = vst.msk [vmem:[#allocation2 + $0xb8] sm:$0xff] %vm1297, %v1288
        %1322 = vst.msk [vmem:[#allocation2 + $0xc0] sm:$0xff] %vm1297, %v1289
        %1323 = vst.msk [vmem:[#allocation2 + $0xc8] sm:$0xff] %vm1297, %v1290
        %1324 = vst.msk [vmem:[#allocation2 + $0xd0] sm:$0xff] %vm1297, %v1291
        %1325 = vst.msk [vmem:[#allocation2 + $0xd8] sm:$0xff] %vm1297, %v1292
        %1326 = vst.msk [vmem:[#allocation2 + $0xe0] sm:$0xff] %vm1297, %v1293
        %1327 = vst.msk [vmem:[#allocation2 + $0xe8] sm:$0xff] %vm1297, %v1294
        %1328 = vst.msk [vmem:[#allocation2 + $0xf0] sm:$0xff] %vm1297, %v1295
        %1329 = vst.msk [vmem:[#allocation2 + $0xf8] sm:$0xff] %vm1297, %v1296
        %v1330 = vld [vmem:[#allocation3] sm:$0xff]
        %v1331 = vld [vmem:[#allocation3 + $0x8] sm:$0xff]
        %v1332 = vld [vmem:[#allocation3 + $0x10] sm:$0xff]
        %v1333 = vld [vmem:[#allocation3 + $0x18] sm:$0xff]
        %v1334 = vld [vmem:[#allocation3 + $0x20] sm:$0xff]
        %v1335 = vld [vmem:[#allocation3 + $0x28] sm:$0xff]
        %v1336 = vld [vmem:[#allocation3 + $0x30] sm:$0xff]
        %v1337 = vld [vmem:[#allocation3 + $0x38] sm:$0xff]
        %v1338 = vld [vmem:[#allocation3 + $0x40] sm:$0xff]
        %v1339 = vld [vmem:[#allocation3 + $0x48] sm:$0xff]
        %v1340 = vld [vmem:[#allocation3 + $0x50] sm:$0xff]
        %v1341 = vld [vmem:[#allocation3 + $0x58] sm:$0xff]
        %v1342 = vld [vmem:[#allocation3 + $0x60] sm:$0xff]
        %v1343 = vld [vmem:[#allocation3 + $0x68] sm:$0xff]
        %v1344 = vld [vmem:[#allocation3 + $0x70] sm:$0xff]
        %v1345 = vld [vmem:[#allocation3 + $0x78] sm:$0xff]
        %v1346 = vld [vmem:[#allocation3 + $0x80] sm:$0xff]
        %v1347 = vld [vmem:[#allocation3 + $0x88] sm:$0xff]
        %v1348 = vld [vmem:[#allocation3 + $0x90] sm:$0xff]
        %v1349 = vld [vmem:[#allocation3 + $0x98] sm:$0xff]
        %v1350 = vld [vmem:[#allocation3 + $0xa0] sm:$0xff]
        %v1351 = vld [vmem:[#allocation3 + $0xa8] sm:$0xff]
        %v1352 = vld [vmem:[#allocation3 + $0xb0] sm:$0xff]
        %v1353 = vld [vmem:[#allocation3 + $0xb8] sm:$0xff]
        %v1354 = vld [vmem:[#allocation3 + $0xc0] sm:$0xff]
        %v1355 = vld [vmem:[#allocation3 + $0xc8] sm:$0xff]
        %v1356 = vld [vmem:[#allocation3 + $0xd0] sm:$0xff]
        %v1357 = vld [vmem:[#allocation3 + $0xd8] sm:$0xff]
        %v1358 = vld [vmem:[#allocation3 + $0xe0] sm:$0xff]
        %v1359 = vld [vmem:[#allocation3 + $0xe8] sm:$0xff]
        %v1360 = vld [vmem:[#allocation3 + $0xf0] sm:$0xff]
        %v1361 = vld [vmem:[#allocation3 + $0xf8] sm:$0xff]
        %v1362 = vmul.f32 %v1137, %v1137
        %v1363 = vmul.f32 %v1138, %v1138
        %v1364 = vmul.f32 %v1139, %v1139
        %v1365 = vmul.f32 %v1140, %v1140
        %v1366 = vmul.f32 %v1141, %v1141
        %v1367 = vmul.f32 %v1142, %v1142
        %v1368 = vmul.f32 %v1143, %v1143
        %v1369 = vmul.f32 %v1144, %v1144
        %v1370 = vmul.f32 %v1145, %v1145
        %v1371 = vmul.f32 %v1146, %v1146
        %v1372 = vmul.f32 %v1147, %v1147
        %v1373 = vmul.f32 %v1148, %v1148
        %v1374 = vmul.f32 %v1149, %v1149
        %v1375 = vmul.f32 %v1150, %v1150
        %v1376 = vmul.f32 %v1151, %v1151
        %v1377 = vmul.f32 %v1152, %v1152
        %v1378 = vmul.f32 %v1153, %v1153
        %v1379 = vmul.f32 %v1154, %v1154
        %v1380 = vmul.f32 %v1155, %v1155
        %v1381 = vmul.f32 %v1156, %v1156
        %v1382 = vmul.f32 %v1157, %v1157
        %v1383 = vmul.f32 %v1158, %v1158
        %v1384 = vmul.f32 %v1159, %v1159
        %v1385 = vmul.f32 %v1160, %v1160
        %v1386 = vmul.f32 %v1161, %v1161
        %v1387 = vmul.f32 %v1162, %v1162
        %v1388 = vmul.f32 %v1163, %v1163
        %v1389 = vmul.f32 %v1164, %v1164
        %v1390 = vmul.f32 %v1165, %v1165
        %v1391 = vmul.f32 %v1166, %v1166
        %v1392 = vmul.f32 %v1167, %v1167
        %v1393 = vmul.f32 %v1168, %v1168
        %1394 = vadd.xlane.f32.xlu0 %v1362
        %v1395 = vpop.xlane.xlu0 %1394
        %1396 = vadd.xlane.f32.xlu0 %v1363
        %v1397 = vpop.xlane.xlu0 %1396
        %1398 = vadd.xlane.f32.xlu0 %v1364
        %v1399 = vpop.xlane.xlu0 %1398
        %1400 = vadd.xlane.f32.xlu0 %v1365
        %v1401 = vpop.xlane.xlu0 %1400
        %1402 = vadd.xlane.f32.xlu0 %v1366
        %v1403 = vpop.xlane.xlu0 %1402
        %1404 = vadd.xlane.f32.xlu0 %v1367
        %v1405 = vpop.xlane.xlu0 %1404
        %1406 = vadd.xlane.f32.xlu0 %v1368
        %v1407 = vpop.xlane.xlu0 %1406
        %1408 = vadd.xlane.f32.xlu0 %v1369
        %v1409 = vpop.xlane.xlu0 %1408
        %1410 = vadd.xlane.f32.xlu0 %v1370
        %v1411 = vpop.xlane.xlu0 %1410
        %1412 = vadd.xlane.f32.xlu0 %v1371
        %v1413 = vpop.xlane.xlu0 %1412
        %1414 = vadd.xlane.f32.xlu0 %v1372
        %v1415 = vpop.xlane.xlu0 %1414
        %1416 = vadd.xlane.f32.xlu0 %v1373
        %v1417 = vpop.xlane.xlu0 %1416
        %1418 = vadd.xlane.f32.xlu0 %v1374
        %v1419 = vpop.xlane.xlu0 %1418
        %1420 = vadd.xlane.f32.xlu0 %v1375
        %v1421 = vpop.xlane.xlu0 %1420
        %1422 = vadd.xlane.f32.xlu0 %v1376
        %v1423 = vpop.xlane.xlu0 %1422
        %1424 = vadd.xlane.f32.xlu0 %v1377
        %v1425 = vpop.xlane.xlu0 %1424
        %1426 = vadd.xlane.f32.xlu0 %v1378
        %v1427 = vpop.xlane.xlu0 %1426
        %1428 = vadd.xlane.f32.xlu0 %v1379
        %v1429 = vpop.xlane.xlu0 %1428
        %1430 = vadd.xlane.f32.xlu0 %v1380
        %v1431 = vpop.xlane.xlu0 %1430
        %1432 = vadd.xlane.f32.xlu0 %v1381
        %v1433 = vpop.xlane.xlu0 %1432
        %1434 = vadd.xlane.f32.xlu0 %v1382
        %v1435 = vpop.xlane.xlu0 %1434
        %1436 = vadd.xlane.f32.xlu0 %v1383
        %v1437 = vpop.xlane.xlu0 %1436
        %1438 = vadd.xlane.f32.xlu0 %v1384
        %v1439 = vpop.xlane.xlu0 %1438
        %1440 = vadd.xlane.f32.xlu0 %v1385
        %v1441 = vpop.xlane.xlu0 %1440
        %1442 = vadd.xlane.f32.xlu0 %v1386
        %v1443 = vpop.xlane.xlu0 %1442
        %1444 = vadd.xlane.f32.xlu0 %v1387
        %v1445 = vpop.xlane.xlu0 %1444
        %1446 = vadd.xlane.f32.xlu0 %v1388
        %v1447 = vpop.xlane.xlu0 %1446
        %1448 = vadd.xlane.f32.xlu0 %v1389
        %v1449 = vpop.xlane.xlu0 %1448
        %1450 = vadd.xlane.f32.xlu0 %v1390
        %v1451 = vpop.xlane.xlu0 %1450
        %1452 = vadd.xlane.f32.xlu0 %v1391
        %v1453 = vpop.xlane.xlu0 %1452
        %1454 = vadd.xlane.f32.xlu0 %v1392
        %v1455 = vpop.xlane.xlu0 %1454
        %1456 = vadd.xlane.f32.xlu0 %v1393
        %v1457 = vpop.xlane.xlu0 %1456
        %v1458 = vadd.f32 %v1330, %v1395
        %v1459 = vadd.f32 %v1331, %v1397
        %v1460 = vadd.f32 %v1332, %v1399
        %v1461 = vadd.f32 %v1333, %v1401
        %v1462 = vadd.f32 %v1334, %v1403
        %v1463 = vadd.f32 %v1335, %v1405
        %v1464 = vadd.f32 %v1336, %v1407
        %v1465 = vadd.f32 %v1337, %v1409
        %v1466 = vadd.f32 %v1338, %v1411
        %v1467 = vadd.f32 %v1339, %v1413
        %v1468 = vadd.f32 %v1340, %v1415
        %v1469 = vadd.f32 %v1341, %v1417
        %v1470 = vadd.f32 %v1342, %v1419
        %v1471 = vadd.f32 %v1343, %v1421
        %v1472 = vadd.f32 %v1344, %v1423
        %v1473 = vadd.f32 %v1345, %v1425
        %v1474 = vadd.f32 %v1346, %v1427
        %v1475 = vadd.f32 %v1347, %v1429
        %v1476 = vadd.f32 %v1348, %v1431
        %v1477 = vadd.f32 %v1349, %v1433
        %v1478 = vadd.f32 %v1350, %v1435
        %v1479 = vadd.f32 %v1351, %v1437
        %v1480 = vadd.f32 %v1352, %v1439
        %v1481 = vadd.f32 %v1353, %v1441
        %v1482 = vadd.f32 %v1354, %v1443
        %v1483 = vadd.f32 %v1355, %v1445
        %v1484 = vadd.f32 %v1356, %v1447
        %v1485 = vadd.f32 %v1357, %v1449
        %v1486 = vadd.f32 %v1358, %v1451
        %v1487 = vadd.f32 %v1359, %v1453
        %v1488 = vadd.f32 %v1360, %v1455
        %v1489 = vadd.f32 %v1361, %v1457
        %1490 = vst.msk [vmem:[#allocation3] sm:$0xff] %vm1297, %v1458
        %1491 = vst.msk [vmem:[#allocation3 + $0x8] sm:$0xff] %vm1297, %v1459
        %1492 = vst.msk [vmem:[#allocation3 + $0x10] sm:$0xff] %vm1297, %v1460
        %1493 = vst.msk [vmem:[#allocation3 + $0x18] sm:$0xff] %vm1297, %v1461
        %1494 = vst.msk [vmem:[#allocation3 + $0x20] sm:$0xff] %vm1297, %v1462
        %1495 = vst.msk [vmem:[#allocation3 + $0x28] sm:$0xff] %vm1297, %v1463
        %1496 = vst.msk [vmem:[#allocation3 + $0x30] sm:$0xff] %vm1297, %v1464
        %1497 = vst.msk [vmem:[#allocation3 + $0x38] sm:$0xff] %vm1297, %v1465
        %1498 = vst.msk [vmem:[#allocation3 + $0x40] sm:$0xff] %vm1297, %v1466
        %1499 = vst.msk [vmem:[#allocation3 + $0x48] sm:$0xff] %vm1297, %v1467
        %1500 = vst.msk [vmem:[#allocation3 + $0x50] sm:$0xff] %vm1297, %v1468
        %1501 = vst.msk [vmem:[#allocation3 + $0x58] sm:$0xff] %vm1297, %v1469
        %1502 = vst.msk [vmem:[#allocation3 + $0x60] sm:$0xff] %vm1297, %v1470
        %1503 = vst.msk [vmem:[#allocation3 + $0x68] sm:$0xff] %vm1297, %v1471
        %1504 = vst.msk [vmem:[#allocation3 + $0x70] sm:$0xff] %vm1297, %v1472
        %1505 = vst.msk [vmem:[#allocation3 + $0x78] sm:$0xff] %vm1297, %v1473
        %1506 = vst.msk [vmem:[#allocation3 + $0x80] sm:$0xff] %vm1297, %v1474
        %1507 = vst.msk [vmem:[#allocation3 + $0x88] sm:$0xff] %vm1297, %v1475
        %1508 = vst.msk [vmem:[#allocation3 + $0x90] sm:$0xff] %vm1297, %v1476
        %1509 = vst.msk [vmem:[#allocation3 + $0x98] sm:$0xff] %vm1297, %v1477
        %1510 = vst.msk [vmem:[#allocation3 + $0xa0] sm:$0xff] %vm1297, %v1478
        %1511 = vst.msk [vmem:[#allocation3 + $0xa8] sm:$0xff] %vm1297, %v1479
        %1512 = vst.msk [vmem:[#allocation3 + $0xb0] sm:$0xff] %vm1297, %v1480
        %1513 = vst.msk [vmem:[#allocation3 + $0xb8] sm:$0xff] %vm1297, %v1481
        %1514 = vst.msk [vmem:[#allocation3 + $0xc0] sm:$0xff] %vm1297, %v1482
        %1515 = vst.msk [vmem:[#allocation3 + $0xc8] sm:$0xff] %vm1297, %v1483
        %1516 = vst.msk [vmem:[#allocation3 + $0xd0] sm:$0xff] %vm1297, %v1484
        %1517 = vst.msk [vmem:[#allocation3 + $0xd8] sm:$0xff] %vm1297, %v1485
        %1518 = vst.msk [vmem:[#allocation3 + $0xe0] sm:$0xff] %vm1297, %v1486
        %1519 = vst.msk [vmem:[#allocation3 + $0xe8] sm:$0xff] %vm1297, %v1487
        %1520 = vst.msk [vmem:[#allocation3 + $0xf0] sm:$0xff] %vm1297, %v1488
        %1521 = vst.msk [vmem:[#allocation3 + $0xf8] sm:$0xff] %vm1297, %v1489
        %v1522 = vlaneseq
        %v1523 = vand.u32 %v1522, 127
        %v1524 = vstv %s28
        %vm1525 = vcmp.eq.s32.totalorder %v1523, %v1524
        %v1526 = vsel %vm1525, 1, 0
        %v1527 = vcvt.s32.f32 %v1526
        %v1528 = vpack.c.bf16 %v1527, %v1527
        %v1529 = vld [vmem:[#allocation4] sm:$0xff]
        %v1530 = vld [vmem:[#allocation4 + $0x8] sm:$0xff]
        %v1531 = vld [vmem:[#allocation4 + $0x10] sm:$0xff]
        %v1532 = vld [vmem:[#allocation4 + $0x18] sm:$0xff]
        %v1533 = vld [vmem:[#allocation4 + $0x20] sm:$0xff]
        %v1534 = vld [vmem:[#allocation4 + $0x28] sm:$0xff]
        %v1535 = vld [vmem:[#allocation4 + $0x30] sm:$0xff]
        %v1536 = vld [vmem:[#allocation4 + $0x38] sm:$0xff]
        %v1537 = vld [vmem:[#allocation4 + $0x40] sm:$0xff]
        %v1538 = vld [vmem:[#allocation4 + $0x48] sm:$0xff]
        %v1539 = vld [vmem:[#allocation4 + $0x50] sm:$0xff]
        %v1540 = vld [vmem:[#allocation4 + $0x58] sm:$0xff]
        %v1541 = vld [vmem:[#allocation4 + $0x60] sm:$0xff]
        %v1542 = vld [vmem:[#allocation4 + $0x68] sm:$0xff]
        %v1543 = vld [vmem:[#allocation4 + $0x70] sm:$0xff]
        %v1544 = vld [vmem:[#allocation4 + $0x78] sm:$0xff]
        %v1545 = vld [vmem:[#allocation4 + $0x80] sm:$0xff]
        %v1546 = vld [vmem:[#allocation4 + $0x88] sm:$0xff]
        %v1547 = vld [vmem:[#allocation4 + $0x90] sm:$0xff]
        %v1548 = vld [vmem:[#allocation4 + $0x98] sm:$0xff]
        %v1549 = vld [vmem:[#allocation4 + $0xa0] sm:$0xff]
        %v1550 = vld [vmem:[#allocation4 + $0xa8] sm:$0xff]
        %v1551 = vld [vmem:[#allocation4 + $0xb0] sm:$0xff]
        %v1552 = vld [vmem:[#allocation4 + $0xb8] sm:$0xff]
        %v1553 = vld [vmem:[#allocation4 + $0xc0] sm:$0xff]
        %v1554 = vld [vmem:[#allocation4 + $0xc8] sm:$0xff]
        %v1555 = vld [vmem:[#allocation4 + $0xd0] sm:$0xff]
        %v1556 = vld [vmem:[#allocation4 + $0xd8] sm:$0xff]
        %v1557 = vld [vmem:[#allocation4 + $0xe0] sm:$0xff]
        %v1558 = vld [vmem:[#allocation4 + $0xe8] sm:$0xff]
        %v1559 = vld [vmem:[#allocation4 + $0xf0] sm:$0xff]
        %v1560 = vld [vmem:[#allocation4 + $0xf8] sm:$0xff]
        %1561 = vmatprep.subr.bf16.mxu0 0
        %1562 = vmatpush1.bf16.msra.mxu0 %v1528
        %1563 = vmatprep.subr.bf16.mxu0 0
        %1564 = vmatpush1.bf16.msra.mxu0 %v1528
        %1565 = vmatprep.subr.bf16.mxu0 0
        %1566 = vmatpush1.bf16.msra.mxu0 %v1528
        %1567 = vmatprep.subr.bf16.mxu0 0
        %1568 = vmatpush1.bf16.msra.mxu0 %v1528
        %1569 = vmatprep.subr.bf16.mxu0 0
        %1570 = vmatpush1.bf16.msra.mxu0 %v1528
        %1571 = vmatprep.subr.bf16.mxu0 0
        %1572 = vmatpush1.bf16.msra.mxu0 %v1528
        %1573 = vmatprep.subr.bf16.mxu0 0
        %1574 = vmatpush1.bf16.msra.mxu0 %v1528
        %1575 = vmatprep.subr.bf16.mxu0 0
        %1576 = vmatpush1.bf16.msra.mxu0 %v1528
        %1577 = vmatprep.subr.bf16.mxu0 0
        %1578 = vmatpush2.bf16.msra.mxu0 0
        %1579 = vmatprep.subr.bf16.mxu0 0
        %1580 = vmatpush2.bf16.msra.mxu0 0
        %1581 = vmatprep.subr.bf16.mxu0 0
        %1582 = vmatpush2.bf16.msra.mxu0 0
        %1583 = vmatprep.subr.bf16.mxu0 0
        %1584 = vmatpush2.bf16.msra.mxu0 0
        %1585 = vmatprep.subr.bf16.mxu0 0
        %1586 = vmatpush2.bf16.msra.mxu0 0
        %1587 = vmatprep.subr.bf16.mxu0 0
        %1588 = vmatpush2.bf16.msra.mxu0 0
        %1589 = vmatprep.subr.bf16.mxu0 0
        %1590 = vmatpush2.bf16.msra.mxu0 0
        %1591 = vmatprep.subr.bf16.mxu0 0
        %1592 = vmatpush2.bf16.msra.mxu0 0
        %1593 = vmatprep.mubr.bf16.mxu0 0
        %1594 = vmatmul.mubr.bf16.gmra.mxu0 %v944
        %v1595 = vpop.f32.mrf.mxu0
        %v1596 = vadd.f32 0.0, %v1595
        %v1597 = vpop.f32.mrf.mxu0
        %v1598 = vpop.f32.mrf.mxu0
        %v1599 = vadd.f32 0.0, %v1598
        %v1600 = vpop.f32.mrf.mxu0
        %1601 = vmatprep.mubr.bf16.mxu0 0
        %1602 = vmatmul.mubr.bf16.gmra.mxu0 %v945
        %v1603 = vpop.f32.mrf.mxu0
        %v1604 = vadd.f32 0.0, %v1603
        %v1605 = vpop.f32.mrf.mxu0
        %v1606 = vpop.f32.mrf.mxu0
        %v1607 = vadd.f32 0.0, %v1606
        %v1608 = vpop.f32.mrf.mxu0
        %1609 = vmatprep.mubr.bf16.mxu0 0
        %1610 = vmatmul.mubr.bf16.gmra.mxu0 %v946
        %v1611 = vpop.f32.mrf.mxu0
        %v1612 = vadd.f32 0.0, %v1611
        %v1613 = vpop.f32.mrf.mxu0
        %v1614 = vpop.f32.mrf.mxu0
        %v1615 = vadd.f32 0.0, %v1614
        %v1616 = vpop.f32.mrf.mxu0
        %1617 = vmatprep.mubr.bf16.mxu0 0
        %1618 = vmatmul.mubr.bf16.gmra.mxu0 %v947
        %v1619 = vpop.f32.mrf.mxu0
        %v1620 = vadd.f32 0.0, %v1619
        %v1621 = vpop.f32.mrf.mxu0
        %v1622 = vpop.f32.mrf.mxu0
        %v1623 = vadd.f32 0.0, %v1622
        %v1624 = vpop.f32.mrf.mxu0
        %1625 = vmatprep.mubr.bf16.mxu0 0
        %1626 = vmatmul.mubr.bf16.gmra.mxu0 %v948
        %v1627 = vpop.f32.mrf.mxu0
        %v1628 = vadd.f32 0.0, %v1627
        %v1629 = vpop.f32.mrf.mxu0
        %v1630 = vpop.f32.mrf.mxu0
        %v1631 = vadd.f32 0.0, %v1630
        %v1632 = vpop.f32.mrf.mxu0
        %1633 = vmatprep.mubr.bf16.mxu0 0
        %1634 = vmatmul.mubr.bf16.gmra.mxu0 %v949
        %v1635 = vpop.f32.mrf.mxu0
        %v1636 = vadd.f32 0.0, %v1635
        %v1637 = vpop.f32.mrf.mxu0
        %v1638 = vpop.f32.mrf.mxu0
        %v1639 = vadd.f32 0.0, %v1638
        %v1640 = vpop.f32.mrf.mxu0
        %1641 = vmatprep.mubr.bf16.mxu0 0
        %1642 = vmatmul.mubr.bf16.gmra.mxu0 %v950
        %v1643 = vpop.f32.mrf.mxu0
        %v1644 = vadd.f32 0.0, %v1643
        %v1645 = vpop.f32.mrf.mxu0
        %v1646 = vpop.f32.mrf.mxu0
        %v1647 = vadd.f32 0.0, %v1646
        %v1648 = vpop.f32.mrf.mxu0
        %1649 = vmatprep.mubr.bf16.mxu0 0
        %1650 = vmatmul.mubr.bf16.gmra.mxu0 %v951
        %v1651 = vpop.f32.mrf.mxu0
        %v1652 = vadd.f32 0.0, %v1651
        %v1653 = vpop.f32.mrf.mxu0
        %v1654 = vpop.f32.mrf.mxu0
        %v1655 = vadd.f32 0.0, %v1654
        %v1656 = vpop.f32.mrf.mxu0
        %1657 = vmatprep.mubr.bf16.mxu0 0
        %1658 = vmatmul.mubr.bf16.gmra.mxu0 %v952
        %v1659 = vpop.f32.mrf.mxu0
        %v1660 = vadd.f32 0.0, %v1659
        %v1661 = vpop.f32.mrf.mxu0
        %v1662 = vpop.f32.mrf.mxu0
        %v1663 = vadd.f32 0.0, %v1662
        %v1664 = vpop.f32.mrf.mxu0
        %1665 = vmatprep.mubr.bf16.mxu0 0
        %1666 = vmatmul.mubr.bf16.gmra.mxu0 %v953
        %v1667 = vpop.f32.mrf.mxu0
        %v1668 = vadd.f32 0.0, %v1667
        %v1669 = vpop.f32.mrf.mxu0
        %v1670 = vpop.f32.mrf.mxu0
        %v1671 = vadd.f32 0.0, %v1670
        %v1672 = vpop.f32.mrf.mxu0
        %1673 = vmatprep.mubr.bf16.mxu0 0
        %1674 = vmatmul.mubr.bf16.gmra.mxu0 %v954
        %v1675 = vpop.f32.mrf.mxu0
        %v1676 = vadd.f32 0.0, %v1675
        %v1677 = vpop.f32.mrf.mxu0
        %v1678 = vpop.f32.mrf.mxu0
        %v1679 = vadd.f32 0.0, %v1678
        %v1680 = vpop.f32.mrf.mxu0
        %1681 = vmatprep.mubr.bf16.mxu0 0
        %1682 = vmatmul.mubr.bf16.gmra.mxu0 %v955
        %v1683 = vpop.f32.mrf.mxu0
        %v1684 = vadd.f32 0.0, %v1683
        %v1685 = vpop.f32.mrf.mxu0
        %v1686 = vpop.f32.mrf.mxu0
        %v1687 = vadd.f32 0.0, %v1686
        %v1688 = vpop.f32.mrf.mxu0
        %1689 = vmatprep.mubr.bf16.mxu0 0
        %1690 = vmatmul.mubr.bf16.gmra.mxu0 %v956
        %v1691 = vpop.f32.mrf.mxu0
        %v1692 = vadd.f32 0.0, %v1691
        %v1693 = vpop.f32.mrf.mxu0
        %v1694 = vpop.f32.mrf.mxu0
        %v1695 = vadd.f32 0.0, %v1694
        %v1696 = vpop.f32.mrf.mxu0
        %1697 = vmatprep.mubr.bf16.mxu0 0
        %1698 = vmatmul.mubr.bf16.gmra.mxu0 %v957
        %v1699 = vpop.f32.mrf.mxu0
        %v1700 = vadd.f32 0.0, %v1699
        %v1701 = vpop.f32.mrf.mxu0
        %v1702 = vpop.f32.mrf.mxu0
        %v1703 = vadd.f32 0.0, %v1702
        %v1704 = vpop.f32.mrf.mxu0
        %1705 = vmatprep.mubr.bf16.mxu0 0
        %1706 = vmatmul.mubr.bf16.gmra.mxu0 %v958
        %v1707 = vpop.f32.mrf.mxu0
        %v1708 = vadd.f32 0.0, %v1707
        %v1709 = vpop.f32.mrf.mxu0
        %v1710 = vpop.f32.mrf.mxu0
        %v1711 = vadd.f32 0.0, %v1710
        %v1712 = vpop.f32.mrf.mxu0
        %1713 = vmatprep.mubr.bf16.mxu0 0
        %1714 = vmatmul.mubr.bf16.gmra.mxu0 %v959
        %v1715 = vpop.f32.mrf.mxu0
        %v1716 = vadd.f32 0.0, %v1715
        %v1717 = vpop.f32.mrf.mxu0
        %v1718 = vpop.f32.mrf.mxu0
        %v1719 = vadd.f32 0.0, %v1718
        %v1720 = vpop.f32.mrf.mxu0
        %1721 = vdwg.mxu0
        %v1722 = vadd.f32 %v1529, %v1596
        %v1723 = vadd.f32 %v1530, %v1599
        %v1724 = vadd.f32 %v1531, %v1604
        %v1725 = vadd.f32 %v1532, %v1607
        %v1726 = vadd.f32 %v1533, %v1612
        %v1727 = vadd.f32 %v1534, %v1615
        %v1728 = vadd.f32 %v1535, %v1620
        %v1729 = vadd.f32 %v1536, %v1623
        %v1730 = vadd.f32 %v1537, %v1628
        %v1731 = vadd.f32 %v1538, %v1631
        %v1732 = vadd.f32 %v1539, %v1636
        %v1733 = vadd.f32 %v1540, %v1639
        %v1734 = vadd.f32 %v1541, %v1644
        %v1735 = vadd.f32 %v1542, %v1647
        %v1736 = vadd.f32 %v1543, %v1652
        %v1737 = vadd.f32 %v1544, %v1655
        %v1738 = vadd.f32 %v1545, %v1660
        %v1739 = vadd.f32 %v1546, %v1663
        %v1740 = vadd.f32 %v1547, %v1668
        %v1741 = vadd.f32 %v1548, %v1671
        %v1742 = vadd.f32 %v1549, %v1676
        %v1743 = vadd.f32 %v1550, %v1679
        %v1744 = vadd.f32 %v1551, %v1684
        %v1745 = vadd.f32 %v1552, %v1687
        %v1746 = vadd.f32 %v1553, %v1692
        %v1747 = vadd.f32 %v1554, %v1695
        %v1748 = vadd.f32 %v1555, %v1700
        %v1749 = vadd.f32 %v1556, %v1703
        %v1750 = vadd.f32 %v1557, %v1708
        %v1751 = vadd.f32 %v1558, %v1711
        %v1752 = vadd.f32 %v1559, %v1716
        %v1753 = vadd.f32 %v1560, %v1719
        %vm1754 = vcmask 15360
        %1755 = vst.msk [vmem:[#allocation4] sm:$0xff] %vm1754, %v1722
        %1756 = vst.msk [vmem:[#allocation4 + $0x8] sm:$0xff] %vm1754, %v1723
        %1757 = vst.msk [vmem:[#allocation4 + $0x10] sm:$0xff] %vm1754, %v1724
        %1758 = vst.msk [vmem:[#allocation4 + $0x18] sm:$0xff] %vm1754, %v1725
        %1759 = vst.msk [vmem:[#allocation4 + $0x20] sm:$0xff] %vm1754, %v1726
        %1760 = vst.msk [vmem:[#allocation4 + $0x28] sm:$0xff] %vm1754, %v1727
        %1761 = vst.msk [vmem:[#allocation4 + $0x30] sm:$0xff] %vm1754, %v1728
        %1762 = vst.msk [vmem:[#allocation4 + $0x38] sm:$0xff] %vm1754, %v1729
        %1763 = vst.msk [vmem:[#allocation4 + $0x40] sm:$0xff] %vm1754, %v1730
        %1764 = vst.msk [vmem:[#allocation4 + $0x48] sm:$0xff] %vm1754, %v1731
        %1765 = vst.msk [vmem:[#allocation4 + $0x50] sm:$0xff] %vm1754, %v1732
        %1766 = vst.msk [vmem:[#allocation4 + $0x58] sm:$0xff] %vm1754, %v1733
        %1767 = vst.msk [vmem:[#allocation4 + $0x60] sm:$0xff] %vm1754, %v1734
        %1768 = vst.msk [vmem:[#allocation4 + $0x68] sm:$0xff] %vm1754, %v1735
        %1769 = vst.msk [vmem:[#allocation4 + $0x70] sm:$0xff] %vm1754, %v1736
        %1770 = vst.msk [vmem:[#allocation4 + $0x78] sm:$0xff] %vm1754, %v1737
        %1771 = vst.msk [vmem:[#allocation4 + $0x80] sm:$0xff] %vm1754, %v1738
        %1772 = vst.msk [vmem:[#allocation4 + $0x88] sm:$0xff] %vm1754, %v1739
        %1773 = vst.msk [vmem:[#allocation4 + $0x90] sm:$0xff] %vm1754, %v1740
        %1774 = vst.msk [vmem:[#allocation4 + $0x98] sm:$0xff] %vm1754, %v1741
        %1775 = vst.msk [vmem:[#allocation4 + $0xa0] sm:$0xff] %vm1754, %v1742
        %1776 = vst.msk [vmem:[#allocation4 + $0xa8] sm:$0xff] %vm1754, %v1743
        %1777 = vst.msk [vmem:[#allocation4 + $0xb0] sm:$0xff] %vm1754, %v1744
        %1778 = vst.msk [vmem:[#allocation4 + $0xb8] sm:$0xff] %vm1754, %v1745
        %1779 = vst.msk [vmem:[#allocation4 + $0xc0] sm:$0xff] %vm1754, %v1746
        %1780 = vst.msk [vmem:[#allocation4 + $0xc8] sm:$0xff] %vm1754, %v1747
        %1781 = vst.msk [vmem:[#allocation4 + $0xd0] sm:$0xff] %vm1754, %v1748
        %1782 = vst.msk [vmem:[#allocation4 + $0xd8] sm:$0xff] %vm1754, %v1749
        %1783 = vst.msk [vmem:[#allocation4 + $0xe0] sm:$0xff] %vm1754, %v1750
        %1784 = vst.msk [vmem:[#allocation4 + $0xe8] sm:$0xff] %vm1754, %v1751
        %1785 = vst.msk [vmem:[#allocation4 + $0xf0] sm:$0xff] %vm1754, %v1752
        %1786 = vst.msk [vmem:[#allocation4 + $0xf8] sm:$0xff] %vm1754, %v1753
        %v1787 = vpack.c.bf16 %v1138, %v1137
        %v1788 = vpack.c.bf16 %v1140, %v1139
        %v1789 = vpack.c.bf16 %v1142, %v1141
        %v1790 = vpack.c.bf16 %v1144, %v1143
        %v1791 = vpack.c.bf16 %v1146, %v1145
        %v1792 = vpack.c.bf16 %v1148, %v1147
        %v1793 = vpack.c.bf16 %v1150, %v1149
        %v1794 = vpack.c.bf16 %v1152, %v1151
        %v1795 = vpack.c.bf16 %v1154, %v1153
        %v1796 = vpack.c.bf16 %v1156, %v1155
        %v1797 = vpack.c.bf16 %v1158, %v1157
        %v1798 = vpack.c.bf16 %v1160, %v1159
        %v1799 = vpack.c.bf16 %v1162, %v1161
        %v1800 = vpack.c.bf16 %v1164, %v1163
        %v1801 = vpack.c.bf16 %v1166, %v1165
        %v1802 = vpack.c.bf16 %v1168, %v1167
        %s1803 = sadd.s32 %s28, %s29
        %v1820 = vunpack.c.l.b16 %v1787
        %v1821 = vunpack.c.h.b16 %v1787
        %v1822 = vunpack.c.l.b16 %v1788
        %v1823 = vunpack.c.h.b16 %v1788
        %v1824 = vunpack.c.l.b16 %v1789
        %v1825 = vunpack.c.h.b16 %v1789
        %v1826 = vunpack.c.l.b16 %v1790
        %v1827 = vunpack.c.h.b16 %v1790
        %v1828 = vunpack.c.l.b16 %v1791
        %v1829 = vunpack.c.h.b16 %v1791
        %v1830 = vunpack.c.l.b16 %v1792
        %v1831 = vunpack.c.h.b16 %v1792
        %v1832 = vunpack.c.l.b16 %v1793
        %v1833 = vunpack.c.h.b16 %v1793
        %v1834 = vunpack.c.l.b16 %v1794
        %v1835 = vunpack.c.h.b16 %v1794
        %v1836 = vunpack.c.l.b16 %v1795
        %v1837 = vunpack.c.h.b16 %v1795
        %v1838 = vunpack.c.l.b16 %v1796
        %v1839 = vunpack.c.h.b16 %v1796
        %v1840 = vunpack.c.l.b16 %v1797
        %v1841 = vunpack.c.h.b16 %v1797
        %v1842 = vunpack.c.l.b16 %v1798
        %v1843 = vunpack.c.h.b16 %v1798
        %v1844 = vunpack.c.l.b16 %v1799
        %v1845 = vunpack.c.h.b16 %v1799
        %v1846 = vunpack.c.l.b16 %v1800
        %v1847 = vunpack.c.h.b16 %v1800
        %v1848 = vunpack.c.l.b16 %v1801
        %v1849 = vunpack.c.h.b16 %v1801
        %v1850 = vunpack.c.l.b16 %v1802
        %v1851 = vunpack.c.h.b16 %v1802
        %v1852 = vpack.c.b16 %v1820, %v1820
        %v1853 = vpack.c.b16 %v1821, %v1821
        %v1854 = vpack.c.b16 %v1822, %v1822
        %v1855 = vpack.c.b16 %v1823, %v1823
        %v1856 = vpack.c.b16 %v1824, %v1824
        %v1857 = vpack.c.b16 %v1825, %v1825
        %v1858 = vpack.c.b16 %v1826, %v1826
        %v1859 = vpack.c.b16 %v1827, %v1827
        %v1860 = vpack.c.b16 %v1828, %v1828
        %v1861 = vpack.c.b16 %v1829, %v1829
        %v1862 = vpack.c.b16 %v1830, %v1830
        %v1863 = vpack.c.b16 %v1831, %v1831
        %v1864 = vpack.c.b16 %v1832, %v1832
        %v1865 = vpack.c.b16 %v1833, %v1833
        %v1866 = vpack.c.b16 %v1834, %v1834
        %v1867 = vpack.c.b16 %v1835, %v1835
        %v1868 = vpack.c.b16 %v1836, %v1836
        %v1869 = vpack.c.b16 %v1837, %v1837
        %v1870 = vpack.c.b16 %v1838, %v1838
        %v1871 = vpack.c.b16 %v1839, %v1839
        %v1872 = vpack.c.b16 %v1840, %v1840
        %v1873 = vpack.c.b16 %v1841, %v1841
        %v1874 = vpack.c.b16 %v1842, %v1842
        %v1875 = vpack.c.b16 %v1843, %v1843
        %v1876 = vpack.c.b16 %v1844, %v1844
        %v1877 = vpack.c.b16 %v1845, %v1845
        %v1878 = vpack.c.b16 %v1846, %v1846
        %v1879 = vpack.c.b16 %v1847, %v1847
        %v1880 = vpack.c.b16 %v1848, %v1848
        %v1881 = vpack.c.b16 %v1849, %v1849
        %v1882 = vpack.c.b16 %v1850, %v1850
        %v1883 = vpack.c.b16 %v1851, %v1851
        %s1916 = smul.u32 %s1803, 32
        %s1917 = smul.addr %s1916, 4
        %s1918 = scalar_lea.vmem [#allocation7], %s1917
        %1919 = vst [vmem:[%s1918] sm:$0xf] %v1852
        %1920 = vst [vmem:[%s1918 + $0x4] sm:$0xf] %v1853
        %1921 = vst [vmem:[%s1918 + $0x8] sm:$0xf] %v1854
        %1922 = vst [vmem:[%s1918 + $0xc] sm:$0xf] %v1855
        %1923 = vst [vmem:[%s1918 + $0x10] sm:$0xf] %v1856
        %1924 = vst [vmem:[%s1918 + $0x14] sm:$0xf] %v1857
        %1925 = vst [vmem:[%s1918 + $0x18] sm:$0xf] %v1858
        %1926 = vst [vmem:[%s1918 + $0x1c] sm:$0xf] %v1859
        %1927 = vst [vmem:[%s1918 + $0x20] sm:$0xf] %v1860
        %1928 = vst [vmem:[%s1918 + $0x24] sm:$0xf] %v1861
        %1929 = vst [vmem:[%s1918 + $0x28] sm:$0xf] %v1862
        %1930 = vst [vmem:[%s1918 + $0x2c] sm:$0xf] %v1863
        %1931 = vst [vmem:[%s1918 + $0x30] sm:$0xf] %v1864
        %1932 = vst [vmem:[%s1918 + $0x34] sm:$0xf] %v1865
        %1933 = vst [vmem:[%s1918 + $0x38] sm:$0xf] %v1866
        %1934 = vst [vmem:[%s1918 + $0x3c] sm:$0xf] %v1867
        %1935 = vst [vmem:[%s1918 + $0x40] sm:$0xf] %v1868
        %1936 = vst [vmem:[%s1918 + $0x44] sm:$0xf] %v1869
        %1937 = vst [vmem:[%s1918 + $0x48] sm:$0xf] %v1870
        %1938 = vst [vmem:[%s1918 + $0x4c] sm:$0xf] %v1871
        %1939 = vst [vmem:[%s1918 + $0x50] sm:$0xf] %v1872
        %1940 = vst [vmem:[%s1918 + $0x54] sm:$0xf] %v1873
        %1941 = vst [vmem:[%s1918 + $0x58] sm:$0xf] %v1874
        %1942 = vst [vmem:[%s1918 + $0x5c] sm:$0xf] %v1875
        %1943 = vst [vmem:[%s1918 + $0x60] sm:$0xf] %v1876
        %1944 = vst [vmem:[%s1918 + $0x64] sm:$0xf] %v1877
        %1945 = vst [vmem:[%s1918 + $0x68] sm:$0xf] %v1878
        %1946 = vst [vmem:[%s1918 + $0x6c] sm:$0xf] %v1879
        %1947 = vst [vmem:[%s1918 + $0x70] sm:$0xf] %v1880
        %1948 = vst [vmem:[%s1918 + $0x74] sm:$0xf] %v1881
        %1949 = vst [vmem:[%s1918 + $0x78] sm:$0xf] %v1882
        %1950 = vst [vmem:[%s1918 + $0x7c] sm:$0xf] %v1883
      $region56: #{attention_encoder_forward.1} parent=47 // pred_fallthru
        _
      %p1951 = scmp.eq.s32.totalorder %s27, 1
      %p1952 = pnand %p1951, %p549
      %p1953 = pneg %p1952
      // Predicated region
      $region57: #{attention_encoder_forward.1} parent=47 // pred_check
        _
      $region58: #{attention_encoder_forward.1} parent=47 // pred_check_branch
        %1955 = sbr.rel (%p1952) target = $region60
      $region59: #{attention_encoder_forward.1} parent=47 // pred_region
        %v1956 = vld [vmem:[#allocation2] sm:$0xff]
        %v1957 = vld [vmem:[#allocation2 + $0x8] sm:$0xff]
        %v1958 = vld [vmem:[#allocation2 + $0x10] sm:$0xff]
        %v1959 = vld [vmem:[#allocation2 + $0x18] sm:$0xff]
        %v1960 = vld [vmem:[#allocation2 + $0x20] sm:$0xff]
        %v1961 = vld [vmem:[#allocation2 + $0x28] sm:$0xff]
        %v1962 = vld [vmem:[#allocation2 + $0x30] sm:$0xff]
        %v1963 = vld [vmem:[#allocation2 + $0x38] sm:$0xff]
        %v1964 = vld [vmem:[#allocation2 + $0x40] sm:$0xff]
        %v1965 = vld [vmem:[#allocation2 + $0x48] sm:$0xff]
        %v1966 = vld [vmem:[#allocation2 + $0x50] sm:$0xff]
        %v1967 = vld [vmem:[#allocation2 + $0x58] sm:$0xff]
        %v1968 = vld [vmem:[#allocation2 + $0x60] sm:$0xff]
        %v1969 = vld [vmem:[#allocation2 + $0x68] sm:$0xff]
        %v1970 = vld [vmem:[#allocation2 + $0x70] sm:$0xff]
        %v1971 = vld [vmem:[#allocation2 + $0x78] sm:$0xff]
        %v1972 = vld [vmem:[#allocation2 + $0x80] sm:$0xff]
        %v1973 = vld [vmem:[#allocation2 + $0x88] sm:$0xff]
        %v1974 = vld [vmem:[#allocation2 + $0x90] sm:$0xff]
        %v1975 = vld [vmem:[#allocation2 + $0x98] sm:$0xff]
        %v1976 = vld [vmem:[#allocation2 + $0xa0] sm:$0xff]
        %v1977 = vld [vmem:[#allocation2 + $0xa8] sm:$0xff]
        %v1978 = vld [vmem:[#allocation2 + $0xb0] sm:$0xff]
        %v1979 = vld [vmem:[#allocation2 + $0xb8] sm:$0xff]
        %v1980 = vld [vmem:[#allocation2 + $0xc0] sm:$0xff]
        %v1981 = vld [vmem:[#allocation2 + $0xc8] sm:$0xff]
        %v1982 = vld [vmem:[#allocation2 + $0xd0] sm:$0xff]
        %v1983 = vld [vmem:[#allocation2 + $0xd8] sm:$0xff]
        %v1984 = vld [vmem:[#allocation2 + $0xe0] sm:$0xff]
        %v1985 = vld [vmem:[#allocation2 + $0xe8] sm:$0xff]
        %v1986 = vld [vmem:[#allocation2 + $0xf0] sm:$0xff]
        %v1987 = vld [vmem:[#allocation2 + $0xf8] sm:$0xff]
        %v1988 = vmul.f32 %v1956, 0.0078125
        %v1989 = vmul.f32 %v1957, 0.0078125
        %v1990 = vmul.f32 %v1958, 0.0078125
        %v1991 = vmul.f32 %v1959, 0.0078125
        %v1992 = vmul.f32 %v1960, 0.0078125
        %v1993 = vmul.f32 %v1961, 0.0078125
        %v1994 = vmul.f32 %v1962, 0.0078125
        %v1995 = vmul.f32 %v1963, 0.0078125
        %v1996 = vmul.f32 %v1964, 0.0078125
        %v1997 = vmul.f32 %v1965, 0.0078125
        %v1998 = vmul.f32 %v1966, 0.0078125
        %v1999 = vmul.f32 %v1967, 0.0078125
        %v2000 = vmul.f32 %v1968, 0.0078125
        %v2001 = vmul.f32 %v1969, 0.0078125
        %v2002 = vmul.f32 %v1970, 0.0078125
        %v2003 = vmul.f32 %v1971, 0.0078125
        %v2004 = vmul.f32 %v1972, 0.0078125
        %v2005 = vmul.f32 %v1973, 0.0078125
        %v2006 = vmul.f32 %v1974, 0.0078125
        %v2007 = vmul.f32 %v1975, 0.0078125
        %v2008 = vmul.f32 %v1976, 0.0078125
        %v2009 = vmul.f32 %v1977, 0.0078125
        %v2010 = vmul.f32 %v1978, 0.0078125
        %v2011 = vmul.f32 %v1979, 0.0078125
        %v2012 = vmul.f32 %v1980, 0.0078125
        %v2013 = vmul.f32 %v1981, 0.0078125
        %v2014 = vmul.f32 %v1982, 0.0078125
        %v2015 = vmul.f32 %v1983, 0.0078125
        %v2016 = vmul.f32 %v1984, 0.0078125
        %v2017 = vmul.f32 %v1985, 0.0078125
        %v2018 = vmul.f32 %v1986, 0.0078125
        %v2019 = vmul.f32 %v1987, 0.0078125
        %v2020 = vld [vmem:[#allocation3] sm:$0xff]
        %v2021 = vld [vmem:[#allocation3 + $0x8] sm:$0xff]
        %v2022 = vld [vmem:[#allocation3 + $0x10] sm:$0xff]
        %v2023 = vld [vmem:[#allocation3 + $0x18] sm:$0xff]
        %v2024 = vld [vmem:[#allocation3 + $0x20] sm:$0xff]
        %v2025 = vld [vmem:[#allocation3 + $0x28] sm:$0xff]
        %v2026 = vld [vmem:[#allocation3 + $0x30] sm:$0xff]
        %v2027 = vld [vmem:[#allocation3 + $0x38] sm:$0xff]
        %v2028 = vld [vmem:[#allocation3 + $0x40] sm:$0xff]
        %v2029 = vld [vmem:[#allocation3 + $0x48] sm:$0xff]
        %v2030 = vld [vmem:[#allocation3 + $0x50] sm:$0xff]
        %v2031 = vld [vmem:[#allocation3 + $0x58] sm:$0xff]
        %v2032 = vld [vmem:[#allocation3 + $0x60] sm:$0xff]
        %v2033 = vld [vmem:[#allocation3 + $0x68] sm:$0xff]
        %v2034 = vld [vmem:[#allocation3 + $0x70] sm:$0xff]
        %v2035 = vld [vmem:[#allocation3 + $0x78] sm:$0xff]
        %v2036 = vld [vmem:[#allocation3 + $0x80] sm:$0xff]
        %v2037 = vld [vmem:[#allocation3 + $0x88] sm:$0xff]
        %v2038 = vld [vmem:[#allocation3 + $0x90] sm:$0xff]
        %v2039 = vld [vmem:[#allocation3 + $0x98] sm:$0xff]
        %v2040 = vld [vmem:[#allocation3 + $0xa0] sm:$0xff]
        %v2041 = vld [vmem:[#allocation3 + $0xa8] sm:$0xff]
        %v2042 = vld [vmem:[#allocation3 + $0xb0] sm:$0xff]
        %v2043 = vld [vmem:[#allocation3 + $0xb8] sm:$0xff]
        %v2044 = vld [vmem:[#allocation3 + $0xc0] sm:$0xff]
        %v2045 = vld [vmem:[#allocation3 + $0xc8] sm:$0xff]
        %v2046 = vld [vmem:[#allocation3 + $0xd0] sm:$0xff]
        %v2047 = vld [vmem:[#allocation3 + $0xd8] sm:$0xff]
        %v2048 = vld [vmem:[#allocation3 + $0xe0] sm:$0xff]
        %v2049 = vld [vmem:[#allocation3 + $0xe8] sm:$0xff]
        %v2050 = vld [vmem:[#allocation3 + $0xf0] sm:$0xff]
        %v2051 = vld [vmem:[#allocation3 + $0xf8] sm:$0xff]
        %v2052 = vmul.f32 %v2020, 0.0078125
        %v2053 = vmul.f32 %v2021, 0.0078125
        %v2054 = vmul.f32 %v2022, 0.0078125
        %v2055 = vmul.f32 %v2023, 0.0078125
        %v2056 = vmul.f32 %v2024, 0.0078125
        %v2057 = vmul.f32 %v2025, 0.0078125
        %v2058 = vmul.f32 %v2026, 0.0078125
        %v2059 = vmul.f32 %v2027, 0.0078125
        %v2060 = vmul.f32 %v2028, 0.0078125
        %v2061 = vmul.f32 %v2029, 0.0078125
        %v2062 = vmul.f32 %v2030, 0.0078125
        %v2063 = vmul.f32 %v2031, 0.0078125
        %v2064 = vmul.f32 %v2032, 0.0078125
        %v2065 = vmul.f32 %v2033, 0.0078125
        %v2066 = vmul.f32 %v2034, 0.0078125
        %v2067 = vmul.f32 %v2035, 0.0078125
        %v2068 = vmul.f32 %v2036, 0.0078125
        %v2069 = vmul.f32 %v2037, 0.0078125
        %v2070 = vmul.f32 %v2038, 0.0078125
        %v2071 = vmul.f32 %v2039, 0.0078125
        %v2072 = vmul.f32 %v2040, 0.0078125
        %v2073 = vmul.f32 %v2041, 0.0078125
        %v2074 = vmul.f32 %v2042, 0.0078125
        %v2075 = vmul.f32 %v2043, 0.0078125
        %v2076 = vmul.f32 %v2044, 0.0078125
        %v2077 = vmul.f32 %v2045, 0.0078125
        %v2078 = vmul.f32 %v2046, 0.0078125
        %v2079 = vmul.f32 %v2047, 0.0078125
        %v2080 = vmul.f32 %v2048, 0.0078125
        %v2081 = vmul.f32 %v2049, 0.0078125
        %v2082 = vmul.f32 %v2050, 0.0078125
        %v2083 = vmul.f32 %v2051, 0.0078125
        %v2084 = vmul.f32 %v1988, %v1988
        %v2085 = vmul.f32 %v1989, %v1989
        %v2086 = vmul.f32 %v1990, %v1990
        %v2087 = vmul.f32 %v1991, %v1991
        %v2088 = vmul.f32 %v1992, %v1992
        %v2089 = vmul.f32 %v1993, %v1993
        %v2090 = vmul.f32 %v1994, %v1994
        %v2091 = vmul.f32 %v1995, %v1995
        %v2092 = vmul.f32 %v1996, %v1996
        %v2093 = vmul.f32 %v1997, %v1997
        %v2094 = vmul.f32 %v1998, %v1998
        %v2095 = vmul.f32 %v1999, %v1999
        %v2096 = vmul.f32 %v2000, %v2000
        %v2097 = vmul.f32 %v2001, %v2001
        %v2098 = vmul.f32 %v2002, %v2002
        %v2099 = vmul.f32 %v2003, %v2003
        %v2100 = vmul.f32 %v2004, %v2004
        %v2101 = vmul.f32 %v2005, %v2005
        %v2102 = vmul.f32 %v2006, %v2006
        %v2103 = vmul.f32 %v2007, %v2007
        %v2104 = vmul.f32 %v2008, %v2008
        %v2105 = vmul.f32 %v2009, %v2009
        %v2106 = vmul.f32 %v2010, %v2010
        %v2107 = vmul.f32 %v2011, %v2011
        %v2108 = vmul.f32 %v2012, %v2012
        %v2109 = vmul.f32 %v2013, %v2013
        %v2110 = vmul.f32 %v2014, %v2014
        %v2111 = vmul.f32 %v2015, %v2015
        %v2112 = vmul.f32 %v2016, %v2016
        %v2113 = vmul.f32 %v2017, %v2017
        %v2114 = vmul.f32 %v2018, %v2018
        %v2115 = vmul.f32 %v2019, %v2019
        %v2116 = vsub.f32 %v2052, %v2084
        %v2117 = vsub.f32 %v2053, %v2085
        %v2118 = vsub.f32 %v2054, %v2086
        %v2119 = vsub.f32 %v2055, %v2087
        %v2120 = vsub.f32 %v2056, %v2088
        %v2121 = vsub.f32 %v2057, %v2089
        %v2122 = vsub.f32 %v2058, %v2090
        %v2123 = vsub.f32 %v2059, %v2091
        %v2124 = vsub.f32 %v2060, %v2092
        %v2125 = vsub.f32 %v2061, %v2093
        %v2126 = vsub.f32 %v2062, %v2094
        %v2127 = vsub.f32 %v2063, %v2095
        %v2128 = vsub.f32 %v2064, %v2096
        %v2129 = vsub.f32 %v2065, %v2097
        %v2130 = vsub.f32 %v2066, %v2098
        %v2131 = vsub.f32 %v2067, %v2099
        %v2132 = vsub.f32 %v2068, %v2100
        %v2133 = vsub.f32 %v2069, %v2101
        %v2134 = vsub.f32 %v2070, %v2102
        %v2135 = vsub.f32 %v2071, %v2103
        %v2136 = vsub.f32 %v2072, %v2104
        %v2137 = vsub.f32 %v2073, %v2105
        %v2138 = vsub.f32 %v2074, %v2106
        %v2139 = vsub.f32 %v2075, %v2107
        %v2140 = vsub.f32 %v2076, %v2108
        %v2141 = vsub.f32 %v2077, %v2109
        %v2142 = vsub.f32 %v2078, %v2110
        %v2143 = vsub.f32 %v2079, %v2111
        %v2144 = vsub.f32 %v2080, %v2112
        %v2145 = vsub.f32 %v2081, %v2113
        %v2146 = vsub.f32 %v2082, %v2114
        %v2147 = vsub.f32 %v2083, %v2115
        %v2148 = vmax.f32 %v2116, 0.0
        %v2149 = vmax.f32 %v2117, 0.0
        %v2150 = vmax.f32 %v2118, 0.0
        %v2151 = vmax.f32 %v2119, 0.0
        %v2152 = vmax.f32 %v2120, 0.0
        %v2153 = vmax.f32 %v2121, 0.0
        %v2154 = vmax.f32 %v2122, 0.0
        %v2155 = vmax.f32 %v2123, 0.0
        %v2156 = vmax.f32 %v2124, 0.0
        %v2157 = vmax.f32 %v2125, 0.0
        %v2158 = vmax.f32 %v2126, 0.0
        %v2159 = vmax.f32 %v2127, 0.0
        %v2160 = vmax.f32 %v2128, 0.0
        %v2161 = vmax.f32 %v2129, 0.0
        %v2162 = vmax.f32 %v2130, 0.0
        %v2163 = vmax.f32 %v2131, 0.0
        %v2164 = vmax.f32 %v2132, 0.0
        %v2165 = vmax.f32 %v2133, 0.0
        %v2166 = vmax.f32 %v2134, 0.0
        %v2167 = vmax.f32 %v2135, 0.0
        %v2168 = vmax.f32 %v2136, 0.0
        %v2169 = vmax.f32 %v2137, 0.0
        %v2170 = vmax.f32 %v2138, 0.0
        %v2171 = vmax.f32 %v2139, 0.0
        %v2172 = vmax.f32 %v2140, 0.0
        %v2173 = vmax.f32 %v2141, 0.0
        %v2174 = vmax.f32 %v2142, 0.0
        %v2175 = vmax.f32 %v2143, 0.0
        %v2176 = vmax.f32 %v2144, 0.0
        %v2177 = vmax.f32 %v2145, 0.0
        %v2178 = vmax.f32 %v2146, 0.0
        %v2179 = vmax.f32 %v2147, 0.0
        %v2180 = vld [vmem:[%s495] sm:$0xff]
        %v2181 = vld [vmem:[%s495 + $0x8] sm:$0xff]
        %v2182 = vld [vmem:[%s495 + $0x10] sm:$0xff]
        %v2183 = vld [vmem:[%s495 + $0x18] sm:$0xff]
        %v2184 = vld [vmem:[%s495 + $0x20] sm:$0xff]
        %v2185 = vld [vmem:[%s495 + $0x28] sm:$0xff]
        %v2186 = vld [vmem:[%s495 + $0x30] sm:$0xff]
        %v2187 = vld [vmem:[%s495 + $0x38] sm:$0xff]
        %v2188 = vld [vmem:[%s495 + $0x40] sm:$0xff]
        %v2189 = vld [vmem:[%s495 + $0x48] sm:$0xff]
        %v2190 = vld [vmem:[%s495 + $0x50] sm:$0xff]
        %v2191 = vld [vmem:[%s495 + $0x58] sm:$0xff]
        %v2192 = vld [vmem:[%s495 + $0x60] sm:$0xff]
        %v2193 = vld [vmem:[%s495 + $0x68] sm:$0xff]
        %v2194 = vld [vmem:[%s495 + $0x70] sm:$0xff]
        %v2195 = vld [vmem:[%s495 + $0x78] sm:$0xff]
        %v2196 = vld [vmem:[%s495 + $0x80] sm:$0xff]
        %v2197 = vld [vmem:[%s495 + $0x88] sm:$0xff]
        %v2198 = vld [vmem:[%s495 + $0x90] sm:$0xff]
        %v2199 = vld [vmem:[%s495 + $0x98] sm:$0xff]
        %v2200 = vld [vmem:[%s495 + $0xa0] sm:$0xff]
        %v2201 = vld [vmem:[%s495 + $0xa8] sm:$0xff]
        %v2202 = vld [vmem:[%s495 + $0xb0] sm:$0xff]
        %v2203 = vld [vmem:[%s495 + $0xb8] sm:$0xff]
        %v2204 = vld [vmem:[%s495 + $0xc0] sm:$0xff]
        %v2205 = vld [vmem:[%s495 + $0xc8] sm:$0xff]
        %v2206 = vld [vmem:[%s495 + $0xd0] sm:$0xff]
        %v2207 = vld [vmem:[%s495 + $0xd8] sm:$0xff]
        %v2208 = vld [vmem:[%s495 + $0xe0] sm:$0xff]
        %v2209 = vld [vmem:[%s495 + $0xe8] sm:$0xff]
        %v2210 = vld [vmem:[%s495 + $0xf0] sm:$0xff]
        %v2211 = vld [vmem:[%s495 + $0xf8] sm:$0xff]
        %v2212 = vadd.f32 %v2148, 1e-05
        %v2213 = vadd.f32 %v2149, 1e-05
        %v2214 = vadd.f32 %v2150, 1e-05
        %v2215 = vadd.f32 %v2151, 1e-05
        %v2216 = vadd.f32 %v2152, 1e-05
        %v2217 = vadd.f32 %v2153, 1e-05
        %v2218 = vadd.f32 %v2154, 1e-05
        %v2219 = vadd.f32 %v2155, 1e-05
        %v2220 = vadd.f32 %v2156, 1e-05
        %v2221 = vadd.f32 %v2157, 1e-05
        %v2222 = vadd.f32 %v2158, 1e-05
        %v2223 = vadd.f32 %v2159, 1e-05
        %v2224 = vadd.f32 %v2160, 1e-05
        %v2225 = vadd.f32 %v2161, 1e-05
        %v2226 = vadd.f32 %v2162, 1e-05
        %v2227 = vadd.f32 %v2163, 1e-05
        %v2228 = vadd.f32 %v2164, 1e-05
        %v2229 = vadd.f32 %v2165, 1e-05
        %v2230 = vadd.f32 %v2166, 1e-05
        %v2231 = vadd.f32 %v2167, 1e-05
        %v2232 = vadd.f32 %v2168, 1e-05
        %v2233 = vadd.f32 %v2169, 1e-05
        %v2234 = vadd.f32 %v2170, 1e-05
        %v2235 = vadd.f32 %v2171, 1e-05
        %v2236 = vadd.f32 %v2172, 1e-05
        %v2237 = vadd.f32 %v2173, 1e-05
        %v2238 = vadd.f32 %v2174, 1e-05
        %v2239 = vadd.f32 %v2175, 1e-05
        %v2240 = vadd.f32 %v2176, 1e-05
        %v2241 = vadd.f32 %v2177, 1e-05
        %v2242 = vadd.f32 %v2178, 1e-05
        %v2243 = vadd.f32 %v2179, 1e-05
        %v2244 = vrsqrt.pop %v2212
        %v2245 = vrsqrt.pop %v2213
        %v2246 = vrsqrt.pop %v2214
        %v2247 = vrsqrt.pop %v2215
        %v2248 = vrsqrt.pop %v2216
        %v2249 = vrsqrt.pop %v2217
        %v2250 = vrsqrt.pop %v2218
        %v2251 = vrsqrt.pop %v2219
        %v2252 = vrsqrt.pop %v2220
        %v2253 = vrsqrt.pop %v2221
        %v2254 = vrsqrt.pop %v2222
        %v2255 = vrsqrt.pop %v2223
        %v2256 = vrsqrt.pop %v2224
        %v2257 = vrsqrt.pop %v2225
        %v2258 = vrsqrt.pop %v2226
        %v2259 = vrsqrt.pop %v2227
        %v2260 = vrsqrt.pop %v2228
        %v2261 = vrsqrt.pop %v2229
        %v2262 = vrsqrt.pop %v2230
        %v2263 = vrsqrt.pop %v2231
        %v2264 = vrsqrt.pop %v2232
        %v2265 = vrsqrt.pop %v2233
        %v2266 = vrsqrt.pop %v2234
        %v2267 = vrsqrt.pop %v2235
        %v2268 = vrsqrt.pop %v2236
        %v2269 = vrsqrt.pop %v2237
        %v2270 = vrsqrt.pop %v2238
        %v2271 = vrsqrt.pop %v2239
        %v2272 = vrsqrt.pop %v2240
        %v2273 = vrsqrt.pop %v2241
        %v2274 = vrsqrt.pop %v2242
        %v2275 = vrsqrt.pop %v2243
        %v2276 = vmul.f32 %v2180, %v2244
        %v2277 = vmul.f32 %v2181, %v2245
        %v2278 = vmul.f32 %v2182, %v2246
        %v2279 = vmul.f32 %v2183, %v2247
        %v2280 = vmul.f32 %v2184, %v2248
        %v2281 = vmul.f32 %v2185, %v2249
        %v2282 = vmul.f32 %v2186, %v2250
        %v2283 = vmul.f32 %v2187, %v2251
        %v2284 = vmul.f32 %v2188, %v2252
        %v2285 = vmul.f32 %v2189, %v2253
        %v2286 = vmul.f32 %v2190, %v2254
        %v2287 = vmul.f32 %v2191, %v2255
        %v2288 = vmul.f32 %v2192, %v2256
        %v2289 = vmul.f32 %v2193, %v2257
        %v2290 = vmul.f32 %v2194, %v2258
        %v2291 = vmul.f32 %v2195, %v2259
        %v2292 = vmul.f32 %v2196, %v2260
        %v2293 = vmul.f32 %v2197, %v2261
        %v2294 = vmul.f32 %v2198, %v2262
        %v2295 = vmul.f32 %v2199, %v2263
        %v2296 = vmul.f32 %v2200, %v2264
        %v2297 = vmul.f32 %v2201, %v2265
        %v2298 = vmul.f32 %v2202, %v2266
        %v2299 = vmul.f32 %v2203, %v2267
        %v2300 = vmul.f32 %v2204, %v2268
        %v2301 = vmul.f32 %v2205, %v2269
        %v2302 = vmul.f32 %v2206, %v2270
        %v2303 = vmul.f32 %v2207, %v2271
        %v2304 = vmul.f32 %v2208, %v2272
        %v2305 = vmul.f32 %v2209, %v2273
        %v2306 = vmul.f32 %v2210, %v2274
        %v2307 = vmul.f32 %v2211, %v2275
        %vm2308 = vcmask 7168
        %2309 = vst.msk [vmem:[#allocation5] sm:$0xff] %vm2308, %v2276
        %2310 = vst.msk [vmem:[#allocation5 + $0x8] sm:$0xff] %vm2308, %v2277
        %2311 = vst.msk [vmem:[#allocation5 + $0x10] sm:$0xff] %vm2308, %v2278
        %2312 = vst.msk [vmem:[#allocation5 + $0x18] sm:$0xff] %vm2308, %v2279
        %2313 = vst.msk [vmem:[#allocation5 + $0x20] sm:$0xff] %vm2308, %v2280
        %2314 = vst.msk [vmem:[#allocation5 + $0x28] sm:$0xff] %vm2308, %v2281
        %2315 = vst.msk [vmem:[#allocation5 + $0x30] sm:$0xff] %vm2308, %v2282
        %2316 = vst.msk [vmem:[#allocation5 + $0x38] sm:$0xff] %vm2308, %v2283
        %2317 = vst.msk [vmem:[#allocation5 + $0x40] sm:$0xff] %vm2308, %v2284
        %2318 = vst.msk [vmem:[#allocation5 + $0x48] sm:$0xff] %vm2308, %v2285
        %2319 = vst.msk [vmem:[#allocation5 + $0x50] sm:$0xff] %vm2308, %v2286
        %2320 = vst.msk [vmem:[#allocation5 + $0x58] sm:$0xff] %vm2308, %v2287
        %2321 = vst.msk [vmem:[#allocation5 + $0x60] sm:$0xff] %vm2308, %v2288
        %2322 = vst.msk [vmem:[#allocation5 + $0x68] sm:$0xff] %vm2308, %v2289
        %2323 = vst.msk [vmem:[#allocation5 + $0x70] sm:$0xff] %vm2308, %v2290
        %2324 = vst.msk [vmem:[#allocation5 + $0x78] sm:$0xff] %vm2308, %v2291
        %2325 = vst.msk [vmem:[#allocation5 + $0x80] sm:$0xff] %vm2308, %v2292
        %2326 = vst.msk [vmem:[#allocation5 + $0x88] sm:$0xff] %vm2308, %v2293
        %2327 = vst.msk [vmem:[#allocation5 + $0x90] sm:$0xff] %vm2308, %v2294
        %2328 = vst.msk [vmem:[#allocation5 + $0x98] sm:$0xff] %vm2308, %v2295
        %2329 = vst.msk [vmem:[#allocation5 + $0xa0] sm:$0xff] %vm2308, %v2296
        %2330 = vst.msk [vmem:[#allocation5 + $0xa8] sm:$0xff] %vm2308, %v2297
        %2331 = vst.msk [vmem:[#allocation5 + $0xb0] sm:$0xff] %vm2308, %v2298
        %2332 = vst.msk [vmem:[#allocation5 + $0xb8] sm:$0xff] %vm2308, %v2299
        %2333 = vst.msk [vmem:[#allocation5 + $0xc0] sm:$0xff] %vm2308, %v2300
        %2334 = vst.msk [vmem:[#allocation5 + $0xc8] sm:$0xff] %vm2308, %v2301
        %2335 = vst.msk [vmem:[#allocation5 + $0xd0] sm:$0xff] %vm2308, %v2302
        %2336 = vst.msk [vmem:[#allocation5 + $0xd8] sm:$0xff] %vm2308, %v2303
        %2337 = vst.msk [vmem:[#allocation5 + $0xe0] sm:$0xff] %vm2308, %v2304
        %2338 = vst.msk [vmem:[#allocation5 + $0xe8] sm:$0xff] %vm2308, %v2305
        %2339 = vst.msk [vmem:[#allocation5 + $0xf0] sm:$0xff] %vm2308, %v2306
        %2340 = vst.msk [vmem:[#allocation5 + $0xf8] sm:$0xff] %vm2308, %v2307
        %v2341 = vld [vmem:[%s501] sm:$0xff]
        %v2342 = vld [vmem:[%s501 + $0x8] sm:$0xff]
        %v2343 = vld [vmem:[%s501 + $0x10] sm:$0xff]
        %v2344 = vld [vmem:[%s501 + $0x18] sm:$0xff]
        %v2345 = vld [vmem:[%s501 + $0x20] sm:$0xff]
        %v2346 = vld [vmem:[%s501 + $0x28] sm:$0xff]
        %v2347 = vld [vmem:[%s501 + $0x30] sm:$0xff]
        %v2348 = vld [vmem:[%s501 + $0x38] sm:$0xff]
        %v2349 = vld [vmem:[%s501 + $0x40] sm:$0xff]
        %v2350 = vld [vmem:[%s501 + $0x48] sm:$0xff]
        %v2351 = vld [vmem:[%s501 + $0x50] sm:$0xff]
        %v2352 = vld [vmem:[%s501 + $0x58] sm:$0xff]
        %v2353 = vld [vmem:[%s501 + $0x60] sm:$0xff]
        %v2354 = vld [vmem:[%s501 + $0x68] sm:$0xff]
        %v2355 = vld [vmem:[%s501 + $0x70] sm:$0xff]
        %v2356 = vld [vmem:[%s501 + $0x78] sm:$0xff]
        %v2357 = vld [vmem:[%s501 + $0x80] sm:$0xff]
        %v2358 = vld [vmem:[%s501 + $0x88] sm:$0xff]
        %v2359 = vld [vmem:[%s501 + $0x90] sm:$0xff]
        %v2360 = vld [vmem:[%s501 + $0x98] sm:$0xff]
        %v2361 = vld [vmem:[%s501 + $0xa0] sm:$0xff]
        %v2362 = vld [vmem:[%s501 + $0xa8] sm:$0xff]
        %v2363 = vld [vmem:[%s501 + $0xb0] sm:$0xff]
        %v2364 = vld [vmem:[%s501 + $0xb8] sm:$0xff]
        %v2365 = vld [vmem:[%s501 + $0xc0] sm:$0xff]
        %v2366 = vld [vmem:[%s501 + $0xc8] sm:$0xff]
        %v2367 = vld [vmem:[%s501 + $0xd0] sm:$0xff]
        %v2368 = vld [vmem:[%s501 + $0xd8] sm:$0xff]
        %v2369 = vld [vmem:[%s501 + $0xe0] sm:$0xff]
        %v2370 = vld [vmem:[%s501 + $0xe8] sm:$0xff]
        %v2371 = vld [vmem:[%s501 + $0xf0] sm:$0xff]
        %v2372 = vld [vmem:[%s501 + $0xf8] sm:$0xff]
        %v2373 = vmul.f32 %v1988, %v2276
        %v2374 = vmul.f32 %v1989, %v2277
        %v2375 = vmul.f32 %v1990, %v2278
        %v2376 = vmul.f32 %v1991, %v2279
        %v2377 = vmul.f32 %v1992, %v2280
        %v2378 = vmul.f32 %v1993, %v2281
        %v2379 = vmul.f32 %v1994, %v2282
        %v2380 = vmul.f32 %v1995, %v2283
        %v2381 = vmul.f32 %v1996, %v2284
        %v2382 = vmul.f32 %v1997, %v2285
        %v2383 = vmul.f32 %v1998, %v2286
        %v2384 = vmul.f32 %v1999, %v2287
        %v2385 = vmul.f32 %v2000, %v2288
        %v2386 = vmul.f32 %v2001, %v2289
        %v2387 = vmul.f32 %v2002, %v2290
        %v2388 = vmul.f32 %v2003, %v2291
        %v2389 = vmul.f32 %v2004, %v2292
        %v2390 = vmul.f32 %v2005, %v2293
        %v2391 = vmul.f32 %v2006, %v2294
        %v2392 = vmul.f32 %v2007, %v2295
        %v2393 = vmul.f32 %v2008, %v2296
        %v2394 = vmul.f32 %v2009, %v2297
        %v2395 = vmul.f32 %v2010, %v2298
        %v2396 = vmul.f32 %v2011, %v2299
        %v2397 = vmul.f32 %v2012, %v2300
        %v2398 = vmul.f32 %v2013, %v2301
        %v2399 = vmul.f32 %v2014, %v2302
        %v2400 = vmul.f32 %v2015, %v2303
        %v2401 = vmul.f32 %v2016, %v2304
        %v2402 = vmul.f32 %v2017, %v2305
        %v2403 = vmul.f32 %v2018, %v2306
        %v2404 = vmul.f32 %v2019, %v2307
        %v2405 = vsub.f32 %v2341, %v2373
        %v2406 = vsub.f32 %v2342, %v2374
        %v2407 = vsub.f32 %v2343, %v2375
        %v2408 = vsub.f32 %v2344, %v2376
        %v2409 = vsub.f32 %v2345, %v2377
        %v2410 = vsub.f32 %v2346, %v2378
        %v2411 = vsub.f32 %v2347, %v2379
        %v2412 = vsub.f32 %v2348, %v2380
        %v2413 = vsub.f32 %v2349, %v2381
        %v2414 = vsub.f32 %v2350, %v2382
        %v2415 = vsub.f32 %v2351, %v2383
        %v2416 = vsub.f32 %v2352, %v2384
        %v2417 = vsub.f32 %v2353, %v2385
        %v2418 = vsub.f32 %v2354, %v2386
        %v2419 = vsub.f32 %v2355, %v2387
        %v2420 = vsub.f32 %v2356, %v2388
        %v2421 = vsub.f32 %v2357, %v2389
        %v2422 = vsub.f32 %v2358, %v2390
        %v2423 = vsub.f32 %v2359, %v2391
        %v2424 = vsub.f32 %v2360, %v2392
        %v2425 = vsub.f32 %v2361, %v2393
        %v2426 = vsub.f32 %v2362, %v2394
        %v2427 = vsub.f32 %v2363, %v2395
        %v2428 = vsub.f32 %v2364, %v2396
        %v2429 = vsub.f32 %v2365, %v2397
        %v2430 = vsub.f32 %v2366, %v2398
        %v2431 = vsub.f32 %v2367, %v2399
        %v2432 = vsub.f32 %v2368, %v2400
        %v2433 = vsub.f32 %v2369, %v2401
        %v2434 = vsub.f32 %v2370, %v2402
        %v2435 = vsub.f32 %v2371, %v2403
        %v2436 = vsub.f32 %v2372, %v2404
        %2437 = vst.msk [vmem:[#allocation6] sm:$0xff] %vm2308, %v2405
        %2438 = vst.msk [vmem:[#allocation6 + $0x8] sm:$0xff] %vm2308, %v2406
        %2439 = vst.msk [vmem:[#allocation6 + $0x10] sm:$0xff] %vm2308, %v2407
        %2440 = vst.msk [vmem:[#allocation6 + $0x18] sm:$0xff] %vm2308, %v2408
        %2441 = vst.msk [vmem:[#allocation6 + $0x20] sm:$0xff] %vm2308, %v2409
        %2442 = vst.msk [vmem:[#allocation6 + $0x28] sm:$0xff] %vm2308, %v2410
        %2443 = vst.msk [vmem:[#allocation6 + $0x30] sm:$0xff] %vm2308, %v2411
        %2444 = vst.msk [vmem:[#allocation6 + $0x38] sm:$0xff] %vm2308, %v2412
        %2445 = vst.msk [vmem:[#allocation6 + $0x40] sm:$0xff] %vm2308, %v2413
        %2446 = vst.msk [vmem:[#allocation6 + $0x48] sm:$0xff] %vm2308, %v2414
        %2447 = vst.msk [vmem:[#allocation6 + $0x50] sm:$0xff] %vm2308, %v2415
        %2448 = vst.msk [vmem:[#allocation6 + $0x58] sm:$0xff] %vm2308, %v2416
        %2449 = vst.msk [vmem:[#allocation6 + $0x60] sm:$0xff] %vm2308, %v2417
        %2450 = vst.msk [vmem:[#allocation6 + $0x68] sm:$0xff] %vm2308, %v2418
        %2451 = vst.msk [vmem:[#allocation6 + $0x70] sm:$0xff] %vm2308, %v2419
        %2452 = vst.msk [vmem:[#allocation6 + $0x78] sm:$0xff] %vm2308, %v2420
        %2453 = vst.msk [vmem:[#allocation6 + $0x80] sm:$0xff] %vm2308, %v2421
        %2454 = vst.msk [vmem:[#allocation6 + $0x88] sm:$0xff] %vm2308, %v2422
        %2455 = vst.msk [vmem:[#allocation6 + $0x90] sm:$0xff] %vm2308, %v2423
        %2456 = vst.msk [vmem:[#allocation6 + $0x98] sm:$0xff] %vm2308, %v2424
        %2457 = vst.msk [vmem:[#allocation6 + $0xa0] sm:$0xff] %vm2308, %v2425
        %2458 = vst.msk [vmem:[#allocation6 + $0xa8] sm:$0xff] %vm2308, %v2426
        %2459 = vst.msk [vmem:[#allocation6 + $0xb0] sm:$0xff] %vm2308, %v2427
        %2460 = vst.msk [vmem:[#allocation6 + $0xb8] sm:$0xff] %vm2308, %v2428
        %2461 = vst.msk [vmem:[#allocation6 + $0xc0] sm:$0xff] %vm2308, %v2429
        %2462 = vst.msk [vmem:[#allocation6 + $0xc8] sm:$0xff] %vm2308, %v2430
        %2463 = vst.msk [vmem:[#allocation6 + $0xd0] sm:$0xff] %vm2308, %v2431
        %2464 = vst.msk [vmem:[#allocation6 + $0xd8] sm:$0xff] %vm2308, %v2432
        %2465 = vst.msk [vmem:[#allocation6 + $0xe0] sm:$0xff] %vm2308, %v2433
        %2466 = vst.msk [vmem:[#allocation6 + $0xe8] sm:$0xff] %vm2308, %v2434
        %2467 = vst.msk [vmem:[#allocation6 + $0xf0] sm:$0xff] %vm2308, %v2435
        %2468 = vst.msk [vmem:[#allocation6 + $0xf8] sm:$0xff] %vm2308, %v2436
        %v2469 = vld [vmem:[#allocation4] sm:$0xff]
        %v2470 = vld [vmem:[#allocation4 + $0x8] sm:$0xff]
        %v2471 = vld [vmem:[#allocation4 + $0x10] sm:$0xff]
        %v2472 = vld [vmem:[#allocation4 + $0x18] sm:$0xff]
        %v2473 = vld [vmem:[#allocation4 + $0x20] sm:$0xff]
        %v2474 = vld [vmem:[#allocation4 + $0x28] sm:$0xff]
        %v2475 = vld [vmem:[#allocation4 + $0x30] sm:$0xff]
        %v2476 = vld [vmem:[#allocation4 + $0x38] sm:$0xff]
        %v2477 = vld [vmem:[#allocation4 + $0x40] sm:$0xff]
        %v2478 = vld [vmem:[#allocation4 + $0x48] sm:$0xff]
        %v2479 = vld [vmem:[#allocation4 + $0x50] sm:$0xff]
        %v2480 = vld [vmem:[#allocation4 + $0x58] sm:$0xff]
        %v2481 = vld [vmem:[#allocation4 + $0x60] sm:$0xff]
        %v2482 = vld [vmem:[#allocation4 + $0x68] sm:$0xff]
        %v2483 = vld [vmem:[#allocation4 + $0x70] sm:$0xff]
        %v2484 = vld [vmem:[#allocation4 + $0x78] sm:$0xff]
        %v2485 = vld [vmem:[#allocation4 + $0x80] sm:$0xff]
        %v2486 = vld [vmem:[#allocation4 + $0x88] sm:$0xff]
        %v2487 = vld [vmem:[#allocation4 + $0x90] sm:$0xff]
        %v2488 = vld [vmem:[#allocation4 + $0x98] sm:$0xff]
        %v2489 = vld [vmem:[#allocation4 + $0xa0] sm:$0xff]
        %v2490 = vld [vmem:[#allocation4 + $0xa8] sm:$0xff]
        %v2491 = vld [vmem:[#allocation4 + $0xb0] sm:$0xff]
        %v2492 = vld [vmem:[#allocation4 + $0xb8] sm:$0xff]
        %v2493 = vld [vmem:[#allocation4 + $0xc0] sm:$0xff]
        %v2494 = vld [vmem:[#allocation4 + $0xc8] sm:$0xff]
        %v2495 = vld [vmem:[#allocation4 + $0xd0] sm:$0xff]
        %v2496 = vld [vmem:[#allocation4 + $0xd8] sm:$0xff]
        %v2497 = vld [vmem:[#allocation4 + $0xe0] sm:$0xff]
        %v2498 = vld [vmem:[#allocation4 + $0xe8] sm:$0xff]
        %v2499 = vld [vmem:[#allocation4 + $0xf0] sm:$0xff]
        %v2500 = vld [vmem:[#allocation4 + $0xf8] sm:$0xff]
        %v2501 = vmul.f32 %v2469, 0.015625
        %v2502 = vmul.f32 %v2470, 0.015625
        %v2503 = vmul.f32 %v2471, 0.015625
        %v2504 = vmul.f32 %v2472, 0.015625
        %v2505 = vmul.f32 %v2473, 0.015625
        %v2506 = vmul.f32 %v2474, 0.015625
        %v2507 = vmul.f32 %v2475, 0.015625
        %v2508 = vmul.f32 %v2476, 0.015625
        %v2509 = vmul.f32 %v2477, 0.015625
        %v2510 = vmul.f32 %v2478, 0.015625
        %v2511 = vmul.f32 %v2479, 0.015625
        %v2512 = vmul.f32 %v2480, 0.015625
        %v2513 = vmul.f32 %v2481, 0.015625
        %v2514 = vmul.f32 %v2482, 0.015625
        %v2515 = vmul.f32 %v2483, 0.015625
        %v2516 = vmul.f32 %v2484, 0.015625
        %v2517 = vmul.f32 %v2485, 0.015625
        %v2518 = vmul.f32 %v2486, 0.015625
        %v2519 = vmul.f32 %v2487, 0.015625
        %v2520 = vmul.f32 %v2488, 0.015625
        %v2521 = vmul.f32 %v2489, 0.015625
        %v2522 = vmul.f32 %v2490, 0.015625
        %v2523 = vmul.f32 %v2491, 0.015625
        %v2524 = vmul.f32 %v2492, 0.015625
        %v2525 = vmul.f32 %v2493, 0.015625
        %v2526 = vmul.f32 %v2494, 0.015625
        %v2527 = vmul.f32 %v2495, 0.015625
        %v2528 = vmul.f32 %v2496, 0.015625
        %v2529 = vmul.f32 %v2497, 0.015625
        %v2530 = vmul.f32 %v2498, 0.015625
        %v2531 = vmul.f32 %v2499, 0.015625
        %v2532 = vmul.f32 %v2500, 0.015625
        %v2533 = vpack.c.bf16 %v2502, %v2501
        %v2534 = vpack.c.bf16 %v2504, %v2503
        %v2535 = vpack.c.bf16 %v2506, %v2505
        %v2536 = vpack.c.bf16 %v2508, %v2507
        %v2537 = vpack.c.bf16 %v2510, %v2509
        %v2538 = vpack.c.bf16 %v2512, %v2511
        %v2539 = vpack.c.bf16 %v2514, %v2513
        %v2540 = vpack.c.bf16 %v2516, %v2515
        %v2541 = vpack.c.bf16 %v2518, %v2517
        %v2542 = vpack.c.bf16 %v2520, %v2519
        %v2543 = vpack.c.bf16 %v2522, %v2521
        %v2544 = vpack.c.bf16 %v2524, %v2523
        %v2545 = vpack.c.bf16 %v2526, %v2525
        %v2546 = vpack.c.bf16 %v2528, %v2527
        %v2547 = vpack.c.bf16 %v2530, %v2529
        %v2548 = vpack.c.bf16 %v2532, %v2531
        %v2549 = vld [vmem:[%s508] sm:$0xff]
        %v2550 = vld [vmem:[%s508 + $0x8] sm:$0xff]
        %v2551 = vld [vmem:[%s508 + $0x10] sm:$0xff]
        %v2552 = vld [vmem:[%s508 + $0x18] sm:$0xff]
        %v2553 = vld [vmem:[%s508 + $0x20] sm:$0xff]
        %v2554 = vld [vmem:[%s508 + $0x28] sm:$0xff]
        %v2555 = vld [vmem:[%s508 + $0x30] sm:$0xff]
        %v2556 = vld [vmem:[%s508 + $0x38] sm:$0xff]
        %v2557 = vld [vmem:[%s508 + $0x40] sm:$0xff]
        %v2558 = vld [vmem:[%s508 + $0x48] sm:$0xff]
        %v2559 = vld [vmem:[%s508 + $0x50] sm:$0xff]
        %v2560 = vld [vmem:[%s508 + $0x58] sm:$0xff]
        %v2561 = vld [vmem:[%s508 + $0x60] sm:$0xff]
        %v2562 = vld [vmem:[%s508 + $0x68] sm:$0xff]
        %v2563 = vld [vmem:[%s508 + $0x70] sm:$0xff]
        %v2564 = vld [vmem:[%s508 + $0x78] sm:$0xff]
        %v2565 = vld [vmem:[%s508 + $0x80] sm:$0xff]
        %v2566 = vld [vmem:[%s508 + $0x88] sm:$0xff]
        %v2567 = vld [vmem:[%s508 + $0x90] sm:$0xff]
        %v2568 = vld [vmem:[%s508 + $0x98] sm:$0xff]
        %v2569 = vld [vmem:[%s508 + $0xa0] sm:$0xff]
        %v2570 = vld [vmem:[%s508 + $0xa8] sm:$0xff]
        %v2571 = vld [vmem:[%s508 + $0xb0] sm:$0xff]
        %v2572 = vld [vmem:[%s508 + $0xb8] sm:$0xff]
        %v2573 = vld [vmem:[%s508 + $0xc0] sm:$0xff]
        %v2574 = vld [vmem:[%s508 + $0xc8] sm:$0xff]
        %v2575 = vld [vmem:[%s508 + $0xd0] sm:$0xff]
        %v2576 = vld [vmem:[%s508 + $0xd8] sm:$0xff]
        %v2577 = vld [vmem:[%s508 + $0xe0] sm:$0xff]
        %v2578 = vld [vmem:[%s508 + $0xe8] sm:$0xff]
        %v2579 = vld [vmem:[%s508 + $0xf0] sm:$0xff]
        %v2580 = vld [vmem:[%s508 + $0xf8] sm:$0xff]
        %v2613 = vunpack.c.l.b16 %v2549
        %v2614 = vunpack.c.h.b16 %v2549
        %v2615 = vunpack.c.l.b16 %v2550
        %v2616 = vunpack.c.h.b16 %v2550
        %v2617 = vunpack.c.l.b16 %v2551
        %v2618 = vunpack.c.h.b16 %v2551
        %v2619 = vunpack.c.l.b16 %v2552
        %v2620 = vunpack.c.h.b16 %v2552
        %v2621 = vunpack.c.l.b16 %v2553
        %v2622 = vunpack.c.h.b16 %v2553
        %v2623 = vunpack.c.l.b16 %v2554
        %v2624 = vunpack.c.h.b16 %v2554
        %v2625 = vunpack.c.l.b16 %v2555
        %v2626 = vunpack.c.h.b16 %v2555
        %v2627 = vunpack.c.l.b16 %v2556
        %v2628 = vunpack.c.h.b16 %v2556
        %v2629 = vunpack.c.l.b16 %v2557
        %v2630 = vunpack.c.h.b16 %v2557
        %v2631 = vunpack.c.l.b16 %v2558
        %v2632 = vunpack.c.h.b16 %v2558
        %v2633 = vunpack.c.l.b16 %v2559
        %v2634 = vunpack.c.h.b16 %v2559
        %v2635 = vunpack.c.l.b16 %v2560
        %v2636 = vunpack.c.h.b16 %v2560
        %v2637 = vunpack.c.l.b16 %v2561
        %v2638 = vunpack.c.h.b16 %v2561
        %v2639 = vunpack.c.l.b16 %v2562
        %v2640 = vunpack.c.h.b16 %v2562
        %v2641 = vunpack.c.l.b16 %v2563
        %v2642 = vunpack.c.h.b16 %v2563
        %v2643 = vunpack.c.l.b16 %v2564
        %v2644 = vunpack.c.h.b16 %v2564
        %v2645 = vunpack.c.l.b16 %v2565
        %v2646 = vunpack.c.h.b16 %v2565
        %v2647 = vunpack.c.l.b16 %v2566
        %v2648 = vunpack.c.h.b16 %v2566
        %v2649 = vunpack.c.l.b16 %v2567
        %v2650 = vunpack.c.h.b16 %v2567
        %v2651 = vunpack.c.l.b16 %v2568
        %v2652 = vunpack.c.h.b16 %v2568
        %v2653 = vunpack.c.l.b16 %v2569
        %v2654 = vunpack.c.h.b16 %v2569
        %v2655 = vunpack.c.l.b16 %v2570
        %v2656 = vunpack.c.h.b16 %v2570
        %v2657 = vunpack.c.l.b16 %v2571
        %v2658 = vunpack.c.h.b16 %v2571
        %v2659 = vunpack.c.l.b16 %v2572
        %v2660 = vunpack.c.h.b16 %v2572
        %v2661 = vunpack.c.l.b16 %v2573
        %v2662 = vunpack.c.h.b16 %v2573
        %v2663 = vunpack.c.l.b16 %v2574
        %v2664 = vunpack.c.h.b16 %v2574
        %v2665 = vunpack.c.l.b16 %v2575
        %v2666 = vunpack.c.h.b16 %v2575
        %v2667 = vunpack.c.l.b16 %v2576
        %v2668 = vunpack.c.h.b16 %v2576
        %v2669 = vunpack.c.l.b16 %v2577
        %v2670 = vunpack.c.h.b16 %v2577
        %v2671 = vunpack.c.l.b16 %v2578
        %v2672 = vunpack.c.h.b16 %v2578
        %v2673 = vunpack.c.l.b16 %v2579
        %v2674 = vunpack.c.h.b16 %v2579
        %v2675 = vunpack.c.l.b16 %v2580
        %v2676 = vunpack.c.h.b16 %v2580
        %v2677 = vpack.c.b16 %v2615, %v2613
        %v2678 = vpack.c.b16 %v2616, %v2614
        %v2679 = vpack.c.b16 %v2619, %v2617
        %v2680 = vpack.c.b16 %v2620, %v2618
        %v2681 = vpack.c.b16 %v2623, %v2621
        %v2682 = vpack.c.b16 %v2624, %v2622
        %v2683 = vpack.c.b16 %v2627, %v2625
        %v2684 = vpack.c.b16 %v2628, %v2626
        %v2685 = vpack.c.b16 %v2631, %v2629
        %v2686 = vpack.c.b16 %v2632, %v2630
        %v2687 = vpack.c.b16 %v2635, %v2633
        %v2688 = vpack.c.b16 %v2636, %v2634
        %v2689 = vpack.c.b16 %v2639, %v2637
        %v2690 = vpack.c.b16 %v2640, %v2638
        %v2691 = vpack.c.b16 %v2643, %v2641
        %v2692 = vpack.c.b16 %v2644, %v2642
        %v2693 = vpack.c.b16 %v2647, %v2645
        %v2694 = vpack.c.b16 %v2648, %v2646
        %v2695 = vpack.c.b16 %v2651, %v2649
        %v2696 = vpack.c.b16 %v2652, %v2650
        %v2697 = vpack.c.b16 %v2655, %v2653
        %v2698 = vpack.c.b16 %v2656, %v2654
        %v2699 = vpack.c.b16 %v2659, %v2657
        %v2700 = vpack.c.b16 %v2660, %v2658
        %v2701 = vpack.c.b16 %v2663, %v2661
        %v2702 = vpack.c.b16 %v2664, %v2662
        %v2703 = vpack.c.b16 %v2667, %v2665
        %v2704 = vpack.c.b16 %v2668, %v2666
        %v2705 = vpack.c.b16 %v2671, %v2669
        %v2706 = vpack.c.b16 %v2672, %v2670
        %v2707 = vpack.c.b16 %v2675, %v2673
        %v2708 = vpack.c.b16 %v2676, %v2674
        %2741 = vmatprep.subr.bf16.mxu0 0
        %2742 = vmatpush1.bf16.msra.mxu0 %v2540
        %2743 = vmatprep.subr.bf16.mxu0 0
        %2744 = vmatpush1.bf16.msra.mxu0 %v2539
        %2745 = vmatprep.subr.bf16.mxu0 0
        %2746 = vmatpush1.bf16.msra.mxu0 %v2538
        %2747 = vmatprep.subr.bf16.mxu0 0
        %2748 = vmatpush1.bf16.msra.mxu0 %v2537
        %2749 = vmatprep.subr.bf16.mxu0 0
        %2750 = vmatpush1.bf16.msra.mxu0 %v2536
        %2751 = vmatprep.subr.bf16.mxu0 0
        %2752 = vmatpush1.bf16.msra.mxu0 %v2535
        %2753 = vmatprep.subr.bf16.mxu0 0
        %2754 = vmatpush1.bf16.msra.mxu0 %v2534
        %2755 = vmatprep.subr.bf16.mxu0 0
        %2756 = vmatpush1.bf16.msra.mxu0 %v2533
        %2757 = vmatprep.subr.bf16.mxu0 0
        %2758 = vmatpush2.bf16.msra.mxu0 %v2548
        %2759 = vmatprep.subr.bf16.mxu0 0
        %2760 = vmatpush2.bf16.msra.mxu0 %v2547
        %2761 = vmatprep.subr.bf16.mxu0 0
        %2762 = vmatpush2.bf16.msra.mxu0 %v2546
        %2763 = vmatprep.subr.bf16.mxu0 0
        %2764 = vmatpush2.bf16.msra.mxu0 %v2545
        %2765 = vmatprep.subr.bf16.mxu0 0
        %2766 = vmatpush2.bf16.msra.mxu0 %v2544
        %2767 = vmatprep.subr.bf16.mxu0 0
        %2768 = vmatpush2.bf16.msra.mxu0 %v2543
        %2769 = vmatprep.subr.bf16.mxu0 0
        %2770 = vmatpush2.bf16.msra.mxu0 %v2542
        %2771 = vmatprep.subr.bf16.mxu0 0
        %2772 = vmatpush2.bf16.msra.mxu0 %v2541
        %2773 = vmatprep.mubr.bf16.mxu0 %v2678
        %2774 = vmatmul.mubr.bf16.gmra.mxu0 %v2677
        %v2775 = vpop.f32.mrf.mxu0
        %v2776 = vadd.f32 0.0, %v2775
        %v2777 = vpop.f32.mrf.mxu0
        %v2778 = vpop.f32.mrf.mxu0
        %v2779 = vadd.f32 0.0, %v2778
        %v2780 = vpop.f32.mrf.mxu0
        %2781 = vmatprep.mubr.bf16.mxu0 %v2680
        %2782 = vmatmul.mubr.bf16.gmra.mxu0 %v2679
        %v2783 = vpop.f32.mrf.mxu0
        %v2784 = vadd.f32 0.0, %v2783
        %v2785 = vpop.f32.mrf.mxu0
        %v2786 = vpop.f32.mrf.mxu0
        %v2787 = vadd.f32 0.0, %v2786
        %v2788 = vpop.f32.mrf.mxu0
        %2789 = vmatprep.mubr.bf16.mxu0 %v2682
        %2790 = vmatmul.mubr.bf16.gmra.mxu0 %v2681
        %v2791 = vpop.f32.mrf.mxu0
        %v2792 = vadd.f32 0.0, %v2791
        %v2793 = vpop.f32.mrf.mxu0
        %v2794 = vpop.f32.mrf.mxu0
        %v2795 = vadd.f32 0.0, %v2794
        %v2796 = vpop.f32.mrf.mxu0
        %2797 = vmatprep.mubr.bf16.mxu0 %v2684
        %2798 = vmatmul.mubr.bf16.gmra.mxu0 %v2683
        %v2799 = vpop.f32.mrf.mxu0
        %v2800 = vadd.f32 0.0, %v2799
        %v2801 = vpop.f32.mrf.mxu0
        %v2802 = vpop.f32.mrf.mxu0
        %v2803 = vadd.f32 0.0, %v2802
        %v2804 = vpop.f32.mrf.mxu0
        %2805 = vmatprep.mubr.bf16.mxu0 %v2686
        %2806 = vmatmul.mubr.bf16.gmra.mxu0 %v2685
        %v2807 = vpop.f32.mrf.mxu0
        %v2808 = vadd.f32 0.0, %v2807
        %v2809 = vpop.f32.mrf.mxu0
        %v2810 = vpop.f32.mrf.mxu0
        %v2811 = vadd.f32 0.0, %v2810
        %v2812 = vpop.f32.mrf.mxu0
        %2813 = vmatprep.mubr.bf16.mxu0 %v2688
        %2814 = vmatmul.mubr.bf16.gmra.mxu0 %v2687
        %v2815 = vpop.f32.mrf.mxu0
        %v2816 = vadd.f32 0.0, %v2815
        %v2817 = vpop.f32.mrf.mxu0
        %v2818 = vpop.f32.mrf.mxu0
        %v2819 = vadd.f32 0.0, %v2818
        %v2820 = vpop.f32.mrf.mxu0
        %2821 = vmatprep.mubr.bf16.mxu0 %v2690
        %2822 = vmatmul.mubr.bf16.gmra.mxu0 %v2689
        %v2823 = vpop.f32.mrf.mxu0
        %v2824 = vadd.f32 0.0, %v2823
        %v2825 = vpop.f32.mrf.mxu0
        %v2826 = vpop.f32.mrf.mxu0
        %v2827 = vadd.f32 0.0, %v2826
        %v2828 = vpop.f32.mrf.mxu0
        %2829 = vmatprep.mubr.bf16.mxu0 %v2692
        %2830 = vmatmul.mubr.bf16.gmra.mxu0 %v2691
        %v2831 = vpop.f32.mrf.mxu0
        %v2832 = vadd.f32 0.0, %v2831
        %v2833 = vpop.f32.mrf.mxu0
        %v2834 = vpop.f32.mrf.mxu0
        %v2835 = vadd.f32 0.0, %v2834
        %v2836 = vpop.f32.mrf.mxu0
        %2837 = vmatprep.mubr.bf16.mxu0 %v2694
        %2838 = vmatmul.mubr.bf16.gmra.mxu0 %v2693
        %v2839 = vpop.f32.mrf.mxu0
        %v2840 = vadd.f32 0.0, %v2839
        %v2841 = vpop.f32.mrf.mxu0
        %v2842 = vpop.f32.mrf.mxu0
        %v2843 = vadd.f32 0.0, %v2842
        %v2844 = vpop.f32.mrf.mxu0
        %2845 = vmatprep.mubr.bf16.mxu0 %v2696
        %2846 = vmatmul.mubr.bf16.gmra.mxu0 %v2695
        %v2847 = vpop.f32.mrf.mxu0
        %v2848 = vadd.f32 0.0, %v2847
        %v2849 = vpop.f32.mrf.mxu0
        %v2850 = vpop.f32.mrf.mxu0
        %v2851 = vadd.f32 0.0, %v2850
        %v2852 = vpop.f32.mrf.mxu0
        %2853 = vmatprep.mubr.bf16.mxu0 %v2698
        %2854 = vmatmul.mubr.bf16.gmra.mxu0 %v2697
        %v2855 = vpop.f32.mrf.mxu0
        %v2856 = vadd.f32 0.0, %v2855
        %v2857 = vpop.f32.mrf.mxu0
        %v2858 = vpop.f32.mrf.mxu0
        %v2859 = vadd.f32 0.0, %v2858
        %v2860 = vpop.f32.mrf.mxu0
        %2861 = vmatprep.mubr.bf16.mxu0 %v2700
        %2862 = vmatmul.mubr.bf16.gmra.mxu0 %v2699
        %v2863 = vpop.f32.mrf.mxu0
        %v2864 = vadd.f32 0.0, %v2863
        %v2865 = vpop.f32.mrf.mxu0
        %v2866 = vpop.f32.mrf.mxu0
        %v2867 = vadd.f32 0.0, %v2866
        %v2868 = vpop.f32.mrf.mxu0
        %2869 = vmatprep.mubr.bf16.mxu0 %v2702
        %2870 = vmatmul.mubr.bf16.gmra.mxu0 %v2701
        %v2871 = vpop.f32.mrf.mxu0
        %v2872 = vadd.f32 0.0, %v2871
        %v2873 = vpop.f32.mrf.mxu0
        %v2874 = vpop.f32.mrf.mxu0
        %v2875 = vadd.f32 0.0, %v2874
        %v2876 = vpop.f32.mrf.mxu0
        %2877 = vmatprep.mubr.bf16.mxu0 %v2704
        %2878 = vmatmul.mubr.bf16.gmra.mxu0 %v2703
        %v2879 = vpop.f32.mrf.mxu0
        %v2880 = vadd.f32 0.0, %v2879
        %v2881 = vpop.f32.mrf.mxu0
        %v2882 = vpop.f32.mrf.mxu0
        %v2883 = vadd.f32 0.0, %v2882
        %v2884 = vpop.f32.mrf.mxu0
        %2885 = vmatprep.mubr.bf16.mxu0 %v2706
        %2886 = vmatmul.mubr.bf16.gmra.mxu0 %v2705
        %v2887 = vpop.f32.mrf.mxu0
        %v2888 = vadd.f32 0.0, %v2887
        %v2889 = vpop.f32.mrf.mxu0
        %v2890 = vpop.f32.mrf.mxu0
        %v2891 = vadd.f32 0.0, %v2890
        %v2892 = vpop.f32.mrf.mxu0
        %2893 = vmatprep.mubr.bf16.mxu0 %v2708
        %2894 = vmatmul.mubr.bf16.gmra.mxu0 %v2707
        %v2895 = vpop.f32.mrf.mxu0
        %v2896 = vadd.f32 0.0, %v2895
        %v2897 = vpop.f32.mrf.mxu0
        %v2898 = vpop.f32.mrf.mxu0
        %v2899 = vadd.f32 0.0, %v2898
        %v2900 = vpop.f32.mrf.mxu0
        %2901 = vdwg.mxu0
        %v2902 = vmax.f32 %v2776, 0.0
        %v2903 = vmax.f32 %v2779, 0.0
        %v2904 = vmax.f32 %v2784, 0.0
        %v2905 = vmax.f32 %v2787, 0.0
        %v2906 = vmax.f32 %v2792, 0.0
        %v2907 = vmax.f32 %v2795, 0.0
        %v2908 = vmax.f32 %v2800, 0.0
        %v2909 = vmax.f32 %v2803, 0.0
        %v2910 = vmax.f32 %v2808, 0.0
        %v2911 = vmax.f32 %v2811, 0.0
        %v2912 = vmax.f32 %v2816, 0.0
        %v2913 = vmax.f32 %v2819, 0.0
        %v2914 = vmax.f32 %v2824, 0.0
        %v2915 = vmax.f32 %v2827, 0.0
        %v2916 = vmax.f32 %v2832, 0.0
        %v2917 = vmax.f32 %v2835, 0.0
        %v2918 = vmax.f32 %v2840, 0.0
        %v2919 = vmax.f32 %v2843, 0.0
        %v2920 = vmax.f32 %v2848, 0.0
        %v2921 = vmax.f32 %v2851, 0.0
        %v2922 = vmax.f32 %v2856, 0.0
        %v2923 = vmax.f32 %v2859, 0.0
        %v2924 = vmax.f32 %v2864, 0.0
        %v2925 = vmax.f32 %v2867, 0.0
        %v2926 = vmax.f32 %v2872, 0.0
        %v2927 = vmax.f32 %v2875, 0.0
        %v2928 = vmax.f32 %v2880, 0.0
        %v2929 = vmax.f32 %v2883, 0.0
        %v2930 = vmax.f32 %v2888, 0.0
        %v2931 = vmax.f32 %v2891, 0.0
        %v2932 = vmax.f32 %v2896, 0.0
        %v2933 = vmax.f32 %v2899, 0.0
        %vm2934 = vcmask 15360
        %v2935 = vsel %vm2934, %v2902, 0.0
        %2936 = vadd.xlane.f32.xlu0 %v2935
        %v2937 = vpop.xlane.xlu0 %2936
        %v2938 = vsel %vm2934, %v2903, 0.0
        %2939 = vadd.xlane.f32.xlu0 %v2938
        %v2940 = vpop.xlane.xlu0 %2939
        %v2941 = vsel %vm2934, %v2904, 0.0
        %2942 = vadd.xlane.f32.xlu0 %v2941
        %v2943 = vpop.xlane.xlu0 %2942
        %v2944 = vsel %vm2934, %v2905, 0.0
        %2945 = vadd.xlane.f32.xlu0 %v2944
        %v2946 = vpop.xlane.xlu0 %2945
        %v2947 = vsel %vm2934, %v2906, 0.0
        %2948 = vadd.xlane.f32.xlu0 %v2947
        %v2949 = vpop.xlane.xlu0 %2948
        %v2950 = vsel %vm2934, %v2907, 0.0
        %2951 = vadd.xlane.f32.xlu0 %v2950
        %v2952 = vpop.xlane.xlu0 %2951
        %v2953 = vsel %vm2934, %v2908, 0.0
        %2954 = vadd.xlane.f32.xlu0 %v2953
        %v2955 = vpop.xlane.xlu0 %2954
        %v2956 = vsel %vm2934, %v2909, 0.0
        %2957 = vadd.xlane.f32.xlu0 %v2956
        %v2958 = vpop.xlane.xlu0 %2957
        %v2959 = vsel %vm2934, %v2910, 0.0
        %2960 = vadd.xlane.f32.xlu0 %v2959
        %v2961 = vpop.xlane.xlu0 %2960
        %v2962 = vsel %vm2934, %v2911, 0.0
        %2963 = vadd.xlane.f32.xlu0 %v2962
        %v2964 = vpop.xlane.xlu0 %2963
        %v2965 = vsel %vm2934, %v2912, 0.0
        %2966 = vadd.xlane.f32.xlu0 %v2965
        %v2967 = vpop.xlane.xlu0 %2966
        %v2968 = vsel %vm2934, %v2913, 0.0
        %2969 = vadd.xlane.f32.xlu0 %v2968
        %v2970 = vpop.xlane.xlu0 %2969
        %v2971 = vsel %vm2934, %v2914, 0.0
        %2972 = vadd.xlane.f32.xlu0 %v2971
        %v2973 = vpop.xlane.xlu0 %2972
        %v2974 = vsel %vm2934, %v2915, 0.0
        %2975 = vadd.xlane.f32.xlu0 %v2974
        %v2976 = vpop.xlane.xlu0 %2975
        %v2977 = vsel %vm2934, %v2916, 0.0
        %2978 = vadd.xlane.f32.xlu0 %v2977
        %v2979 = vpop.xlane.xlu0 %2978
        %v2980 = vsel %vm2934, %v2917, 0.0
        %2981 = vadd.xlane.f32.xlu0 %v2980
        %v2982 = vpop.xlane.xlu0 %2981
        %v2983 = vsel %vm2934, %v2918, 0.0
        %2984 = vadd.xlane.f32.xlu0 %v2983
        %v2985 = vpop.xlane.xlu0 %2984
        %v2986 = vsel %vm2934, %v2919, 0.0
        %2987 = vadd.xlane.f32.xlu0 %v2986
        %v2988 = vpop.xlane.xlu0 %2987
        %v2989 = vsel %vm2934, %v2920, 0.0
        %2990 = vadd.xlane.f32.xlu0 %v2989
        %v2991 = vpop.xlane.xlu0 %2990
        %v2992 = vsel %vm2934, %v2921, 0.0
        %2993 = vadd.xlane.f32.xlu0 %v2992
        %v2994 = vpop.xlane.xlu0 %2993
        %v2995 = vsel %vm2934, %v2922, 0.0
        %2996 = vadd.xlane.f32.xlu0 %v2995
        %v2997 = vpop.xlane.xlu0 %2996
        %v2998 = vsel %vm2934, %v2923, 0.0
        %2999 = vadd.xlane.f32.xlu0 %v2998
        %v3000 = vpop.xlane.xlu0 %2999
        %v3001 = vsel %vm2934, %v2924, 0.0
        %3002 = vadd.xlane.f32.xlu0 %v3001
        %v3003 = vpop.xlane.xlu0 %3002
        %v3004 = vsel %vm2934, %v2925, 0.0
        %3005 = vadd.xlane.f32.xlu0 %v3004
        %v3006 = vpop.xlane.xlu0 %3005
        %v3007 = vsel %vm2934, %v2926, 0.0
        %3008 = vadd.xlane.f32.xlu0 %v3007
        %v3009 = vpop.xlane.xlu0 %3008
        %v3010 = vsel %vm2934, %v2927, 0.0
        %3011 = vadd.xlane.f32.xlu0 %v3010
        %v3012 = vpop.xlane.xlu0 %3011
        %v3013 = vsel %vm2934, %v2928, 0.0
        %3014 = vadd.xlane.f32.xlu0 %v3013
        %v3015 = vpop.xlane.xlu0 %3014
        %v3016 = vsel %vm2934, %v2929, 0.0
        %3017 = vadd.xlane.f32.xlu0 %v3016
        %v3018 = vpop.xlane.xlu0 %3017
        %v3019 = vsel %vm2934, %v2930, 0.0
        %3020 = vadd.xlane.f32.xlu0 %v3019
        %v3021 = vpop.xlane.xlu0 %3020
        %v3022 = vsel %vm2934, %v2931, 0.0
        %3023 = vadd.xlane.f32.xlu0 %v3022
        %v3024 = vpop.xlane.xlu0 %3023
        %v3025 = vsel %vm2934, %v2932, 0.0
        %3026 = vadd.xlane.f32.xlu0 %v3025
        %v3027 = vpop.xlane.xlu0 %3026
        %v3028 = vsel %vm2934, %v2933, 0.0
        %3029 = vadd.xlane.f32.xlu0 %v3028
        %v3030 = vpop.xlane.xlu0 %3029
        %v3031 = vmul.f32 %v2937, 0.5
        %v3032 = vmul.f32 %v2940, 0.5
        %v3033 = vmul.f32 %v2943, 0.5
        %v3034 = vmul.f32 %v2946, 0.5
        %v3035 = vmul.f32 %v2949, 0.5
        %v3036 = vmul.f32 %v2952, 0.5
        %v3037 = vmul.f32 %v2955, 0.5
        %v3038 = vmul.f32 %v2958, 0.5
        %v3039 = vmul.f32 %v2961, 0.5
        %v3040 = vmul.f32 %v2964, 0.5
        %v3041 = vmul.f32 %v2967, 0.5
        %v3042 = vmul.f32 %v2970, 0.5
        %v3043 = vmul.f32 %v2973, 0.5
        %v3044 = vmul.f32 %v2976, 0.5
        %v3045 = vmul.f32 %v2979, 0.5
        %v3046 = vmul.f32 %v2982, 0.5
        %v3047 = vmul.f32 %v2985, 0.5
        %v3048 = vmul.f32 %v2988, 0.5
        %v3049 = vmul.f32 %v2991, 0.5
        %v3050 = vmul.f32 %v2994, 0.5
        %v3051 = vmul.f32 %v2997, 0.5
        %v3052 = vmul.f32 %v3000, 0.5
        %v3053 = vmul.f32 %v3003, 0.5
        %v3054 = vmul.f32 %v3006, 0.5
        %v3055 = vmul.f32 %v3009, 0.5
        %v3056 = vmul.f32 %v3012, 0.5
        %v3057 = vmul.f32 %v3015, 0.5
        %v3058 = vmul.f32 %v3018, 0.5
        %v3059 = vmul.f32 %v3021, 0.5
        %v3060 = vmul.f32 %v3024, 0.5
        %v3061 = vmul.f32 %v3027, 0.5
        %v3062 = vmul.f32 %v3030, 0.5
        %v3063 = vsub.f32 %v2902, %v3031
        %v3064 = vsub.f32 %v2903, %v3032
        %v3065 = vsub.f32 %v2904, %v3033
        %v3066 = vsub.f32 %v2905, %v3034
        %v3067 = vsub.f32 %v2906, %v3035
        %v3068 = vsub.f32 %v2907, %v3036
        %v3069 = vsub.f32 %v2908, %v3037
        %v3070 = vsub.f32 %v2909, %v3038
        %v3071 = vsub.f32 %v2910, %v3039
        %v3072 = vsub.f32 %v2911, %v3040
        %v3073 = vsub.f32 %v2912, %v3041
        %v3074 = vsub.f32 %v2913, %v3042
        %v3075 = vsub.f32 %v2914, %v3043
        %v3076 = vsub.f32 %v2915, %v3044
        %v3077 = vsub.f32 %v2916, %v3045
        %v3078 = vsub.f32 %v2917, %v3046
        %v3079 = vsub.f32 %v2918, %v3047
        %v3080 = vsub.f32 %v2919, %v3048
        %v3081 = vsub.f32 %v2920, %v3049
        %v3082 = vsub.f32 %v2921, %v3050
        %v3083 = vsub.f32 %v2922, %v3051
        %v3084 = vsub.f32 %v2923, %v3052
        %v3085 = vsub.f32 %v2924, %v3053
        %v3086 = vsub.f32 %v2925, %v3054
        %v3087 = vsub.f32 %v2926, %v3055
        %v3088 = vsub.f32 %v2927, %v3056
        %v3089 = vsub.f32 %v2928, %v3057
        %v3090 = vsub.f32 %v2929, %v3058
        %v3091 = vsub.f32 %v2930, %v3059
        %v3092 = vsub.f32 %v2931, %v3060
        %v3093 = vsub.f32 %v2932, %v3061
        %v3094 = vsub.f32 %v2933, %v3062
        %v3095 = vmul.f32 %v3063, %v3063
        %v3096 = vmul.f32 %v3064, %v3064
        %v3097 = vmul.f32 %v3065, %v3065
        %v3098 = vmul.f32 %v3066, %v3066
        %v3099 = vmul.f32 %v3067, %v3067
        %v3100 = vmul.f32 %v3068, %v3068
        %v3101 = vmul.f32 %v3069, %v3069
        %v3102 = vmul.f32 %v3070, %v3070
        %v3103 = vmul.f32 %v3071, %v3071
        %v3104 = vmul.f32 %v3072, %v3072
        %v3105 = vmul.f32 %v3073, %v3073
        %v3106 = vmul.f32 %v3074, %v3074
        %v3107 = vmul.f32 %v3075, %v3075
        %v3108 = vmul.f32 %v3076, %v3076
        %v3109 = vmul.f32 %v3077, %v3077
        %v3110 = vmul.f32 %v3078, %v3078
        %v3111 = vmul.f32 %v3079, %v3079
        %v3112 = vmul.f32 %v3080, %v3080
        %v3113 = vmul.f32 %v3081, %v3081
        %v3114 = vmul.f32 %v3082, %v3082
        %v3115 = vmul.f32 %v3083, %v3083
        %v3116 = vmul.f32 %v3084, %v3084
        %v3117 = vmul.f32 %v3085, %v3085
        %v3118 = vmul.f32 %v3086, %v3086
        %v3119 = vmul.f32 %v3087, %v3087
        %v3120 = vmul.f32 %v3088, %v3088
        %v3121 = vmul.f32 %v3089, %v3089
        %v3122 = vmul.f32 %v3090, %v3090
        %v3123 = vmul.f32 %v3091, %v3091
        %v3124 = vmul.f32 %v3092, %v3092
        %v3125 = vmul.f32 %v3093, %v3093
        %v3126 = vmul.f32 %v3094, %v3094
        %v3127 = vsel %vm2934, %v3095, 0.0
        %3128 = vadd.xlane.f32.xlu0 %v3127
        %v3129 = vpop.xlane.xlu0 %3128
        %v3130 = vsel %vm2934, %v3096, 0.0
        %3131 = vadd.xlane.f32.xlu0 %v3130
        %v3132 = vpop.xlane.xlu0 %3131
        %v3133 = vsel %vm2934, %v3097, 0.0
        %3134 = vadd.xlane.f32.xlu0 %v3133
        %v3135 = vpop.xlane.xlu0 %3134
        %v3136 = vsel %vm2934, %v3098, 0.0
        %3137 = vadd.xlane.f32.xlu0 %v3136
        %v3138 = vpop.xlane.xlu0 %3137
        %v3139 = vsel %vm2934, %v3099, 0.0
        %3140 = vadd.xlane.f32.xlu0 %v3139
        %v3141 = vpop.xlane.xlu0 %3140
        %v3142 = vsel %vm2934, %v3100, 0.0
        %3143 = vadd.xlane.f32.xlu0 %v3142
        %v3144 = vpop.xlane.xlu0 %3143
        %v3145 = vsel %vm2934, %v3101, 0.0
        %3146 = vadd.xlane.f32.xlu0 %v3145
        %v3147 = vpop.xlane.xlu0 %3146
        %v3148 = vsel %vm2934, %v3102, 0.0
        %3149 = vadd.xlane.f32.xlu0 %v3148
        %v3150 = vpop.xlane.xlu0 %3149
        %v3151 = vsel %vm2934, %v3103, 0.0
        %3152 = vadd.xlane.f32.xlu0 %v3151
        %v3153 = vpop.xlane.xlu0 %3152
        %v3154 = vsel %vm2934, %v3104, 0.0
        %3155 = vadd.xlane.f32.xlu0 %v3154
        %v3156 = vpop.xlane.xlu0 %3155
        %v3157 = vsel %vm2934, %v3105, 0.0
        %3158 = vadd.xlane.f32.xlu0 %v3157
        %v3159 = vpop.xlane.xlu0 %3158
        %v3160 = vsel %vm2934, %v3106, 0.0
        %3161 = vadd.xlane.f32.xlu0 %v3160
        %v3162 = vpop.xlane.xlu0 %3161
        %v3163 = vsel %vm2934, %v3107, 0.0
        %3164 = vadd.xlane.f32.xlu0 %v3163
        %v3165 = vpop.xlane.xlu0 %3164
        %v3166 = vsel %vm2934, %v3108, 0.0
        %3167 = vadd.xlane.f32.xlu0 %v3166
        %v3168 = vpop.xlane.xlu0 %3167
        %v3169 = vsel %vm2934, %v3109, 0.0
        %3170 = vadd.xlane.f32.xlu0 %v3169
        %v3171 = vpop.xlane.xlu0 %3170
        %v3172 = vsel %vm2934, %v3110, 0.0
        %3173 = vadd.xlane.f32.xlu0 %v3172
        %v3174 = vpop.xlane.xlu0 %3173
        %v3175 = vsel %vm2934, %v3111, 0.0
        %3176 = vadd.xlane.f32.xlu0 %v3175
        %v3177 = vpop.xlane.xlu0 %3176
        %v3178 = vsel %vm2934, %v3112, 0.0
        %3179 = vadd.xlane.f32.xlu0 %v3178
        %v3180 = vpop.xlane.xlu0 %3179
        %v3181 = vsel %vm2934, %v3113, 0.0
        %3182 = vadd.xlane.f32.xlu0 %v3181
        %v3183 = vpop.xlane.xlu0 %3182
        %v3184 = vsel %vm2934, %v3114, 0.0
        %3185 = vadd.xlane.f32.xlu0 %v3184
        %v3186 = vpop.xlane.xlu0 %3185
        %v3187 = vsel %vm2934, %v3115, 0.0
        %3188 = vadd.xlane.f32.xlu0 %v3187
        %v3189 = vpop.xlane.xlu0 %3188
        %v3190 = vsel %vm2934, %v3116, 0.0
        %3191 = vadd.xlane.f32.xlu0 %v3190
        %v3192 = vpop.xlane.xlu0 %3191
        %v3193 = vsel %vm2934, %v3117, 0.0
        %3194 = vadd.xlane.f32.xlu0 %v3193
        %v3195 = vpop.xlane.xlu0 %3194
        %v3196 = vsel %vm2934, %v3118, 0.0
        %3197 = vadd.xlane.f32.xlu0 %v3196
        %v3198 = vpop.xlane.xlu0 %3197
        %v3199 = vsel %vm2934, %v3119, 0.0
        %3200 = vadd.xlane.f32.xlu0 %v3199
        %v3201 = vpop.xlane.xlu0 %3200
        %v3202 = vsel %vm2934, %v3120, 0.0
        %3203 = vadd.xlane.f32.xlu0 %v3202
        %v3204 = vpop.xlane.xlu0 %3203
        %v3205 = vsel %vm2934, %v3121, 0.0
        %3206 = vadd.xlane.f32.xlu0 %v3205
        %v3207 = vpop.xlane.xlu0 %3206
        %v3208 = vsel %vm2934, %v3122, 0.0
        %3209 = vadd.xlane.f32.xlu0 %v3208
        %v3210 = vpop.xlane.xlu0 %3209
        %v3211 = vsel %vm2934, %v3123, 0.0
        %3212 = vadd.xlane.f32.xlu0 %v3211
        %v3213 = vpop.xlane.xlu0 %3212
        %v3214 = vsel %vm2934, %v3124, 0.0
        %3215 = vadd.xlane.f32.xlu0 %v3214
        %v3216 = vpop.xlane.xlu0 %3215
        %v3217 = vsel %vm2934, %v3125, 0.0
        %3218 = vadd.xlane.f32.xlu0 %v3217
        %v3219 = vpop.xlane.xlu0 %3218
        %v3220 = vsel %vm2934, %v3126, 0.0
        %3221 = vadd.xlane.f32.xlu0 %v3220
        %v3222 = vpop.xlane.xlu0 %3221
        %v3223 = vmul.f32 %v3129, 0.5
        %v3224 = vmul.f32 %v3132, 0.5
        %v3225 = vmul.f32 %v3135, 0.5
        %v3226 = vmul.f32 %v3138, 0.5
        %v3227 = vmul.f32 %v3141, 0.5
        %v3228 = vmul.f32 %v3144, 0.5
        %v3229 = vmul.f32 %v3147, 0.5
        %v3230 = vmul.f32 %v3150, 0.5
        %v3231 = vmul.f32 %v3153, 0.5
        %v3232 = vmul.f32 %v3156, 0.5
        %v3233 = vmul.f32 %v3159, 0.5
        %v3234 = vmul.f32 %v3162, 0.5
        %v3235 = vmul.f32 %v3165, 0.5
        %v3236 = vmul.f32 %v3168, 0.5
        %v3237 = vmul.f32 %v3171, 0.5
        %v3238 = vmul.f32 %v3174, 0.5
        %v3239 = vmul.f32 %v3177, 0.5
        %v3240 = vmul.f32 %v3180, 0.5
        %v3241 = vmul.f32 %v3183, 0.5
        %v3242 = vmul.f32 %v3186, 0.5
        %v3243 = vmul.f32 %v3189, 0.5
        %v3244 = vmul.f32 %v3192, 0.5
        %v3245 = vmul.f32 %v3195, 0.5
        %v3246 = vmul.f32 %v3198, 0.5
        %v3247 = vmul.f32 %v3201, 0.5
        %v3248 = vmul.f32 %v3204, 0.5
        %v3249 = vmul.f32 %v3207, 0.5
        %v3250 = vmul.f32 %v3210, 0.5
        %v3251 = vmul.f32 %v3213, 0.5
        %v3252 = vmul.f32 %v3216, 0.5
        %v3253 = vmul.f32 %v3219, 0.5
        %v3254 = vmul.f32 %v3222, 0.5
        %v3255 = vmax.f32 %v3223, 0.0
        %v3256 = vmax.f32 %v3224, 0.0
        %v3257 = vmax.f32 %v3225, 0.0
        %v3258 = vmax.f32 %v3226, 0.0
        %v3259 = vmax.f32 %v3227, 0.0
        %v3260 = vmax.f32 %v3228, 0.0
        %v3261 = vmax.f32 %v3229, 0.0
        %v3262 = vmax.f32 %v3230, 0.0
        %v3263 = vmax.f32 %v3231, 0.0
        %v3264 = vmax.f32 %v3232, 0.0
        %v3265 = vmax.f32 %v3233, 0.0
        %v3266 = vmax.f32 %v3234, 0.0
        %v3267 = vmax.f32 %v3235, 0.0
        %v3268 = vmax.f32 %v3236, 0.0
        %v3269 = vmax.f32 %v3237, 0.0
        %v3270 = vmax.f32 %v3238, 0.0
        %v3271 = vmax.f32 %v3239, 0.0
        %v3272 = vmax.f32 %v3240, 0.0
        %v3273 = vmax.f32 %v3241, 0.0
        %v3274 = vmax.f32 %v3242, 0.0
        %v3275 = vmax.f32 %v3243, 0.0
        %v3276 = vmax.f32 %v3244, 0.0
        %v3277 = vmax.f32 %v3245, 0.0
        %v3278 = vmax.f32 %v3246, 0.0
        %v3279 = vmax.f32 %v3247, 0.0
        %v3280 = vmax.f32 %v3248, 0.0
        %v3281 = vmax.f32 %v3249, 0.0
        %v3282 = vmax.f32 %v3250, 0.0
        %v3283 = vmax.f32 %v3251, 0.0
        %v3284 = vmax.f32 %v3252, 0.0
        %v3285 = vmax.f32 %v3253, 0.0
        %v3286 = vmax.f32 %v3254, 0.0
        %v3287 = vld [vmem:[%s514] sm:$0xff]
        %v3288 = vld [vmem:[%s514 + $0x8] sm:$0xff]
        %v3289 = vld [vmem:[%s514 + $0x10] sm:$0xff]
        %v3290 = vld [vmem:[%s514 + $0x18] sm:$0xff]
        %v3291 = vld [vmem:[%s514 + $0x20] sm:$0xff]
        %v3292 = vld [vmem:[%s514 + $0x28] sm:$0xff]
        %v3293 = vld [vmem:[%s514 + $0x30] sm:$0xff]
        %v3294 = vld [vmem:[%s514 + $0x38] sm:$0xff]
        %v3295 = vld [vmem:[%s514 + $0x40] sm:$0xff]
        %v3296 = vld [vmem:[%s514 + $0x48] sm:$0xff]
        %v3297 = vld [vmem:[%s514 + $0x50] sm:$0xff]
        %v3298 = vld [vmem:[%s514 + $0x58] sm:$0xff]
        %v3299 = vld [vmem:[%s514 + $0x60] sm:$0xff]
        %v3300 = vld [vmem:[%s514 + $0x68] sm:$0xff]
        %v3301 = vld [vmem:[%s514 + $0x70] sm:$0xff]
        %v3302 = vld [vmem:[%s514 + $0x78] sm:$0xff]
        %v3303 = vld [vmem:[%s514 + $0x80] sm:$0xff]
        %v3304 = vld [vmem:[%s514 + $0x88] sm:$0xff]
        %v3305 = vld [vmem:[%s514 + $0x90] sm:$0xff]
        %v3306 = vld [vmem:[%s514 + $0x98] sm:$0xff]
        %v3307 = vld [vmem:[%s514 + $0xa0] sm:$0xff]
        %v3308 = vld [vmem:[%s514 + $0xa8] sm:$0xff]
        %v3309 = vld [vmem:[%s514 + $0xb0] sm:$0xff]
        %v3310 = vld [vmem:[%s514 + $0xb8] sm:$0xff]
        %v3311 = vld [vmem:[%s514 + $0xc0] sm:$0xff]
        %v3312 = vld [vmem:[%s514 + $0xc8] sm:$0xff]
        %v3313 = vld [vmem:[%s514 + $0xd0] sm:$0xff]
        %v3314 = vld [vmem:[%s514 + $0xd8] sm:$0xff]
        %v3315 = vld [vmem:[%s514 + $0xe0] sm:$0xff]
        %v3316 = vld [vmem:[%s514 + $0xe8] sm:$0xff]
        %v3317 = vld [vmem:[%s514 + $0xf0] sm:$0xff]
        %v3318 = vld [vmem:[%s514 + $0xf8] sm:$0xff]
        %v3319 = vadd.f32 %v3255, 1e-05
        %v3320 = vadd.f32 %v3256, 1e-05
        %v3321 = vadd.f32 %v3257, 1e-05
        %v3322 = vadd.f32 %v3258, 1e-05
        %v3323 = vadd.f32 %v3259, 1e-05
        %v3324 = vadd.f32 %v3260, 1e-05
        %v3325 = vadd.f32 %v3261, 1e-05
        %v3326 = vadd.f32 %v3262, 1e-05
        %v3327 = vadd.f32 %v3263, 1e-05
        %v3328 = vadd.f32 %v3264, 1e-05
        %v3329 = vadd.f32 %v3265, 1e-05
        %v3330 = vadd.f32 %v3266, 1e-05
        %v3331 = vadd.f32 %v3267, 1e-05
        %v3332 = vadd.f32 %v3268, 1e-05
        %v3333 = vadd.f32 %v3269, 1e-05
        %v3334 = vadd.f32 %v3270, 1e-05
        %v3335 = vadd.f32 %v3271, 1e-05
        %v3336 = vadd.f32 %v3272, 1e-05
        %v3337 = vadd.f32 %v3273, 1e-05
        %v3338 = vadd.f32 %v3274, 1e-05
        %v3339 = vadd.f32 %v3275, 1e-05
        %v3340 = vadd.f32 %v3276, 1e-05
        %v3341 = vadd.f32 %v3277, 1e-05
        %v3342 = vadd.f32 %v3278, 1e-05
        %v3343 = vadd.f32 %v3279, 1e-05
        %v3344 = vadd.f32 %v3280, 1e-05
        %v3345 = vadd.f32 %v3281, 1e-05
        %v3346 = vadd.f32 %v3282, 1e-05
        %v3347 = vadd.f32 %v3283, 1e-05
        %v3348 = vadd.f32 %v3284, 1e-05
        %v3349 = vadd.f32 %v3285, 1e-05
        %v3350 = vadd.f32 %v3286, 1e-05
        %v3351 = vrsqrt.pop %v3319
        %v3352 = vrsqrt.pop %v3320
        %v3353 = vrsqrt.pop %v3321
        %v3354 = vrsqrt.pop %v3322
        %v3355 = vrsqrt.pop %v3323
        %v3356 = vrsqrt.pop %v3324
        %v3357 = vrsqrt.pop %v3325
        %v3358 = vrsqrt.pop %v3326
        %v3359 = vrsqrt.pop %v3327
        %v3360 = vrsqrt.pop %v3328
        %v3361 = vrsqrt.pop %v3329
        %v3362 = vrsqrt.pop %v3330
        %v3363 = vrsqrt.pop %v3331
        %v3364 = vrsqrt.pop %v3332
        %v3365 = vrsqrt.pop %v3333
        %v3366 = vrsqrt.pop %v3334
        %v3367 = vrsqrt.pop %v3335
        %v3368 = vrsqrt.pop %v3336
        %v3369 = vrsqrt.pop %v3337
        %v3370 = vrsqrt.pop %v3338
        %v3371 = vrsqrt.pop %v3339
        %v3372 = vrsqrt.pop %v3340
        %v3373 = vrsqrt.pop %v3341
        %v3374 = vrsqrt.pop %v3342
        %v3375 = vrsqrt.pop %v3343
        %v3376 = vrsqrt.pop %v3344
        %v3377 = vrsqrt.pop %v3345
        %v3378 = vrsqrt.pop %v3346
        %v3379 = vrsqrt.pop %v3347
        %v3380 = vrsqrt.pop %v3348
        %v3381 = vrsqrt.pop %v3349
        %v3382 = vrsqrt.pop %v3350
        %v3383 = vmul.f32 %v3287, %v3351
        %v3384 = vmul.f32 %v3288, %v3352
        %v3385 = vmul.f32 %v3289, %v3353
        %v3386 = vmul.f32 %v3290, %v3354
        %v3387 = vmul.f32 %v3291, %v3355
        %v3388 = vmul.f32 %v3292, %v3356
        %v3389 = vmul.f32 %v3293, %v3357
        %v3390 = vmul.f32 %v3294, %v3358
        %v3391 = vmul.f32 %v3295, %v3359
        %v3392 = vmul.f32 %v3296, %v3360
        %v3393 = vmul.f32 %v3297, %v3361
        %v3394 = vmul.f32 %v3298, %v3362
        %v3395 = vmul.f32 %v3299, %v3363
        %v3396 = vmul.f32 %v3300, %v3364
        %v3397 = vmul.f32 %v3301, %v3365
        %v3398 = vmul.f32 %v3302, %v3366
        %v3399 = vmul.f32 %v3303, %v3367
        %v3400 = vmul.f32 %v3304, %v3368
        %v3401 = vmul.f32 %v3305, %v3369
        %v3402 = vmul.f32 %v3306, %v3370
        %v3403 = vmul.f32 %v3307, %v3371
        %v3404 = vmul.f32 %v3308, %v3372
        %v3405 = vmul.f32 %v3309, %v3373
        %v3406 = vmul.f32 %v3310, %v3374
        %v3407 = vmul.f32 %v3311, %v3375
        %v3408 = vmul.f32 %v3312, %v3376
        %v3409 = vmul.f32 %v3313, %v3377
        %v3410 = vmul.f32 %v3314, %v3378
        %v3411 = vmul.f32 %v3315, %v3379
        %v3412 = vmul.f32 %v3316, %v3380
        %v3413 = vmul.f32 %v3317, %v3381
        %v3414 = vmul.f32 %v3318, %v3382
        %3416 = vset.pattern.permute.xlu0 0
        %3417 = vperm.xlu0 %3416, %v3383
        %v3418 = vpop.permute.xlu0 %3417
        %3421 = vset.pattern.permute.xlu0 0
        %3422 = vperm.xlu0 %3421, %v3384
        %v3423 = vpop.permute.xlu0 %3422
        %3426 = vset.pattern.permute.xlu0 0
        %3427 = vperm.xlu0 %3426, %v3385
        %v3428 = vpop.permute.xlu0 %3427
        %3431 = vset.pattern.permute.xlu0 0
        %3432 = vperm.xlu0 %3431, %v3386
        %v3433 = vpop.permute.xlu0 %3432
        %3436 = vset.pattern.permute.xlu0 0
        %3437 = vperm.xlu0 %3436, %v3387
        %v3438 = vpop.permute.xlu0 %3437
        %3441 = vset.pattern.permute.xlu0 0
        %3442 = vperm.xlu0 %3441, %v3388
        %v3443 = vpop.permute.xlu0 %3442
        %3446 = vset.pattern.permute.xlu0 0
        %3447 = vperm.xlu0 %3446, %v3389
        %v3448 = vpop.permute.xlu0 %3447
        %3451 = vset.pattern.permute.xlu0 0
        %3452 = vperm.xlu0 %3451, %v3390
        %v3453 = vpop.permute.xlu0 %3452
        %3456 = vset.pattern.permute.xlu0 0
        %3457 = vperm.xlu0 %3456, %v3391
        %v3458 = vpop.permute.xlu0 %3457
        %3461 = vset.pattern.permute.xlu0 0
        %3462 = vperm.xlu0 %3461, %v3392
        %v3463 = vpop.permute.xlu0 %3462
        %3466 = vset.pattern.permute.xlu0 0
        %3467 = vperm.xlu0 %3466, %v3393
        %v3468 = vpop.permute.xlu0 %3467
        %3471 = vset.pattern.permute.xlu0 0
        %3472 = vperm.xlu0 %3471, %v3394
        %v3473 = vpop.permute.xlu0 %3472
        %3476 = vset.pattern.permute.xlu0 0
        %3477 = vperm.xlu0 %3476, %v3395
        %v3478 = vpop.permute.xlu0 %3477
        %3481 = vset.pattern.permute.xlu0 0
        %3482 = vperm.xlu0 %3481, %v3396
        %v3483 = vpop.permute.xlu0 %3482
        %3486 = vset.pattern.permute.xlu0 0
        %3487 = vperm.xlu0 %3486, %v3397
        %v3488 = vpop.permute.xlu0 %3487
        %3491 = vset.pattern.permute.xlu0 0
        %3492 = vperm.xlu0 %3491, %v3398
        %v3493 = vpop.permute.xlu0 %3492
        %3496 = vset.pattern.permute.xlu0 0
        %3497 = vperm.xlu0 %3496, %v3399
        %v3498 = vpop.permute.xlu0 %3497
        %3501 = vset.pattern.permute.xlu0 0
        %3502 = vperm.xlu0 %3501, %v3400
        %v3503 = vpop.permute.xlu0 %3502
        %3506 = vset.pattern.permute.xlu0 0
        %3507 = vperm.xlu0 %3506, %v3401
        %v3508 = vpop.permute.xlu0 %3507
        %3511 = vset.pattern.permute.xlu0 0
        %3512 = vperm.xlu0 %3511, %v3402
        %v3513 = vpop.permute.xlu0 %3512
        %3516 = vset.pattern.permute.xlu0 0
        %3517 = vperm.xlu0 %3516, %v3403
        %v3518 = vpop.permute.xlu0 %3517
        %3521 = vset.pattern.permute.xlu0 0
        %3522 = vperm.xlu0 %3521, %v3404
        %v3523 = vpop.permute.xlu0 %3522
        %3526 = vset.pattern.permute.xlu0 0
        %3527 = vperm.xlu0 %3526, %v3405
        %v3528 = vpop.permute.xlu0 %3527
        %3531 = vset.pattern.permute.xlu0 0
        %3532 = vperm.xlu0 %3531, %v3406
        %v3533 = vpop.permute.xlu0 %3532
        %3536 = vset.pattern.permute.xlu0 0
        %3537 = vperm.xlu0 %3536, %v3407
        %v3538 = vpop.permute.xlu0 %3537
        %3541 = vset.pattern.permute.xlu0 0
        %3542 = vperm.xlu0 %3541, %v3408
        %v3543 = vpop.permute.xlu0 %3542
        %3546 = vset.pattern.permute.xlu0 0
        %3547 = vperm.xlu0 %3546, %v3409
        %v3548 = vpop.permute.xlu0 %3547
        %3551 = vset.pattern.permute.xlu0 0
        %3552 = vperm.xlu0 %3551, %v3410
        %v3553 = vpop.permute.xlu0 %3552
        %3556 = vset.pattern.permute.xlu0 0
        %3557 = vperm.xlu0 %3556, %v3411
        %v3558 = vpop.permute.xlu0 %3557
        %3561 = vset.pattern.permute.xlu0 0
        %3562 = vperm.xlu0 %3561, %v3412
        %v3563 = vpop.permute.xlu0 %3562
        %3566 = vset.pattern.permute.xlu0 0
        %3567 = vperm.xlu0 %3566, %v3413
        %v3568 = vpop.permute.xlu0 %3567
        %3571 = vset.pattern.permute.xlu0 0
        %3572 = vperm.xlu0 %3571, %v3414
        %v3573 = vpop.permute.xlu0 %3572
        %v3575 = vmul.f32 %v2902, %v3418
        %v3576 = vmul.f32 %v2903, %v3423
        %v3577 = vmul.f32 %v2904, %v3428
        %v3578 = vmul.f32 %v2905, %v3433
        %v3579 = vmul.f32 %v2906, %v3438
        %v3580 = vmul.f32 %v2907, %v3443
        %v3581 = vmul.f32 %v2908, %v3448
        %v3582 = vmul.f32 %v2909, %v3453
        %v3583 = vmul.f32 %v2910, %v3458
        %v3584 = vmul.f32 %v2911, %v3463
        %v3585 = vmul.f32 %v2912, %v3468
        %v3586 = vmul.f32 %v2913, %v3473
        %v3587 = vmul.f32 %v2914, %v3478
        %v3588 = vmul.f32 %v2915, %v3483
        %v3589 = vmul.f32 %v2916, %v3488
        %v3590 = vmul.f32 %v2917, %v3493
        %v3591 = vmul.f32 %v2918, %v3498
        %v3592 = vmul.f32 %v2919, %v3503
        %v3593 = vmul.f32 %v2920, %v3508
        %v3594 = vmul.f32 %v2921, %v3513
        %v3595 = vmul.f32 %v2922, %v3518
        %v3596 = vmul.f32 %v2923, %v3523
        %v3597 = vmul.f32 %v2924, %v3528
        %v3598 = vmul.f32 %v2925, %v3533
        %v3599 = vmul.f32 %v2926, %v3538
        %v3600 = vmul.f32 %v2927, %v3543
        %v3601 = vmul.f32 %v2928, %v3548
        %v3602 = vmul.f32 %v2929, %v3553
        %v3603 = vmul.f32 %v2930, %v3558
        %v3604 = vmul.f32 %v2931, %v3563
        %v3605 = vmul.f32 %v2932, %v3568
        %v3606 = vmul.f32 %v2933, %v3573
        %v3607 = vld [vmem:[%s520] sm:$0xff]
        %v3608 = vld [vmem:[%s520 + $0x8] sm:$0xff]
        %v3609 = vld [vmem:[%s520 + $0x10] sm:$0xff]
        %v3610 = vld [vmem:[%s520 + $0x18] sm:$0xff]
        %v3611 = vld [vmem:[%s520 + $0x20] sm:$0xff]
        %v3612 = vld [vmem:[%s520 + $0x28] sm:$0xff]
        %v3613 = vld [vmem:[%s520 + $0x30] sm:$0xff]
        %v3614 = vld [vmem:[%s520 + $0x38] sm:$0xff]
        %v3615 = vld [vmem:[%s520 + $0x40] sm:$0xff]
        %v3616 = vld [vmem:[%s520 + $0x48] sm:$0xff]
        %v3617 = vld [vmem:[%s520 + $0x50] sm:$0xff]
        %v3618 = vld [vmem:[%s520 + $0x58] sm:$0xff]
        %v3619 = vld [vmem:[%s520 + $0x60] sm:$0xff]
        %v3620 = vld [vmem:[%s520 + $0x68] sm:$0xff]
        %v3621 = vld [vmem:[%s520 + $0x70] sm:$0xff]
        %v3622 = vld [vmem:[%s520 + $0x78] sm:$0xff]
        %v3623 = vld [vmem:[%s520 + $0x80] sm:$0xff]
        %v3624 = vld [vmem:[%s520 + $0x88] sm:$0xff]
        %v3625 = vld [vmem:[%s520 + $0x90] sm:$0xff]
        %v3626 = vld [vmem:[%s520 + $0x98] sm:$0xff]
        %v3627 = vld [vmem:[%s520 + $0xa0] sm:$0xff]
        %v3628 = vld [vmem:[%s520 + $0xa8] sm:$0xff]
        %v3629 = vld [vmem:[%s520 + $0xb0] sm:$0xff]
        %v3630 = vld [vmem:[%s520 + $0xb8] sm:$0xff]
        %v3631 = vld [vmem:[%s520 + $0xc0] sm:$0xff]
        %v3632 = vld [vmem:[%s520 + $0xc8] sm:$0xff]
        %v3633 = vld [vmem:[%s520 + $0xd0] sm:$0xff]
        %v3634 = vld [vmem:[%s520 + $0xd8] sm:$0xff]
        %v3635 = vld [vmem:[%s520 + $0xe0] sm:$0xff]
        %v3636 = vld [vmem:[%s520 + $0xe8] sm:$0xff]
        %v3637 = vld [vmem:[%s520 + $0xf0] sm:$0xff]
        %v3638 = vld [vmem:[%s520 + $0xf8] sm:$0xff]
        %v3639 = vmul.f32 %v3031, %v3383
        %v3640 = vmul.f32 %v3032, %v3384
        %v3641 = vmul.f32 %v3033, %v3385
        %v3642 = vmul.f32 %v3034, %v3386
        %v3643 = vmul.f32 %v3035, %v3387
        %v3644 = vmul.f32 %v3036, %v3388
        %v3645 = vmul.f32 %v3037, %v3389
        %v3646 = vmul.f32 %v3038, %v3390
        %v3647 = vmul.f32 %v3039, %v3391
        %v3648 = vmul.f32 %v3040, %v3392
        %v3649 = vmul.f32 %v3041, %v3393
        %v3650 = vmul.f32 %v3042, %v3394
        %v3651 = vmul.f32 %v3043, %v3395
        %v3652 = vmul.f32 %v3044, %v3396
        %v3653 = vmul.f32 %v3045, %v3397
        %v3654 = vmul.f32 %v3046, %v3398
        %v3655 = vmul.f32 %v3047, %v3399
        %v3656 = vmul.f32 %v3048, %v3400
        %v3657 = vmul.f32 %v3049, %v3401
        %v3658 = vmul.f32 %v3050, %v3402
        %v3659 = vmul.f32 %v3051, %v3403
        %v3660 = vmul.f32 %v3052, %v3404
        %v3661 = vmul.f32 %v3053, %v3405
        %v3662 = vmul.f32 %v3054, %v3406
        %v3663 = vmul.f32 %v3055, %v3407
        %v3664 = vmul.f32 %v3056, %v3408
        %v3665 = vmul.f32 %v3057, %v3409
        %v3666 = vmul.f32 %v3058, %v3410
        %v3667 = vmul.f32 %v3059, %v3411
        %v3668 = vmul.f32 %v3060, %v3412
        %v3669 = vmul.f32 %v3061, %v3413
        %v3670 = vmul.f32 %v3062, %v3414
        %v3671 = vsub.f32 %v3607, %v3639
        %v3672 = vsub.f32 %v3608, %v3640
        %v3673 = vsub.f32 %v3609, %v3641
        %v3674 = vsub.f32 %v3610, %v3642
        %v3675 = vsub.f32 %v3611, %v3643
        %v3676 = vsub.f32 %v3612, %v3644
        %v3677 = vsub.f32 %v3613, %v3645
        %v3678 = vsub.f32 %v3614, %v3646
        %v3679 = vsub.f32 %v3615, %v3647
        %v3680 = vsub.f32 %v3616, %v3648
        %v3681 = vsub.f32 %v3617, %v3649
        %v3682 = vsub.f32 %v3618, %v3650
        %v3683 = vsub.f32 %v3619, %v3651
        %v3684 = vsub.f32 %v3620, %v3652
        %v3685 = vsub.f32 %v3621, %v3653
        %v3686 = vsub.f32 %v3622, %v3654
        %v3687 = vsub.f32 %v3623, %v3655
        %v3688 = vsub.f32 %v3624, %v3656
        %v3689 = vsub.f32 %v3625, %v3657
        %v3690 = vsub.f32 %v3626, %v3658
        %v3691 = vsub.f32 %v3627, %v3659
        %v3692 = vsub.f32 %v3628, %v3660
        %v3693 = vsub.f32 %v3629, %v3661
        %v3694 = vsub.f32 %v3630, %v3662
        %v3695 = vsub.f32 %v3631, %v3663
        %v3696 = vsub.f32 %v3632, %v3664
        %v3697 = vsub.f32 %v3633, %v3665
        %v3698 = vsub.f32 %v3634, %v3666
        %v3699 = vsub.f32 %v3635, %v3667
        %v3700 = vsub.f32 %v3636, %v3668
        %v3701 = vsub.f32 %v3637, %v3669
        %v3702 = vsub.f32 %v3638, %v3670
        %3704 = vset.pattern.permute.xlu0 0
        %3705 = vperm.xlu0 %3704, %v3671
        %v3706 = vpop.permute.xlu0 %3705
        %3709 = vset.pattern.permute.xlu0 0
        %3710 = vperm.xlu0 %3709, %v3672
        %v3711 = vpop.permute.xlu0 %3710
        %3714 = vset.pattern.permute.xlu0 0
        %3715 = vperm.xlu0 %3714, %v3673
        %v3716 = vpop.permute.xlu0 %3715
        %3719 = vset.pattern.permute.xlu0 0
        %3720 = vperm.xlu0 %3719, %v3674
        %v3721 = vpop.permute.xlu0 %3720
        %3724 = vset.pattern.permute.xlu0 0
        %3725 = vperm.xlu0 %3724, %v3675
        %v3726 = vpop.permute.xlu0 %3725
        %3729 = vset.pattern.permute.xlu0 0
        %3730 = vperm.xlu0 %3729, %v3676
        %v3731 = vpop.permute.xlu0 %3730
        %3734 = vset.pattern.permute.xlu0 0
        %3735 = vperm.xlu0 %3734, %v3677
        %v3736 = vpop.permute.xlu0 %3735
        %3739 = vset.pattern.permute.xlu0 0
        %3740 = vperm.xlu0 %3739, %v3678
        %v3741 = vpop.permute.xlu0 %3740
        %3744 = vset.pattern.permute.xlu0 0
        %3745 = vperm.xlu0 %3744, %v3679
        %v3746 = vpop.permute.xlu0 %3745
        %3749 = vset.pattern.permute.xlu0 0
        %3750 = vperm.xlu0 %3749, %v3680
        %v3751 = vpop.permute.xlu0 %3750
        %3754 = vset.pattern.permute.xlu0 0
        %3755 = vperm.xlu0 %3754, %v3681
        %v3756 = vpop.permute.xlu0 %3755
        %3759 = vset.pattern.permute.xlu0 0
        %3760 = vperm.xlu0 %3759, %v3682
        %v3761 = vpop.permute.xlu0 %3760
        %3764 = vset.pattern.permute.xlu0 0
        %3765 = vperm.xlu0 %3764, %v3683
        %v3766 = vpop.permute.xlu0 %3765
        %3769 = vset.pattern.permute.xlu0 0
        %3770 = vperm.xlu0 %3769, %v3684
        %v3771 = vpop.permute.xlu0 %3770
        %3774 = vset.pattern.permute.xlu0 0
        %3775 = vperm.xlu0 %3774, %v3685
        %v3776 = vpop.permute.xlu0 %3775
        %3779 = vset.pattern.permute.xlu0 0
        %3780 = vperm.xlu0 %3779, %v3686
        %v3781 = vpop.permute.xlu0 %3780
        %3784 = vset.pattern.permute.xlu0 0
        %3785 = vperm.xlu0 %3784, %v3687
        %v3786 = vpop.permute.xlu0 %3785
        %3789 = vset.pattern.permute.xlu0 0
        %3790 = vperm.xlu0 %3789, %v3688
        %v3791 = vpop.permute.xlu0 %3790
        %3794 = vset.pattern.permute.xlu0 0
        %3795 = vperm.xlu0 %3794, %v3689
        %v3796 = vpop.permute.xlu0 %3795
        %3799 = vset.pattern.permute.xlu0 0
        %3800 = vperm.xlu0 %3799, %v3690
        %v3801 = vpop.permute.xlu0 %3800
        %3804 = vset.pattern.permute.xlu0 0
        %3805 = vperm.xlu0 %3804, %v3691
        %v3806 = vpop.permute.xlu0 %3805
        %3809 = vset.pattern.permute.xlu0 0
        %3810 = vperm.xlu0 %3809, %v3692
        %v3811 = vpop.permute.xlu0 %3810
        %3814 = vset.pattern.permute.xlu0 0
        %3815 = vperm.xlu0 %3814, %v3693
        %v3816 = vpop.permute.xlu0 %3815
        %3819 = vset.pattern.permute.xlu0 0
        %3820 = vperm.xlu0 %3819, %v3694
        %v3821 = vpop.permute.xlu0 %3820
        %3824 = vset.pattern.permute.xlu0 0
        %3825 = vperm.xlu0 %3824, %v3695
        %v3826 = vpop.permute.xlu0 %3825
        %3829 = vset.pattern.permute.xlu0 0
        %3830 = vperm.xlu0 %3829, %v3696
        %v3831 = vpop.permute.xlu0 %3830
        %3834 = vset.pattern.permute.xlu0 0
        %3835 = vperm.xlu0 %3834, %v3697
        %v3836 = vpop.permute.xlu0 %3835
        %3839 = vset.pattern.permute.xlu0 0
        %3840 = vperm.xlu0 %3839, %v3698
        %v3841 = vpop.permute.xlu0 %3840
        %3844 = vset.pattern.permute.xlu0 0
        %3845 = vperm.xlu0 %3844, %v3699
        %v3846 = vpop.permute.xlu0 %3845
        %3849 = vset.pattern.permute.xlu0 0
        %3850 = vperm.xlu0 %3849, %v3700
        %v3851 = vpop.permute.xlu0 %3850
        %3854 = vset.pattern.permute.xlu0 0
        %3855 = vperm.xlu0 %3854, %v3701
        %v3856 = vpop.permute.xlu0 %3855
        %3859 = vset.pattern.permute.xlu0 0
        %3860 = vperm.xlu0 %3859, %v3702
        %v3861 = vpop.permute.xlu0 %3860
        %v3863 = vadd.f32 %v3575, %v3706
        %v3864 = vadd.f32 %v3576, %v3711
        %v3865 = vadd.f32 %v3577, %v3716
        %v3866 = vadd.f32 %v3578, %v3721
        %v3867 = vadd.f32 %v3579, %v3726
        %v3868 = vadd.f32 %v3580, %v3731
        %v3869 = vadd.f32 %v3581, %v3736
        %v3870 = vadd.f32 %v3582, %v3741
        %v3871 = vadd.f32 %v3583, %v3746
        %v3872 = vadd.f32 %v3584, %v3751
        %v3873 = vadd.f32 %v3585, %v3756
        %v3874 = vadd.f32 %v3586, %v3761
        %v3875 = vadd.f32 %v3587, %v3766
        %v3876 = vadd.f32 %v3588, %v3771
        %v3877 = vadd.f32 %v3589, %v3776
        %v3878 = vadd.f32 %v3590, %v3781
        %v3879 = vadd.f32 %v3591, %v3786
        %v3880 = vadd.f32 %v3592, %v3791
        %v3881 = vadd.f32 %v3593, %v3796
        %v3882 = vadd.f32 %v3594, %v3801
        %v3883 = vadd.f32 %v3595, %v3806
        %v3884 = vadd.f32 %v3596, %v3811
        %v3885 = vadd.f32 %v3597, %v3816
        %v3886 = vadd.f32 %v3598, %v3821
        %v3887 = vadd.f32 %v3599, %v3826
        %v3888 = vadd.f32 %v3600, %v3831
        %v3889 = vadd.f32 %v3601, %v3836
        %v3890 = vadd.f32 %v3602, %v3841
        %v3891 = vadd.f32 %v3603, %v3846
        %v3892 = vadd.f32 %v3604, %v3851
        %v3893 = vadd.f32 %v3605, %v3856
        %v3894 = vadd.f32 %v3606, %v3861
        %3895 = vst.msk [vmem:[%s543] sm:$0xff] %vm2934, %v3863
        %3896 = vst.msk [vmem:[%s543 + $0x8] sm:$0xff] %vm2934, %v3864
        %3897 = vst.msk [vmem:[%s543 + $0x10] sm:$0xff] %vm2934, %v3865
        %3898 = vst.msk [vmem:[%s543 + $0x18] sm:$0xff] %vm2934, %v3866
        %3899 = vst.msk [vmem:[%s543 + $0x20] sm:$0xff] %vm2934, %v3867
        %3900 = vst.msk [vmem:[%s543 + $0x28] sm:$0xff] %vm2934, %v3868
        %3901 = vst.msk [vmem:[%s543 + $0x30] sm:$0xff] %vm2934, %v3869
        %3902 = vst.msk [vmem:[%s543 + $0x38] sm:$0xff] %vm2934, %v3870
        %3903 = vst.msk [vmem:[%s543 + $0x40] sm:$0xff] %vm2934, %v3871
        %3904 = vst.msk [vmem:[%s543 + $0x48] sm:$0xff] %vm2934, %v3872
        %3905 = vst.msk [vmem:[%s543 + $0x50] sm:$0xff] %vm2934, %v3873
        %3906 = vst.msk [vmem:[%s543 + $0x58] sm:$0xff] %vm2934, %v3874
        %3907 = vst.msk [vmem:[%s543 + $0x60] sm:$0xff] %vm2934, %v3875
        %3908 = vst.msk [vmem:[%s543 + $0x68] sm:$0xff] %vm2934, %v3876
        %3909 = vst.msk [vmem:[%s543 + $0x70] sm:$0xff] %vm2934, %v3877
        %3910 = vst.msk [vmem:[%s543 + $0x78] sm:$0xff] %vm2934, %v3878
        %3911 = vst.msk [vmem:[%s543 + $0x80] sm:$0xff] %vm2934, %v3879
        %3912 = vst.msk [vmem:[%s543 + $0x88] sm:$0xff] %vm2934, %v3880
        %3913 = vst.msk [vmem:[%s543 + $0x90] sm:$0xff] %vm2934, %v3881
        %3914 = vst.msk [vmem:[%s543 + $0x98] sm:$0xff] %vm2934, %v3882
        %3915 = vst.msk [vmem:[%s543 + $0xa0] sm:$0xff] %vm2934, %v3883
        %3916 = vst.msk [vmem:[%s543 + $0xa8] sm:$0xff] %vm2934, %v3884
        %3917 = vst.msk [vmem:[%s543 + $0xb0] sm:$0xff] %vm2934, %v3885
        %3918 = vst.msk [vmem:[%s543 + $0xb8] sm:$0xff] %vm2934, %v3886
        %3919 = vst.msk [vmem:[%s543 + $0xc0] sm:$0xff] %vm2934, %v3887
        %3920 = vst.msk [vmem:[%s543 + $0xc8] sm:$0xff] %vm2934, %v3888
        %3921 = vst.msk [vmem:[%s543 + $0xd0] sm:$0xff] %vm2934, %v3889
        %3922 = vst.msk [vmem:[%s543 + $0xd8] sm:$0xff] %vm2934, %v3890
        %3923 = vst.msk [vmem:[%s543 + $0xe0] sm:$0xff] %vm2934, %v3891
        %3924 = vst.msk [vmem:[%s543 + $0xe8] sm:$0xff] %vm2934, %v3892
        %3925 = vst.msk [vmem:[%s543 + $0xf0] sm:$0xff] %vm2934, %v3893
        %3926 = vst.msk [vmem:[%s543 + $0xf8] sm:$0xff] %vm2934, %v3894
      $region60: #{attention_encoder_forward.1} parent=47 // pred_fallthru
        _
      // Predicated region
      $region61: #{attention_encoder_forward.1} parent=47 // pred_check
        %p3927 = pneg %p1951
      $region62: #{attention_encoder_forward.1} parent=47 // pred_check_branch
        %3929 = sbr.rel (%p3927) target = $region64
      $region63: #{attention_encoder_forward.1} parent=47 // pred_region
        %s3930 = sadd.s32 %s28, %s29
        %s3931 = smul.u32 %s3930, 32
        %s3932 = smul.addr %s3931, 4
        %s3933 = scalar_lea.vmem [#allocation7], %s3932
        %v3934 = vld [vmem:[%s3933] sm:$0xf]
        %v3935 = vld [vmem:[%s3933 + $0x4] sm:$0xf]
        %v3936 = vld [vmem:[%s3933 + $0x8] sm:$0xf]
        %v3937 = vld [vmem:[%s3933 + $0xc] sm:$0xf]
        %v3938 = vld [vmem:[%s3933 + $0x10] sm:$0xf]
        %v3939 = vld [vmem:[%s3933 + $0x14] sm:$0xf]
        %v3940 = vld [vmem:[%s3933 + $0x18] sm:$0xf]
        %v3941 = vld [vmem:[%s3933 + $0x1c] sm:$0xf]
        %v3942 = vld [vmem:[%s3933 + $0x20] sm:$0xf]
        %v3943 = vld [vmem:[%s3933 + $0x24] sm:$0xf]
        %v3944 = vld [vmem:[%s3933 + $0x28] sm:$0xf]
        %v3945 = vld [vmem:[%s3933 + $0x2c] sm:$0xf]
        %v3946 = vld [vmem:[%s3933 + $0x30] sm:$0xf]
        %v3947 = vld [vmem:[%s3933 + $0x34] sm:$0xf]
        %v3948 = vld [vmem:[%s3933 + $0x38] sm:$0xf]
        %v3949 = vld [vmem:[%s3933 + $0x3c] sm:$0xf]
        %v3950 = vld [vmem:[%s3933 + $0x40] sm:$0xf]
        %v3951 = vld [vmem:[%s3933 + $0x44] sm:$0xf]
        %v3952 = vld [vmem:[%s3933 + $0x48] sm:$0xf]
        %v3953 = vld [vmem:[%s3933 + $0x4c] sm:$0xf]
        %v3954 = vld [vmem:[%s3933 + $0x50] sm:$0xf]
        %v3955 = vld [vmem:[%s3933 + $0x54] sm:$0xf]
        %v3956 = vld [vmem:[%s3933 + $0x58] sm:$0xf]
        %v3957 = vld [vmem:[%s3933 + $0x5c] sm:$0xf]
        %v3958 = vld [vmem:[%s3933 + $0x60] sm:$0xf]
        %v3959 = vld [vmem:[%s3933 + $0x64] sm:$0xf]
        %v3960 = vld [vmem:[%s3933 + $0x68] sm:$0xf]
        %v3961 = vld [vmem:[%s3933 + $0x6c] sm:$0xf]
        %v3962 = vld [vmem:[%s3933 + $0x70] sm:$0xf]
        %v3963 = vld [vmem:[%s3933 + $0x74] sm:$0xf]
        %v3964 = vld [vmem:[%s3933 + $0x78] sm:$0xf]
        %v3965 = vld [vmem:[%s3933 + $0x7c] sm:$0xf]
        %v3966 = vunpack.c.l.bf16 %v3934
        %v3967 = vunpack.c.l.bf16 %v3935
        %v3968 = vunpack.c.l.bf16 %v3936
        %v3969 = vunpack.c.l.bf16 %v3937
        %v3970 = vunpack.c.l.bf16 %v3938
        %v3971 = vunpack.c.l.bf16 %v3939
        %v3972 = vunpack.c.l.bf16 %v3940
        %v3973 = vunpack.c.l.bf16 %v3941
        %v3974 = vunpack.c.l.bf16 %v3942
        %v3975 = vunpack.c.l.bf16 %v3943
        %v3976 = vunpack.c.l.bf16 %v3944
        %v3977 = vunpack.c.l.bf16 %v3945
        %v3978 = vunpack.c.l.bf16 %v3946
        %v3979 = vunpack.c.l.bf16 %v3947
        %v3980 = vunpack.c.l.bf16 %v3948
        %v3981 = vunpack.c.l.bf16 %v3949
        %v3982 = vunpack.c.l.bf16 %v3950
        %v3983 = vunpack.c.l.bf16 %v3951
        %v3984 = vunpack.c.l.bf16 %v3952
        %v3985 = vunpack.c.l.bf16 %v3953
        %v3986 = vunpack.c.l.bf16 %v3954
        %v3987 = vunpack.c.l.bf16 %v3955
        %v3988 = vunpack.c.l.bf16 %v3956
        %v3989 = vunpack.c.l.bf16 %v3957
        %v3990 = vunpack.c.l.bf16 %v3958
        %v3991 = vunpack.c.l.bf16 %v3959
        %v3992 = vunpack.c.l.bf16 %v3960
        %v3993 = vunpack.c.l.bf16 %v3961
        %v3994 = vunpack.c.l.bf16 %v3962
        %v3995 = vunpack.c.l.bf16 %v3963
        %v3996 = vunpack.c.l.bf16 %v3964
        %v3997 = vunpack.c.l.bf16 %v3965
        %v3998 = vld [vmem:[#allocation5] sm:$0xff]
        %v3999 = vld [vmem:[#allocation5 + $0x8] sm:$0xff]
        %v4000 = vld [vmem:[#allocation5 + $0x10] sm:$0xff]
        %v4001 = vld [vmem:[#allocation5 + $0x18] sm:$0xff]
        %v4002 = vld [vmem:[#allocation5 + $0x20] sm:$0xff]
        %v4003 = vld [vmem:[#allocation5 + $0x28] sm:$0xff]
        %v4004 = vld [vmem:[#allocation5 + $0x30] sm:$0xff]
        %v4005 = vld [vmem:[#allocation5 + $0x38] sm:$0xff]
        %v4006 = vld [vmem:[#allocation5 + $0x40] sm:$0xff]
        %v4007 = vld [vmem:[#allocation5 + $0x48] sm:$0xff]
        %v4008 = vld [vmem:[#allocation5 + $0x50] sm:$0xff]
        %v4009 = vld [vmem:[#allocation5 + $0x58] sm:$0xff]
        %v4010 = vld [vmem:[#allocation5 + $0x60] sm:$0xff]
        %v4011 = vld [vmem:[#allocation5 + $0x68] sm:$0xff]
        %v4012 = vld [vmem:[#allocation5 + $0x70] sm:$0xff]
        %v4013 = vld [vmem:[#allocation5 + $0x78] sm:$0xff]
        %v4014 = vld [vmem:[#allocation5 + $0x80] sm:$0xff]
        %v4015 = vld [vmem:[#allocation5 + $0x88] sm:$0xff]
        %v4016 = vld [vmem:[#allocation5 + $0x90] sm:$0xff]
        %v4017 = vld [vmem:[#allocation5 + $0x98] sm:$0xff]
        %v4018 = vld [vmem:[#allocation5 + $0xa0] sm:$0xff]
        %v4019 = vld [vmem:[#allocation5 + $0xa8] sm:$0xff]
        %v4020 = vld [vmem:[#allocation5 + $0xb0] sm:$0xff]
        %v4021 = vld [vmem:[#allocation5 + $0xb8] sm:$0xff]
        %v4022 = vld [vmem:[#allocation5 + $0xc0] sm:$0xff]
        %v4023 = vld [vmem:[#allocation5 + $0xc8] sm:$0xff]
        %v4024 = vld [vmem:[#allocation5 + $0xd0] sm:$0xff]
        %v4025 = vld [vmem:[#allocation5 + $0xd8] sm:$0xff]
        %v4026 = vld [vmem:[#allocation5 + $0xe0] sm:$0xff]
        %v4027 = vld [vmem:[#allocation5 + $0xe8] sm:$0xff]
        %v4028 = vld [vmem:[#allocation5 + $0xf0] sm:$0xff]
        %v4029 = vld [vmem:[#allocation5 + $0xf8] sm:$0xff]
        %4031 = vset.pattern.permute.xlu0 0
        %4032 = vperm.xlu0 %4031, %v3998
        %v4033 = vpop.permute.xlu0 %4032
        %4036 = vset.pattern.permute.xlu0 0
        %4037 = vperm.xlu0 %4036, %v3999
        %v4038 = vpop.permute.xlu0 %4037
        %4041 = vset.pattern.permute.xlu0 0
        %4042 = vperm.xlu0 %4041, %v4000
        %v4043 = vpop.permute.xlu0 %4042
        %4046 = vset.pattern.permute.xlu0 0
        %4047 = vperm.xlu0 %4046, %v4001
        %v4048 = vpop.permute.xlu0 %4047
        %4051 = vset.pattern.permute.xlu0 0
        %4052 = vperm.xlu0 %4051, %v4002
        %v4053 = vpop.permute.xlu0 %4052
        %4056 = vset.pattern.permute.xlu0 0
        %4057 = vperm.xlu0 %4056, %v4003
        %v4058 = vpop.permute.xlu0 %4057
        %4061 = vset.pattern.permute.xlu0 0
        %4062 = vperm.xlu0 %4061, %v4004
        %v4063 = vpop.permute.xlu0 %4062
        %4066 = vset.pattern.permute.xlu0 0
        %4067 = vperm.xlu0 %4066, %v4005
        %v4068 = vpop.permute.xlu0 %4067
        %4071 = vset.pattern.permute.xlu0 0
        %4072 = vperm.xlu0 %4071, %v4006
        %v4073 = vpop.permute.xlu0 %4072
        %4076 = vset.pattern.permute.xlu0 0
        %4077 = vperm.xlu0 %4076, %v4007
        %v4078 = vpop.permute.xlu0 %4077
        %4081 = vset.pattern.permute.xlu0 0
        %4082 = vperm.xlu0 %4081, %v4008
        %v4083 = vpop.permute.xlu0 %4082
        %4086 = vset.pattern.permute.xlu0 0
        %4087 = vperm.xlu0 %4086, %v4009
        %v4088 = vpop.permute.xlu0 %4087
        %4091 = vset.pattern.permute.xlu0 0
        %4092 = vperm.xlu0 %4091, %v4010
        %v4093 = vpop.permute.xlu0 %4092
        %4096 = vset.pattern.permute.xlu0 0
        %4097 = vperm.xlu0 %4096, %v4011
        %v4098 = vpop.permute.xlu0 %4097
        %4101 = vset.pattern.permute.xlu0 0
        %4102 = vperm.xlu0 %4101, %v4012
        %v4103 = vpop.permute.xlu0 %4102
        %4106 = vset.pattern.permute.xlu0 0
        %4107 = vperm.xlu0 %4106, %v4013
        %v4108 = vpop.permute.xlu0 %4107
        %4111 = vset.pattern.permute.xlu0 0
        %4112 = vperm.xlu0 %4111, %v4014
        %v4113 = vpop.permute.xlu0 %4112
        %4116 = vset.pattern.permute.xlu0 0
        %4117 = vperm.xlu0 %4116, %v4015
        %v4118 = vpop.permute.xlu0 %4117
        %4121 = vset.pattern.permute.xlu0 0
        %4122 = vperm.xlu0 %4121, %v4016
        %v4123 = vpop.permute.xlu0 %4122
        %4126 = vset.pattern.permute.xlu0 0
        %4127 = vperm.xlu0 %4126, %v4017
        %v4128 = vpop.permute.xlu0 %4127
        %4131 = vset.pattern.permute.xlu0 0
        %4132 = vperm.xlu0 %4131, %v4018
        %v4133 = vpop.permute.xlu0 %4132
        %4136 = vset.pattern.permute.xlu0 0
        %4137 = vperm.xlu0 %4136, %v4019
        %v4138 = vpop.permute.xlu0 %4137
        %4141 = vset.pattern.permute.xlu0 0
        %4142 = vperm.xlu0 %4141, %v4020
        %v4143 = vpop.permute.xlu0 %4142
        %4146 = vset.pattern.permute.xlu0 0
        %4147 = vperm.xlu0 %4146, %v4021
        %v4148 = vpop.permute.xlu0 %4147
        %4151 = vset.pattern.permute.xlu0 0
        %4152 = vperm.xlu0 %4151, %v4022
        %v4153 = vpop.permute.xlu0 %4152
        %4156 = vset.pattern.permute.xlu0 0
        %4157 = vperm.xlu0 %4156, %v4023
        %v4158 = vpop.permute.xlu0 %4157
        %4161 = vset.pattern.permute.xlu0 0
        %4162 = vperm.xlu0 %4161, %v4024
        %v4163 = vpop.permute.xlu0 %4162
        %4166 = vset.pattern.permute.xlu0 0
        %4167 = vperm.xlu0 %4166, %v4025
        %v4168 = vpop.permute.xlu0 %4167
        %4171 = vset.pattern.permute.xlu0 0
        %4172 = vperm.xlu0 %4171, %v4026
        %v4173 = vpop.permute.xlu0 %4172
        %4176 = vset.pattern.permute.xlu0 0
        %4177 = vperm.xlu0 %4176, %v4027
        %v4178 = vpop.permute.xlu0 %4177
        %4181 = vset.pattern.permute.xlu0 0
        %4182 = vperm.xlu0 %4181, %v4028
        %v4183 = vpop.permute.xlu0 %4182
        %4186 = vset.pattern.permute.xlu0 0
        %4187 = vperm.xlu0 %4186, %v4029
        %v4188 = vpop.permute.xlu0 %4187
        %v4190 = vmul.f32 %v3966, %v4033
        %v4191 = vmul.f32 %v3967, %v4038
        %v4192 = vmul.f32 %v3968, %v4043
        %v4193 = vmul.f32 %v3969, %v4048
        %v4194 = vmul.f32 %v3970, %v4053
        %v4195 = vmul.f32 %v3971, %v4058
        %v4196 = vmul.f32 %v3972, %v4063
        %v4197 = vmul.f32 %v3973, %v4068
        %v4198 = vmul.f32 %v3974, %v4073
        %v4199 = vmul.f32 %v3975, %v4078
        %v4200 = vmul.f32 %v3976, %v4083
        %v4201 = vmul.f32 %v3977, %v4088
        %v4202 = vmul.f32 %v3978, %v4093
        %v4203 = vmul.f32 %v3979, %v4098
        %v4204 = vmul.f32 %v3980, %v4103
        %v4205 = vmul.f32 %v3981, %v4108
        %v4206 = vmul.f32 %v3982, %v4113
        %v4207 = vmul.f32 %v3983, %v4118
        %v4208 = vmul.f32 %v3984, %v4123
        %v4209 = vmul.f32 %v3985, %v4128
        %v4210 = vmul.f32 %v3986, %v4133
        %v4211 = vmul.f32 %v3987, %v4138
        %v4212 = vmul.f32 %v3988, %v4143
        %v4213 = vmul.f32 %v3989, %v4148
        %v4214 = vmul.f32 %v3990, %v4153
        %v4215 = vmul.f32 %v3991, %v4158
        %v4216 = vmul.f32 %v3992, %v4163
        %v4217 = vmul.f32 %v3993, %v4168
        %v4218 = vmul.f32 %v3994, %v4173
        %v4219 = vmul.f32 %v3995, %v4178
        %v4220 = vmul.f32 %v3996, %v4183
        %v4221 = vmul.f32 %v3997, %v4188
        %v4222 = vld [vmem:[#allocation6] sm:$0xff]
        %v4223 = vld [vmem:[#allocation6 + $0x8] sm:$0xff]
        %v4224 = vld [vmem:[#allocation6 + $0x10] sm:$0xff]
        %v4225 = vld [vmem:[#allocation6 + $0x18] sm:$0xff]
        %v4226 = vld [vmem:[#allocation6 + $0x20] sm:$0xff]
        %v4227 = vld [vmem:[#allocation6 + $0x28] sm:$0xff]
        %v4228 = vld [vmem:[#allocation6 + $0x30] sm:$0xff]
        %v4229 = vld [vmem:[#allocation6 + $0x38] sm:$0xff]
        %v4230 = vld [vmem:[#allocation6 + $0x40] sm:$0xff]
        %v4231 = vld [vmem:[#allocation6 + $0x48] sm:$0xff]
        %v4232 = vld [vmem:[#allocation6 + $0x50] sm:$0xff]
        %v4233 = vld [vmem:[#allocation6 + $0x58] sm:$0xff]
        %v4234 = vld [vmem:[#allocation6 + $0x60] sm:$0xff]
        %v4235 = vld [vmem:[#allocation6 + $0x68] sm:$0xff]
        %v4236 = vld [vmem:[#allocation6 + $0x70] sm:$0xff]
        %v4237 = vld [vmem:[#allocation6 + $0x78] sm:$0xff]
        %v4238 = vld [vmem:[#allocation6 + $0x80] sm:$0xff]
        %v4239 = vld [vmem:[#allocation6 + $0x88] sm:$0xff]
        %v4240 = vld [vmem:[#allocation6 + $0x90] sm:$0xff]
        %v4241 = vld [vmem:[#allocation6 + $0x98] sm:$0xff]
        %v4242 = vld [vmem:[#allocation6 + $0xa0] sm:$0xff]
        %v4243 = vld [vmem:[#allocation6 + $0xa8] sm:$0xff]
        %v4244 = vld [vmem:[#allocation6 + $0xb0] sm:$0xff]
        %v4245 = vld [vmem:[#allocation6 + $0xb8] sm:$0xff]
        %v4246 = vld [vmem:[#allocation6 + $0xc0] sm:$0xff]
        %v4247 = vld [vmem:[#allocation6 + $0xc8] sm:$0xff]
        %v4248 = vld [vmem:[#allocation6 + $0xd0] sm:$0xff]
        %v4249 = vld [vmem:[#allocation6 + $0xd8] sm:$0xff]
        %v4250 = vld [vmem:[#allocation6 + $0xe0] sm:$0xff]
        %v4251 = vld [vmem:[#allocation6 + $0xe8] sm:$0xff]
        %v4252 = vld [vmem:[#allocation6 + $0xf0] sm:$0xff]
        %v4253 = vld [vmem:[#allocation6 + $0xf8] sm:$0xff]
        %4255 = vset.pattern.permute.xlu0 0
        %4256 = vperm.xlu0 %4255, %v4222
        %v4257 = vpop.permute.xlu0 %4256
        %4260 = vset.pattern.permute.xlu0 0
        %4261 = vperm.xlu0 %4260, %v4223
        %v4262 = vpop.permute.xlu0 %4261
        %4265 = vset.pattern.permute.xlu0 0
        %4266 = vperm.xlu0 %4265, %v4224
        %v4267 = vpop.permute.xlu0 %4266
        %4270 = vset.pattern.permute.xlu0 0
        %4271 = vperm.xlu0 %4270, %v4225
        %v4272 = vpop.permute.xlu0 %4271
        %4275 = vset.pattern.permute.xlu0 0
        %4276 = vperm.xlu0 %4275, %v4226
        %v4277 = vpop.permute.xlu0 %4276
        %4280 = vset.pattern.permute.xlu0 0
        %4281 = vperm.xlu0 %4280, %v4227
        %v4282 = vpop.permute.xlu0 %4281
        %4285 = vset.pattern.permute.xlu0 0
        %4286 = vperm.xlu0 %4285, %v4228
        %v4287 = vpop.permute.xlu0 %4286
        %4290 = vset.pattern.permute.xlu0 0
        %4291 = vperm.xlu0 %4290, %v4229
        %v4292 = vpop.permute.xlu0 %4291
        %4295 = vset.pattern.permute.xlu0 0
        %4296 = vperm.xlu0 %4295, %v4230
        %v4297 = vpop.permute.xlu0 %4296
        %4300 = vset.pattern.permute.xlu0 0
        %4301 = vperm.xlu0 %4300, %v4231
        %v4302 = vpop.permute.xlu0 %4301
        %4305 = vset.pattern.permute.xlu0 0
        %4306 = vperm.xlu0 %4305, %v4232
        %v4307 = vpop.permute.xlu0 %4306
        %4310 = vset.pattern.permute.xlu0 0
        %4311 = vperm.xlu0 %4310, %v4233
        %v4312 = vpop.permute.xlu0 %4311
        %4315 = vset.pattern.permute.xlu0 0
        %4316 = vperm.xlu0 %4315, %v4234
        %v4317 = vpop.permute.xlu0 %4316
        %4320 = vset.pattern.permute.xlu0 0
        %4321 = vperm.xlu0 %4320, %v4235
        %v4322 = vpop.permute.xlu0 %4321
        %4325 = vset.pattern.permute.xlu0 0
        %4326 = vperm.xlu0 %4325, %v4236
        %v4327 = vpop.permute.xlu0 %4326
        %4330 = vset.pattern.permute.xlu0 0
        %4331 = vperm.xlu0 %4330, %v4237
        %v4332 = vpop.permute.xlu0 %4331
        %4335 = vset.pattern.permute.xlu0 0
        %4336 = vperm.xlu0 %4335, %v4238
        %v4337 = vpop.permute.xlu0 %4336
        %4340 = vset.pattern.permute.xlu0 0
        %4341 = vperm.xlu0 %4340, %v4239
        %v4342 = vpop.permute.xlu0 %4341
        %4345 = vset.pattern.permute.xlu0 0
        %4346 = vperm.xlu0 %4345, %v4240
        %v4347 = vpop.permute.xlu0 %4346
        %4350 = vset.pattern.permute.xlu0 0
        %4351 = vperm.xlu0 %4350, %v4241
        %v4352 = vpop.permute.xlu0 %4351
        %4355 = vset.pattern.permute.xlu0 0
        %4356 = vperm.xlu0 %4355, %v4242
        %v4357 = vpop.permute.xlu0 %4356
        %4360 = vset.pattern.permute.xlu0 0
        %4361 = vperm.xlu0 %4360, %v4243
        %v4362 = vpop.permute.xlu0 %4361
        %4365 = vset.pattern.permute.xlu0 0
        %4366 = vperm.xlu0 %4365, %v4244
        %v4367 = vpop.permute.xlu0 %4366
        %4370 = vset.pattern.permute.xlu0 0
        %4371 = vperm.xlu0 %4370, %v4245
        %v4372 = vpop.permute.xlu0 %4371
        %4375 = vset.pattern.permute.xlu0 0
        %4376 = vperm.xlu0 %4375, %v4246
        %v4377 = vpop.permute.xlu0 %4376
        %4380 = vset.pattern.permute.xlu0 0
        %4381 = vperm.xlu0 %4380, %v4247
        %v4382 = vpop.permute.xlu0 %4381
        %4385 = vset.pattern.permute.xlu0 0
        %4386 = vperm.xlu0 %4385, %v4248
        %v4387 = vpop.permute.xlu0 %4386
        %4390 = vset.pattern.permute.xlu0 0
        %4391 = vperm.xlu0 %4390, %v4249
        %v4392 = vpop.permute.xlu0 %4391
        %4395 = vset.pattern.permute.xlu0 0
        %4396 = vperm.xlu0 %4395, %v4250
        %v4397 = vpop.permute.xlu0 %4396
        %4400 = vset.pattern.permute.xlu0 0
        %4401 = vperm.xlu0 %4400, %v4251
        %v4402 = vpop.permute.xlu0 %4401
        %4405 = vset.pattern.permute.xlu0 0
        %4406 = vperm.xlu0 %4405, %v4252
        %v4407 = vpop.permute.xlu0 %4406
        %4410 = vset.pattern.permute.xlu0 0
        %4411 = vperm.xlu0 %4410, %v4253
        %v4412 = vpop.permute.xlu0 %4411
        %v4414 = vadd.f32 %v4190, %v4257
        %v4415 = vadd.f32 %v4191, %v4262
        %v4416 = vadd.f32 %v4192, %v4267
        %v4417 = vadd.f32 %v4193, %v4272
        %v4418 = vadd.f32 %v4194, %v4277
        %v4419 = vadd.f32 %v4195, %v4282
        %v4420 = vadd.f32 %v4196, %v4287
        %v4421 = vadd.f32 %v4197, %v4292
        %v4422 = vadd.f32 %v4198, %v4297
        %v4423 = vadd.f32 %v4199, %v4302
        %v4424 = vadd.f32 %v4200, %v4307
        %v4425 = vadd.f32 %v4201, %v4312
        %v4426 = vadd.f32 %v4202, %v4317
        %v4427 = vadd.f32 %v4203, %v4322
        %v4428 = vadd.f32 %v4204, %v4327
        %v4429 = vadd.f32 %v4205, %v4332
        %v4430 = vadd.f32 %v4206, %v4337
        %v4431 = vadd.f32 %v4207, %v4342
        %v4432 = vadd.f32 %v4208, %v4347
        %v4433 = vadd.f32 %v4209, %v4352
        %v4434 = vadd.f32 %v4210, %v4357
        %v4435 = vadd.f32 %v4211, %v4362
        %v4436 = vadd.f32 %v4212, %v4367
        %v4437 = vadd.f32 %v4213, %v4372
        %v4438 = vadd.f32 %v4214, %v4377
        %v4439 = vadd.f32 %v4215, %v4382
        %v4440 = vadd.f32 %v4216, %v4387
        %v4441 = vadd.f32 %v4217, %v4392
        %v4442 = vadd.f32 %v4218, %v4397
        %v4443 = vadd.f32 %v4219, %v4402
        %v4444 = vadd.f32 %v4220, %v4407
        %v4445 = vadd.f32 %v4221, %v4412
        %v4446 = vpack.c.bf16 %v4415, %v4414
        %v4447 = vpack.c.bf16 %v4417, %v4416
        %v4448 = vpack.c.bf16 %v4419, %v4418
        %v4449 = vpack.c.bf16 %v4421, %v4420
        %v4450 = vpack.c.bf16 %v4423, %v4422
        %v4451 = vpack.c.bf16 %v4425, %v4424
        %v4452 = vpack.c.bf16 %v4427, %v4426
        %v4453 = vpack.c.bf16 %v4429, %v4428
        %v4454 = vpack.c.bf16 %v4431, %v4430
        %v4455 = vpack.c.bf16 %v4433, %v4432
        %v4456 = vpack.c.bf16 %v4435, %v4434
        %v4457 = vpack.c.bf16 %v4437, %v4436
        %v4458 = vpack.c.bf16 %v4439, %v4438
        %v4459 = vpack.c.bf16 %v4441, %v4440
        %v4460 = vpack.c.bf16 %v4443, %v4442
        %v4461 = vpack.c.bf16 %v4445, %v4444
        %v4478 = vunpack.c.l.b16 %v4446
        %v4479 = vunpack.c.h.b16 %v4446
        %v4480 = vunpack.c.l.b16 %v4447
        %v4481 = vunpack.c.h.b16 %v4447
        %v4482 = vunpack.c.l.b16 %v4448
        %v4483 = vunpack.c.h.b16 %v4448
        %v4484 = vunpack.c.l.b16 %v4449
        %v4485 = vunpack.c.h.b16 %v4449
        %v4486 = vunpack.c.l.b16 %v4450
        %v4487 = vunpack.c.h.b16 %v4450
        %v4488 = vunpack.c.l.b16 %v4451
        %v4489 = vunpack.c.h.b16 %v4451
        %v4490 = vunpack.c.l.b16 %v4452
        %v4491 = vunpack.c.h.b16 %v4452
        %v4492 = vunpack.c.l.b16 %v4453
        %v4493 = vunpack.c.h.b16 %v4453
        %v4494 = vunpack.c.l.b16 %v4454
        %v4495 = vunpack.c.h.b16 %v4454
        %v4496 = vunpack.c.l.b16 %v4455
        %v4497 = vunpack.c.h.b16 %v4455
        %v4498 = vunpack.c.l.b16 %v4456
        %v4499 = vunpack.c.h.b16 %v4456
        %v4500 = vunpack.c.l.b16 %v4457
        %v4501 = vunpack.c.h.b16 %v4457
        %v4502 = vunpack.c.l.b16 %v4458
        %v4503 = vunpack.c.h.b16 %v4458
        %v4504 = vunpack.c.l.b16 %v4459
        %v4505 = vunpack.c.h.b16 %v4459
        %v4506 = vunpack.c.l.b16 %v4460
        %v4507 = vunpack.c.h.b16 %v4460
        %v4508 = vunpack.c.l.b16 %v4461
        %v4509 = vunpack.c.h.b16 %v4461
        %v4510 = vpack.c.b16 %v4478, %v4478
        %v4511 = vpack.c.b16 %v4479, %v4479
        %v4512 = vpack.c.b16 %v4480, %v4480
        %v4513 = vpack.c.b16 %v4481, %v4481
        %v4514 = vpack.c.b16 %v4482, %v4482
        %v4515 = vpack.c.b16 %v4483, %v4483
        %v4516 = vpack.c.b16 %v4484, %v4484
        %v4517 = vpack.c.b16 %v4485, %v4485
        %v4518 = vpack.c.b16 %v4486, %v4486
        %v4519 = vpack.c.b16 %v4487, %v4487
        %v4520 = vpack.c.b16 %v4488, %v4488
        %v4521 = vpack.c.b16 %v4489, %v4489
        %v4522 = vpack.c.b16 %v4490, %v4490
        %v4523 = vpack.c.b16 %v4491, %v4491
        %v4524 = vpack.c.b16 %v4492, %v4492
        %v4525 = vpack.c.b16 %v4493, %v4493
        %v4526 = vpack.c.b16 %v4494, %v4494
        %v4527 = vpack.c.b16 %v4495, %v4495
        %v4528 = vpack.c.b16 %v4496, %v4496
        %v4529 = vpack.c.b16 %v4497, %v4497
        %v4530 = vpack.c.b16 %v4498, %v4498
        %v4531 = vpack.c.b16 %v4499, %v4499
        %v4532 = vpack.c.b16 %v4500, %v4500
        %v4533 = vpack.c.b16 %v4501, %v4501
        %v4534 = vpack.c.b16 %v4502, %v4502
        %v4535 = vpack.c.b16 %v4503, %v4503
        %v4536 = vpack.c.b16 %v4504, %v4504
        %v4537 = vpack.c.b16 %v4505, %v4505
        %v4538 = vpack.c.b16 %v4506, %v4506
        %v4539 = vpack.c.b16 %v4507, %v4507
        %v4540 = vpack.c.b16 %v4508, %v4508
        %v4541 = vpack.c.b16 %v4509, %v4509
        %4574 = vst [vmem:[%s535] sm:$0xf] %v4510
        %4575 = vst [vmem:[%s535 + $0x4] sm:$0xf] %v4511
        %4576 = vst [vmem:[%s535 + $0x8] sm:$0xf] %v4512
        %4577 = vst [vmem:[%s535 + $0xc] sm:$0xf] %v4513
        %4578 = vst [vmem:[%s535 + $0x10] sm:$0xf] %v4514
        %4579 = vst [vmem:[%s535 + $0x14] sm:$0xf] %v4515
        %4580 = vst [vmem:[%s535 + $0x18] sm:$0xf] %v4516
        %4581 = vst [vmem:[%s535 + $0x1c] sm:$0xf] %v4517
        %4582 = vst [vmem:[%s535 + $0x20] sm:$0xf] %v4518
        %4583 = vst [vmem:[%s535 + $0x24] sm:$0xf] %v4519
        %4584 = vst [vmem:[%s535 + $0x28] sm:$0xf] %v4520
        %4585 = vst [vmem:[%s535 + $0x2c] sm:$0xf] %v4521
        %4586 = vst [vmem:[%s535 + $0x30] sm:$0xf] %v4522
        %4587 = vst [vmem:[%s535 + $0x34] sm:$0xf] %v4523
        %4588 = vst [vmem:[%s535 + $0x38] sm:$0xf] %v4524
        %4589 = vst [vmem:[%s535 + $0x3c] sm:$0xf] %v4525
        %4590 = vst [vmem:[%s535 + $0x40] sm:$0xf] %v4526
        %4591 = vst [vmem:[%s535 + $0x44] sm:$0xf] %v4527
        %4592 = vst [vmem:[%s535 + $0x48] sm:$0xf] %v4528
        %4593 = vst [vmem:[%s535 + $0x4c] sm:$0xf] %v4529
        %4594 = vst [vmem:[%s535 + $0x50] sm:$0xf] %v4530
        %4595 = vst [vmem:[%s535 + $0x54] sm:$0xf] %v4531
        %4596 = vst [vmem:[%s535 + $0x58] sm:$0xf] %v4532
        %4597 = vst [vmem:[%s535 + $0x5c] sm:$0xf] %v4533
        %4598 = vst [vmem:[%s535 + $0x60] sm:$0xf] %v4534
        %4599 = vst [vmem:[%s535 + $0x64] sm:$0xf] %v4535
        %4600 = vst [vmem:[%s535 + $0x68] sm:$0xf] %v4536
        %4601 = vst [vmem:[%s535 + $0x6c] sm:$0xf] %v4537
        %4602 = vst [vmem:[%s535 + $0x70] sm:$0xf] %v4538
        %4603 = vst [vmem:[%s535 + $0x74] sm:$0xf] %v4539
        %4604 = vst [vmem:[%s535 + $0x78] sm:$0xf] %v4540
        %4605 = vst [vmem:[%s535 + $0x7c] sm:$0xf] %v4541
      $region64: #{attention_encoder_forward.1} parent=47 // pred_fallthru
        _
      %s4606 = smul.u32 %s28, %s27
      %s4607 = smul.u32 %s29, %s27
      %s4608 = smul.u32 32, %s26
      %p4609 = scmp.lt.s32.totalorder %s4606, 1
      %s4610 = scalar_select %p4609, %s4606, 1
      %p4611 = scmp.lt.s32.totalorder %s4608, 63
      %s4612 = scalar_select %p4611, %s4608, 63
      %p4613 = scmp.lt.s32.totalorder %s4607, 0
      %s4614 = scalar_select %p4613, %s4607, 0
      %s4615 = sadd.s32 %s4614, %s4612
      %s4616 = smul.addr %s4610, 64
      %s4617 = sadd.s32 %s4615, %s4616
      %s4618 = smul.addr %s4617, 4
      %s4619 = scalar_lea.vmem %s7, %s4618
      %s4620 = smul.u32 32, %s26
      %p4621 = scmp.lt.s32.totalorder %s4620, 63
      %s4622 = scalar_select %p4621, %s4620, 63
      %s4623 = smul.addr %s4622, 8
      %s4624 = scalar_lea.vmem %s8, %s4623
      // Predicated region
      $region65: #{attention_encoder_forward.1} parent=47 // pred_check
        %p4625 = pneg %p262
      $region66: #{attention_encoder_forward.1} parent=47 // pred_check_branch
        %4627 = sbr.rel (%p4625) target = $region68
      $region67: #{attention_encoder_forward.1} parent=47 // pred_region
        %s4628 = smul.u32 %s28, %s27
        %s4629 = smul.u32 %s29, %s27
        %s4630 = smul.u32 32, %s26
      $region68: #{attention_encoder_forward.1} parent=47 // pred_fallthru
        _
      // Predicated region
      $region69: #{attention_encoder_forward.1} parent=47 // pred_check
        %p4631 = pneg %p288
      $region70: #{attention_encoder_forward.1} parent=47 // pred_check_branch
        %4633 = sbr.rel (%p4631) target = $region72
      $region71: #{attention_encoder_forward.1} parent=47 // pred_region
        %s4634 = smul.u32 32, %s26
      $region72: #{attention_encoder_forward.1} parent=47 // pred_fallthru
        _
    $region48: #{attention_encoder_forward.1} parent=5 // pred_fallthru
      _
    %p4635 = scmp.le.s32.totalorder 2, %s15
    // Predicated region
    $region73: #{attention_encoder_forward.1} parent=5 // pred_check
      %p4636 = pneg %p4635
    $region74: #{attention_encoder_forward.1} parent=5 // pred_check_branch
      %4638 = sbr.rel (%p4636) target = $region76
    $region75: #{attention_encoder_forward.1} parent=5 // pred_region
      %s4639 = ssub.s32 %s15, 2
      // Predicated region
      $region77: #{attention_encoder_forward.1} parent=75 // pred_check
        %p4640 = pneg %p268
      $region78: #{attention_encoder_forward.1} parent=75 // pred_check_branch
        %4642 = sbr.rel (%p4640) target = $region80
      $region79: #{attention_encoder_forward.1} parent=75 // pred_region
        %s4643 = smul.u32 %s32, %s31
        %s4644 = smul.u32 %s33, %s31
        %s4645 = smul.u32 32, %s30
        %p4646 = scmp.lt.s32.totalorder %s4643, 1
        %s4647 = scalar_select %p4646, %s4643, 1
        %p4648 = scmp.lt.s32.totalorder %s4645, 63
        %s4649 = scalar_select %p4648, %s4645, 63
        %p4650 = scmp.lt.s32.totalorder %s4644, 0
        %s4651 = scalar_select %p4650, %s4644, 0
        %s4652 = sadd.s32 %s4651, %s4649
        %s4653 = smul.addr %s4647, 64
        %s4654 = sadd.s32 %s4652, %s4653
        %s4655 = smul.addr %s4654, 4
        %s4656 = scalar_lea.vmem %s7, %s4655
      $region80: #{attention_encoder_forward.1} parent=75 // pred_fallthru
        _
      // Predicated region
      $region81: #{attention_encoder_forward.1} parent=75 // pred_check
        %p4657 = pneg %p294
      $region82: #{attention_encoder_forward.1} parent=75 // pred_check_branch
        %4659 = sbr.rel (%p4657) target = $region84
      $region83: #{attention_encoder_forward.1} parent=75 // pred_region
        %s4660 = smul.u32 32, %s30
        %p4661 = scmp.lt.s32.totalorder %s4660, 63
        %s4662 = scalar_select %p4661, %s4660, 63
        %s4663 = smul.addr %s4662, 8
        %s4664 = scalar_lea.vmem %s8, %s4663
      $region84: #{attention_encoder_forward.1} parent=75 // pred_fallthru
        _
    $region76: #{attention_encoder_forward.1} parent=5 // pred_fallthru
      _
  $region6: #{attention_encoder_forward.1} parent=0 // loop_footer
    %s19 = sadd.s32 1, %s15
  $region7: #{attention_encoder_forward.1} parent=0 // loop_footer_branch
    %14 = sbr.rel target = $region3
  $region8: #{attention_encoder_forward.1} parent=0 // loop_exit
    _

</llo_original>
